<compile_context>
chip_gen: v6e
topology: v6e:2x2x1
jax: 0.10.0
libtpu: 0.0.40
codegen_flags: <defaults>
</compile_context>

<pallas_src>
import math

import jax
import jax.numpy as jnp
from jax import lax
from jax.experimental import pallas as pl
from jax.experimental.pallas import tpu as pltpu


def _round_up(x, m):
    return ((x + m - 1) // m) * m


# ----------------------------------------------------------------------------
# Pallas kernels
# ----------------------------------------------------------------------------
def _conv_kernel(w_ref, x_ref, shift_ref, o_ref):
    """Lane-dense fused conv matmul:  ReLU(W_bn @ patches^T + shift).

    w_ref:     (Cout, K_pad)   -- BN scale already folded into the weights
    x_ref:     (K_pad, tp)     -- im2col patches, transposed (K-major)
    shift_ref: (Cout, 1)       -- folded BN/conv bias
    o_ref:     (Cout, tp)      -- tp >= 128  => unmasked lane-dense stores
    """
    acc = jnp.dot(w_ref[...], x_ref[...], preferred_element_type=jnp.float32)
    o_ref[...] = jnp.maximum(acc + shift_ref[...], 0.0)


def _head_kernel(x_ref, w1_ref, b1_ref, w2_ref, b2_ref, wva_ref, bva_ref, q_ref):
    """Fused dueling head: fc1 -> fc2 -> merged [V|A] -> Q = V + A - mean(A)."""
    h1 = jnp.dot(x_ref[...], w1_ref[...], preferred_element_type=jnp.float32) + b1_ref[...]
    h2 = jnp.dot(h1, w2_ref[...], preferred_element_type=jnp.float32) + b2_ref[...]
    va = jnp.dot(h2, wva_ref[...], preferred_element_type=jnp.float32) + bva_ref[...]
    v = va[:, :1]                       # (1, 1)
    a = va[:, 1:]                       # (1, action_dim)
    q_ref[...] = v + a - jnp.mean(a, axis=-1, keepdims=True)


# ----------------------------------------------------------------------------
# Conv layer wrapper (im2col in XLA, matmul+BN+ReLU in Pallas)
# ----------------------------------------------------------------------------
def im2col_T(x_nchw, kh, kw, stride, padding):
    """x: (N, C, H, W) -> patches^T of shape (C*kh*kw, N*Ho*Wo).

    K ordering is (c, i, j) so the weight matrix is simply w.reshape(Cout, -1).
    """
    if padding:
        x = jnp.pad(x_nchw, ((0, 0), (0, 0), (padding, padding), (padding, padding)))
    else:
        x = x_nchw
    n, c, h, w = x.shape
    ho = (h - kh) // stride + 1
    wo = (w - kw) // stride + 1
    cols = []
    for i in range(kh):
        for j in range(kw):
            patch = lax.slice(
                x, (0, 0, i, j),
                (n, c, i + (ho - 1) * stride + 1, j + (wo - 1) * stride + 1),
                (1, 1, stride, stride))                 # (n, c, ho, wo)
            cols.append(patch)
    pt = jnp.stack(cols, axis=0)                        # (kh*kw, n, c, ho, wo)
    pt = jnp.transpose(pt, (2, 0, 1, 3, 4))             # (c, kh*kw, n, ho, wo)
    return pt.reshape(c * kh * kw, n * ho * wo), ho, wo


def conv_bn_relu(x_nchw, w_mat, shift, *, kh, kw, stride, padding):
    """w_mat: (Cout, K_pad) with BN folded; shift: (Cout, 1). Returns NCHW."""
    cout, k_pad = w_mat.shape
    pt, ho, wo = im2col_T(x_nchw, kh, kw, stride, padding)
    k, p = pt.shape
    p_pad = _round_up(p, 256)                           # 2 lane-dense tiles
    pt = jnp.pad(pt, ((0, k_pad - k), (0, p_pad - p)))
    tp = p_pad // 2

    out = pl.pallas_call(
        _conv_kernel,
        out_shape=jax.ShapeDtypeStruct((cout, p_pad), jnp.float32),
        grid=(2,),
        in_specs=[
            pl.BlockSpec((cout, k_pad), lambda i: (0, 0)),
            pl.BlockSpec((k_pad, tp), lambda i: (0, i)),
            pl.BlockSpec((cout, 1), lambda i: (0, 0)),
        ],
        out_specs=pl.BlockSpec((cout, tp), lambda i: (0, i)),
        compiler_params=pltpu.CompilerParams(
            dimension_semantics=("parallel",)),          # 2-way split for v7x megacore
    )(w_mat, pt, shift)

    n = x_nchw.shape[0]
    out = out[:, :p].reshape(cout, n, ho, wo)
    return jnp.transpose(out, (1, 0, 2, 3))             # back to NCHW (n==1: trivial)


def maxpool2x2_nchw(x):
    """nn.MaxPool2d(kernel_size=2) on NCHW (floor division of odd dims)."""
    n, c, h, w = x.shape
    hc, wc = (h // 2) * 2, (w // 2) * 2
    x = x[:, :, :hc, :wc]
    x = x.reshape(n, c, hc // 2, 2, wc // 2, 2)
    return jnp.max(x, axis=(3, 5))


def dueling_head(feat, prep):
    n_act = prep['va_w'].shape[1] - 1
    args = (feat, prep['fc1_w'], prep['fc1_b'], prep['fc2_w'], prep['fc2_b'],
            prep['va_w'], prep['va_b'])
    q = pl.pallas_call(
        _head_kernel,
        out_shape=jax.ShapeDtypeStruct((1, n_act), jnp.float32),
        grid=(1,),
        in_specs=[pl.BlockSpec(a.shape, lambda i: (0, 0)) for a in args],
        out_specs=pl.BlockSpec((1, n_act), lambda i: (0, 0)),
    )(*args)
    return q[0]


# ----------------------------------------------------------------------------
# Forward pass (takes PREPARED params)
# ----------------------------------------------------------------------------
def net_forward(prep, x_nchw, info):
    out = conv_bn_relu(x_nchw, prep['conv1_w'], prep['conv1_shift'],
                       kh=5, kw=5, stride=2, padding=0)
    out = maxpool2x2_nchw(out)
    out = conv_bn_relu(out, prep['conv2_w'], prep['conv2_shift'],
                       kh=3, kw=3, stride=2, padding=0)
    out = maxpool2x2_nchw(out)
    out = conv_bn_relu(out, prep['conv3_w'], prep['conv3_shift'],
                       kh=3, kw=3, stride=1, padding=1)
    out = maxpool2x2_nchw(out)

    flat = out.reshape(-1)                    # NCHW flatten == torch.flatten(out, 0)
    din_pad = prep['fc1_w'].shape[0]
    pad = din_pad - (flat.shape[0] + info.shape[0])
    feat = jnp.concatenate(
        [flat, info, jnp.zeros((pad,), flat.dtype)]).reshape(1, din_pad)
    return dueling_head(feat, prep)


# ----------------------------------------------------------------------------
# Parameter preparation (BN folding, K padding, V|A merge) -- done ONCE,
# outside the jitted forward, not per call.
# ----------------------------------------------------------------------------
def prepare_params(p, eps=1e-5):
    prep = {}
    for idx in (1, 2, 3):
        w = p[f'w{idx}']                                  # OIHW (cout, cin, kh, kw)
        b = p[f'b{idx}']
        gamma, beta, rmean, rvar = p[f'bn{idx}']
        cout = w.shape[0]
        k = w.shape[1] * w.shape[2] * w.shape[3]
        scale = gamma / jnp.sqrt(rvar + eps)              # (cout,)
        w_mat = w.reshape(cout, k) * scale[:, None]       # fold BN scale into weights
        k_pad = _round_up(k, 128)
        w_mat = jnp.pad(w_mat, ((0, 0), (0, k_pad - k)))
        shift = (beta + scale * (b - rmean)).reshape(cout, 1)
        prep[f'conv{idx}_w'] = w_mat
        prep[f'conv{idx}_shift'] = shift

    din = p['fc1_w'].shape[0]
    din_pad = _round_up(din, 128)
    prep['fc1_w'] = jnp.pad(p['fc1_w'], ((0, din_pad - din), (0, 0)))
    prep['fc1_b'] = p['fc1_b'].reshape(1, -1)
    prep['fc2_w'] = p['fc2_w']
    prep['fc2_b'] = p['fc2_b'].reshape(1, -1)
    prep['va_w'] = jnp.concatenate([p['V_w'], p['A_w']], axis=1)       # (64, 1+A)
    prep['va_b'] = jnp.concatenate([p['V_b'], p['A_b']]).reshape(1, -1)
    return prep


# ----------------------------------------------------------------------------
# Pure-JAX reference (for correctness check) -- uses RAW params
# ----------------------------------------------------------------------------
def net_forward_ref(params, x_nchw, info, eps=1e-5):
    x = jnp.transpose(x_nchw, (0, 2, 3, 1))

    def conv(x, w, b, bn, stride, pad):
        gamma, beta, rmean, rvar = bn
        w_hwio = jnp.transpose(w, (2, 3, 1, 0))
        y = lax.conv_general_dilated(x, w_hwio, (stride, stride),
                                     [(pad, pad), (pad, pad)],
                                     dimension_numbers=('NHWC', 'HWIO', 'NHWC'))
        y = y + b
        y = (y - rmean) / jnp.sqrt(rvar + eps) * gamma + beta
        return jnp.maximum(y, 0.0)

    def pool(x):
        return lax.reduce_window(x, -jnp.inf, lax.max,
                                 (1, 2, 2, 1), (1, 2, 2, 1), 'VALID')

    out = pool(conv(x, params['w1'], params['b1'], params['bn1'], 2, 0))
    out = pool(conv(out, params['w2'], params['b2'], params['bn2'], 2, 0))
    out = pool(conv(out, params['w3'], params['b3'], params['bn3'], 1, 1))
    flat = jnp.transpose(out, (0, 3, 1, 2)).reshape(-1)
    feat = jnp.concatenate([flat, info], axis=0)
    h1 = feat @ params['fc1_w'] + params['fc1_b']
    h2 = h1 @ params['fc2_w'] + params['fc2_b']
    v = h2 @ params['V_w'] + params['V_b']
    a = h2 @ params['A_w'] + params['A_b']
    return v + a - jnp.mean(a, keepdims=True)


# ----------------------------------------------------------------------------
# Deterministic parameter construction (shapes from Net.__init__, NoisyNet=False)
# ----------------------------------------------------------------------------
def init_params(key, cin, info_dim, action_dim):
    keys = jax.random.split(key, 17)

    def u(k, shape, fan_in):
        s = 1.0 / math.sqrt(fan_in)
        return jax.random.uniform(k, shape, jnp.float32, -s, s)

    def bn(k, c):
        k1, k2, k3, k4 = jax.random.split(k, 4)
        gamma = jax.random.uniform(k1, (c,), jnp.float32, 0.8, 1.2)
        beta = jax.random.uniform(k2, (c,), jnp.float32, -0.1, 0.1)
        rmean = jax.random.uniform(k3, (c,), jnp.float32, -0.1, 0.1)
        rvar = jax.random.uniform(k4, (c,), jnp.float32, 0.5, 1.5)
        return (gamma, beta, rmean, rvar)

    p = {}
    p['w1'] = u(keys[0], (16, cin, 5, 5), cin * 25)
    p['b1'] = u(keys[1], (16,), cin * 25)
    p['w2'] = u(keys[2], (32, 16, 3, 3), 16 * 9)
    p['b2'] = u(keys[3], (32,), 16 * 9)
    p['w3'] = u(keys[4], (32, 32, 3, 3), 32 * 9)
    p['b3'] = u(keys[5], (32,), 32 * 9)
    p['bn1'] = bn(keys[6], 16)
    p['bn2'] = bn(keys[7], 32)
    p['bn3'] = bn(keys[8], 32)
    din = 896 + info_dim
    # Linear weights stored as (in, out) for the kernel (PyTorch stores (out, in)).
    p['fc1_w'] = u(keys[9], (din, 128), din)
    p['fc1_b'] = u(keys[10], (128,), din)
    p['fc2_w'] = u(keys[11], (128, 64), 128)
    p['fc2_b'] = u(keys[12], (64,), 128)
    p['V_w'] = u(keys[13], (64, 1), 64)
    p['V_b'] = u(keys[14], (1,), 64)
    p['A_w'] = u(keys[15], (64, action_dim), 64)
    p['A_b'] = u(keys[16], (action_dim,), 64)
    return p


if __name__ == "__main__":
    key = jax.random.PRNGKey(0)
    k_p, k_x, k_i = jax.random.split(key, 3)

    # Smallest NCHW observation whose conv stack flattens to exactly 896
    # (fc1 hardcodes 896 + info_dim): (1, 3, 136, 232) -> final (1, 32, 4, 7).
    obs_dim = (1, 3, 136, 232)
    info_dim, action_dim = 8, 4

    params = init_params(k_p, obs_dim[1], info_dim, action_dim)
    prep = prepare_params(params)          # BN fold / padding done once, not per call
    x = jax.random.normal(k_x, obs_dim, jnp.float32)
    info = jax.random.normal(k_i, (info_dim,), jnp.float32)

    q = jax.jit(net_forward)(prep, x, info)
    q = jax.block_until_ready(q)
    assert q.shape == (action_dim,)

    q_ref = net_forward_ref(params, x, info)
    max_err = float(jnp.max(jnp.abs(q - q_ref)))
    if max_err > 5e-2:
        raise AssertionError(f"mismatch vs reference: max abs err = {max_err}")

    print("KERNEL_OK")
</pallas_src>

<mosaic_0001>
module attributes {stable_mosaic.version = 11 : i64} {
  func.func @_conv_kernel(%arg0: i32, %arg1: memref<16x128xf32, #tpu.memory_space<vmem>>, %arg2: memref<128x3840xf32, #tpu.memory_space<vmem>>, %arg3: memref<16x1xf32, #tpu.memory_space<vmem>>, %arg4: memref<16x3840xf32, #tpu.memory_space<vmem>>) attributes {dimension_semantics = [#tpu.dimension_semantics<parallel>], iteration_bounds = array<i64: 2>, scalar_prefetch = 0 : i64, scratch_operands = 0 : i64, tpu.core_type = #tpu.core_type<tc>, window_params = [{pipeline_mode = #tpu.pipeline_mode<synchronous>, transform_indices = @transform_0, window_bounds = array<i64: 16, 128>}, {transform_indices = @transform_1, window_bounds = array<i64: 128, 3840>}, {pipeline_mode = #tpu.pipeline_mode<synchronous>, transform_indices = @transform_2, window_bounds = array<i64: 16, 1>}, {transform_indices = @transform_3, window_bounds = array<i64: 16, 3840>}]} {
    %c0 = arith.constant 0 : index
    %c0_0 = arith.constant 0 : index
    %0 = vector.load %arg1[%c0, %c0_0] : memref<16x128xf32, #tpu.memory_space<vmem>>, vector<16x128xf32>
    %c0_1 = arith.constant 0 : index
    %c0_2 = arith.constant 0 : index
    %1 = vector.load %arg2[%c0_1, %c0_2] : memref<128x3840xf32, #tpu.memory_space<vmem>>, vector<128x3840xf32>
    %cst = arith.constant dense<0.000000e+00> : vector<16x3840xf32>
    %2 = tpu.matmul %0, %1, %cst {dimension_numbers = #tpu.dot_dimension_numbers<[1], [0], [0], [1], [0, 0, 1, 1], [], []>} : vector<16x128xf32>, vector<128x3840xf32>, vector<16x3840xf32> -> vector<16x3840xf32>
    %c0_3 = arith.constant 0 : index
    %c0_4 = arith.constant 0 : index
    %3 = vector.load %arg3[%c0_3, %c0_4] : memref<16x1xf32, #tpu.memory_space<vmem>>, vector<16x1xf32>
    %4 = vector.broadcast %3 : vector<16x1xf32> to vector<16x3840xf32>
    %5 = arith.addf %2, %4 : vector<16x3840xf32>
    %cst_5 = arith.constant 0.000000e+00 : f32
    %6 = vector.broadcast %cst_5 : f32 to vector<16x3840xf32>
    %7 = arith.maximumf %5, %6 : vector<16x3840xf32>
    %c0_6 = arith.constant 0 : index
    %c0_7 = arith.constant 0 : index
    %8 = vector.load %arg4[%c0_6, %c0_7] : memref<16x3840xf32, #tpu.memory_space<vmem>>, vector<16x3840xf32>
    tpu.vector_store %arg4[%c0_6, %c0_7], %7 {strides = array<i32>} : memref<16x3840xf32, #tpu.memory_space<vmem>>, vector<16x3840xf32>,
    return
  }
  func.func @transform_0(%arg0: i32) -> (i32, i32) {
    %c0_i32 = arith.constant 0 : i32
    %c0_i32_0 = arith.constant 0 : i32
    %c0_i32_1 = arith.constant 0 : i32
    return %c0_i32, %c0_i32_0 : i32, i32
  }
  func.func @transform_1(%arg0: i32) -> (i32, i32) {
    %c0_i32 = arith.constant 0 : i32
    %c0_i32_0 = arith.constant 0 : i32
    return %c0_i32, %arg0 : i32, i32
  }
  func.func @transform_2(%arg0: i32) -> (i32, i32) {
    %c0_i32 = arith.constant 0 : i32
    %c0_i32_0 = arith.constant 0 : i32
    %c0_i32_1 = arith.constant 0 : i32
    return %c0_i32, %c0_i32_0 : i32, i32
  }
  func.func @transform_3(%arg0: i32) -> (i32, i32) {
    %c0_i32 = arith.constant 0 : i32
    %c0_i32_0 = arith.constant 0 : i32
    return %c0_i32, %arg0 : i32, i32
  }
}

module attributes {stable_mosaic.version = 11 : i64} {
  func.func @_conv_kernel(%arg0: i32, %arg1: memref<32x256xf32, #tpu.memory_space<vmem>>, %arg2: memref<256x256xf32, #tpu.memory_space<vmem>>, %arg3: memref<32x1xf32, #tpu.memory_space<vmem>>, %arg4: memref<32x256xf32, #tpu.memory_space<vmem>>) attributes {dimension_semantics = [#tpu.dimension_semantics<parallel>], iteration_bounds = array<i64: 2>, scalar_prefetch = 0 : i64, scratch_operands = 0 : i64, tpu.core_type = #tpu.core_type<tc>, window_params = [{pipeline_mode = #tpu.pipeline_mode<synchronous>, transform_indices = @transform_0, window_bounds = array<i64: 32, 256>}, {transform_indices = @transform_1, window_bounds = array<i64: 256, 256>}, {pipeline_mode = #tpu.pipeline_mode<synchronous>, transform_indices = @transform_2, window_bounds = array<i64: 32, 1>}, {transform_indices = @transform_3, window_bounds = array<i64: 32, 256>}]} {
    %c0 = arith.constant 0 : index
    %c0_0 = arith.constant 0 : index
    %0 = vector.load %arg1[%c0, %c0_0] : memref<32x256xf32, #tpu.memory_space<vmem>>, vector<32x256xf32>
    %c0_1 = arith.constant 0 : index
    %c0_2 = arith.constant 0 : index
    %1 = vector.load %arg2[%c0_1, %c0_2] : memref<256x256xf32, #tpu.memory_space<vmem>>, vector<256x256xf32>
    %cst = arith.constant dense<0.000000e+00> : vector<32x256xf32>
    %2 = tpu.matmul %0, %1, %cst {dimension_numbers = #tpu.dot_dimension_numbers<[1], [0], [0], [1], [0, 0, 1, 1], [], []>} : vector<32x256xf32>, vector<256x256xf32>, vector<32x256xf32> -> vector<32x256xf32>
    %c0_3 = arith.constant 0 : index
    %c0_4 = arith.constant 0 : index
    %3 = vector.load %arg3[%c0_3, %c0_4] : memref<32x1xf32, #tpu.memory_space<vmem>>, vector<32x1xf32>
    %4 = vector.broadcast %3 : vector<32x1xf32> to vector<32x256xf32>
    %5 = arith.addf %2, %4 : vector<32x256xf32>
    %cst_5 = arith.constant 0.000000e+00 : f32
    %6 = vector.broadcast %cst_5 : f32 to vector<32x256xf32>
    %7 = arith.maximumf %5, %6 : vector<32x256xf32>
    %c0_6 = arith.constant 0 : index
    %c0_7 = arith.constant 0 : index
    %8 = vector.load %arg4[%c0_6, %c0_7] : memref<32x256xf32, #tpu.memory_space<vmem>>, vector<32x256xf32>
    tpu.vector_store %arg4[%c0_6, %c0_7], %7 {strides = array<i32>} : memref<32x256xf32, #tpu.memory_space<vmem>>, vector<32x256xf32>,
    return
  }
  func.func @transform_0(%arg0: i32) -> (i32, i32) {
    %c0_i32 = arith.constant 0 : i32
    %c0_i32_0 = arith.constant 0 : i32
    %c0_i32_1 = arith.constant 0 : i32
    return %c0_i32, %c0_i32_0 : i32, i32
  }
  func.func @transform_1(%arg0: i32) -> (i32, i32) {
    %c0_i32 = arith.constant 0 : i32
    %c0_i32_0 = arith.constant 0 : i32
    return %c0_i32, %arg0 : i32, i32
  }
  func.func @transform_2(%arg0: i32) -> (i32, i32) {
    %c0_i32 = arith.constant 0 : i32
    %c0_i32_0 = arith.constant 0 : i32
    %c0_i32_1 = arith.constant 0 : i32
    return %c0_i32, %c0_i32_0 : i32, i32
  }
  func.func @transform_3(%arg0: i32) -> (i32, i32) {
    %c0_i32 = arith.constant 0 : i32
    %c0_i32_0 = arith.constant 0 : i32
    return %c0_i32, %arg0 : i32, i32
  }
}

module attributes {stable_mosaic.version = 11 : i64} {
  func.func @_conv_kernel(%arg0: i32, %arg1: memref<32x384xf32, #tpu.memory_space<vmem>>, %arg2: memref<384x128xf32, #tpu.memory_space<vmem>>, %arg3: memref<32x1xf32, #tpu.memory_space<vmem>>, %arg4: memref<32x128xf32, #tpu.memory_space<vmem>>) attributes {dimension_semantics = [#tpu.dimension_semantics<parallel>], iteration_bounds = array<i64: 2>, scalar_prefetch = 0 : i64, scratch_operands = 0 : i64, tpu.core_type = #tpu.core_type<tc>, window_params = [{pipeline_mode = #tpu.pipeline_mode<synchronous>, transform_indices = @transform_0, window_bounds = array<i64: 32, 384>}, {transform_indices = @transform_1, window_bounds = array<i64: 384, 128>}, {pipeline_mode = #tpu.pipeline_mode<synchronous>, transform_indices = @transform_2, window_bounds = array<i64: 32, 1>}, {transform_indices = @transform_3, window_bounds = array<i64: 32, 128>}]} {
    %c0 = arith.constant 0 : index
    %c0_0 = arith.constant 0 : index
    %0 = vector.load %arg1[%c0, %c0_0] : memref<32x384xf32, #tpu.memory_space<vmem>>, vector<32x384xf32>
    %c0_1 = arith.constant 0 : index
    %c0_2 = arith.constant 0 : index
    %1 = vector.load %arg2[%c0_1, %c0_2] : memref<384x128xf32, #tpu.memory_space<vmem>>, vector<384x128xf32>
    %cst = arith.constant dense<0.000000e+00> : vector<32x128xf32>
    %2 = tpu.matmul %0, %1, %cst {dimension_numbers = #tpu.dot_dimension_numbers<[1], [0], [0], [1], [0, 0, 1, 1], [], []>} : vector<32x384xf32>, vector<384x128xf32>, vector<32x128xf32> -> vector<32x128xf32>
    %c0_3 = arith.constant 0 : index
    %c0_4 = arith.constant 0 : index
    %3 = vector.load %arg3[%c0_3, %c0_4] : memref<32x1xf32, #tpu.memory_space<vmem>>, vector<32x1xf32>
    %4 = vector.broadcast %3 : vector<32x1xf32> to vector<32x128xf32>
    %5 = arith.addf %2, %4 : vector<32x128xf32>
    %cst_5 = arith.constant 0.000000e+00 : f32
    %6 = vector.broadcast %cst_5 : f32 to vector<32x128xf32>
    %7 = arith.maximumf %5, %6 : vector<32x128xf32>
    %c0_6 = arith.constant 0 : index
    %c0_7 = arith.constant 0 : index
    %8 = vector.load %arg4[%c0_6, %c0_7] : memref<32x128xf32, #tpu.memory_space<vmem>>, vector<32x128xf32>
    tpu.vector_store %arg4[%c0_6, %c0_7], %7 {strides = array<i32>} : memref<32x128xf32, #tpu.memory_space<vmem>>, vector<32x128xf32>,
    return
  }
  func.func @transform_0(%arg0: i32) -> (i32, i32) {
    %c0_i32 = arith.constant 0 : i32
    %c0_i32_0 = arith.constant 0 : i32
    %c0_i32_1 = arith.constant 0 : i32
    return %c0_i32, %c0_i32_0 : i32, i32
  }
  func.func @transform_1(%arg0: i32) -> (i32, i32) {
    %c0_i32 = arith.constant 0 : i32
    %c0_i32_0 = arith.constant 0 : i32
    return %c0_i32, %arg0 : i32, i32
  }
  func.func @transform_2(%arg0: i32) -> (i32, i32) {
    %c0_i32 = arith.constant 0 : i32
    %c0_i32_0 = arith.constant 0 : i32
    %c0_i32_1 = arith.constant 0 : i32
    return %c0_i32, %c0_i32_0 : i32, i32
  }
  func.func @transform_3(%arg0: i32) -> (i32, i32) {
    %c0_i32 = arith.constant 0 : i32
    %c0_i32_0 = arith.constant 0 : i32
    return %c0_i32, %arg0 : i32, i32
  }
}

module attributes {stable_mosaic.version = 11 : i64} {
  func.func @_head_kernel(%arg0: i32, %arg1: memref<1x1024xf32, #tpu.memory_space<vmem>>, %arg2: memref<1024x128xf32, #tpu.memory_space<vmem>>, %arg3: memref<1x128xf32, #tpu.memory_space<vmem>>, %arg4: memref<128x64xf32, #tpu.memory_space<vmem>>, %arg5: memref<1x64xf32, #tpu.memory_space<vmem>>, %arg6: memref<64x5xf32, #tpu.memory_space<vmem>>, %arg7: memref<1x5xf32, #tpu.memory_space<vmem>>, %arg8: memref<1x4xf32, #tpu.memory_space<vmem>>) attributes {dimension_semantics = [#tpu.dimension_semantics<arbitrary>], iteration_bounds = array<i64: 1>, scalar_prefetch = 0 : i64, scratch_operands = 0 : i64, tpu.core_type = #tpu.core_type<tc>, window_params = [{pipeline_mode = #tpu.pipeline_mode<synchronous>, transform_indices = @transform_0, window_bounds = array<i64: 1, 1024>}, {pipeline_mode = #tpu.pipeline_mode<synchronous>, transform_indices = @transform_1, window_bounds = array<i64: 1024, 128>}, {pipeline_mode = #tpu.pipeline_mode<synchronous>, transform_indices = @transform_2, window_bounds = array<i64: 1, 128>}, {pipeline_mode = #tpu.pipeline_mode<synchronous>, transform_indices = @transform_3, window_bounds = array<i64: 128, 64>}, {pipeline_mode = #tpu.pipeline_mode<synchronous>, transform_indices = @transform_4, window_bounds = array<i64: 1, 64>}, {pipeline_mode = #tpu.pipeline_mode<synchronous>, transform_indices = @transform_5, window_bounds = array<i64: 64, 5>}, {pipeline_mode = #tpu.pipeline_mode<synchronous>, transform_indices = @transform_6, window_bounds = array<i64: 1, 5>}, {pipeline_mode = #tpu.pipeline_mode<synchronous>, transform_indices = @transform_7, window_bounds = array<i64: 1, 4>}]} {
    %c0 = arith.constant 0 : index
    %c0_0 = arith.constant 0 : index
    %0 = vector.load %arg1[%c0, %c0_0] : memref<1x1024xf32, #tpu.memory_space<vmem>>, vector<1x1024xf32>
    %c0_1 = arith.constant 0 : index
    %c0_2 = arith.constant 0 : index
    %1 = vector.load %arg2[%c0_1, %c0_2] : memref<1024x128xf32, #tpu.memory_space<vmem>>, vector<1024x128xf32>
    %cst = arith.constant dense<0.000000e+00> : vector<1x128xf32>
    %2 = tpu.matmul %0, %1, %cst {dimension_numbers = #tpu.dot_dimension_numbers<[1], [0], [0], [1], [0, 0, 1, 1], [], []>} : vector<1x1024xf32>, vector<1024x128xf32>, vector<1x128xf32> -> vector<1x128xf32>
    %c0_3 = arith.constant 0 : index
    %c0_4 = arith.constant 0 : index
    %3 = vector.load %arg3[%c0_3, %c0_4] : memref<1x128xf32, #tpu.memory_space<vmem>>, vector<1x128xf32>
    %4 = arith.addf %2, %3 : vector<1x128xf32>
    %c0_5 = arith.constant 0 : index
    %c0_6 = arith.constant 0 : index
    %5 = vector.load %arg4[%c0_5, %c0_6] : memref<128x64xf32, #tpu.memory_space<vmem>>, vector<128x64xf32>
    %cst_7 = arith.constant dense<0.000000e+00> : vector<1x64xf32>
    %6 = tpu.matmul %4, %5, %cst_7 {dimension_numbers = #tpu.dot_dimension_numbers<[1], [0], [0], [1], [0, 0, 1, 1], [], []>} : vector<1x128xf32>, vector<128x64xf32>, vector<1x64xf32> -> vector<1x64xf32>
    %c0_8 = arith.constant 0 : index
    %c0_9 = arith.constant 0 : index
    %7 = vector.load %arg5[%c0_8, %c0_9] : memref<1x64xf32, #tpu.memory_space<vmem>>, vector<1x64xf32>
    %8 = arith.addf %6, %7 : vector<1x64xf32>
    %c0_10 = arith.constant 0 : index
    %c0_11 = arith.constant 0 : index
    %9 = vector.load %arg6[%c0_10, %c0_11] : memref<64x5xf32, #tpu.memory_space<vmem>>, vector<64x5xf32>
    %cst_12 = arith.constant dense<0.000000e+00> : vector<1x5xf32>
    %10 = tpu.matmul %8, %9, %cst_12 {dimension_numbers = #tpu.dot_dimension_numbers<[1], [0], [0], [1], [0, 0, 1, 1], [], []>} : vector<1x64xf32>, vector<64x5xf32>, vector<1x5xf32> -> vector<1x5xf32>
    %c0_13 = arith.constant 0 : index
    %c0_14 = arith.constant 0 : index
    %11 = vector.load %arg7[%c0_13, %c0_14] : memref<1x5xf32, #tpu.memory_space<vmem>>, vector<1x5xf32>
    %12 = arith.addf %10, %11 : vector<1x5xf32>
    %13 = vector.extract_strided_slice %12 {offsets = [0, 0], sizes = [1, 1], strides = [1, 1]} : vector<1x5xf32> to vector<1x1xf32>
    %14 = vector.extract_strided_slice %12 {offsets = [0, 1], sizes = [1, 4], strides = [1, 1]} : vector<1x5xf32> to vector<1x4xf32>
    %15 = vector.broadcast %13 : vector<1x1xf32> to vector<1x4xf32>
    %16 = arith.addf %15, %14 : vector<1x4xf32>
    %cst_15 = arith.constant dense<0.000000e+00> : vector<1xf32>
    %17 = vector.multi_reduction <add>, %14, %cst_15 [1] : vector<1x4xf32> to vector<1xf32>
    %18 = vector.shape_cast %17 : vector<1xf32> to vector<1x1xf32>
    %cst_16 = arith.constant 4.000000e+00 : f32
    %19 = vector.broadcast %cst_16 : f32 to vector<1x1xf32>
    %20 = arith.divf %18, %19 : vector<1x1xf32>
    %21 = vector.broadcast %20 : vector<1x1xf32> to vector<1x4xf32>
    %22 = arith.subf %16, %21 : vector<1x4xf32>
    %c0_17 = arith.constant 0 : index
    %c0_18 = arith.constant 0 : index
    %23 = vector.load %arg8[%c0_17, %c0_18] : memref<1x4xf32, #tpu.memory_space<vmem>>, vector<1x4xf32>
    tpu.vector_store %arg8[%c0_17, %c0_18], %22 {strides = array<i32>} : memref<1x4xf32, #tpu.memory_space<vmem>>, vector<1x4xf32>,
    return
  }
  func.func @transform_0(%arg0: i32) -> (i32, i32) {
    %c0_i32 = arith.constant 0 : i32
    %c0_i32_0 = arith.constant 0 : i32
    %c0_i32_1 = arith.constant 0 : i32
    return %c0_i32, %c0_i32_0 : i32, i32
  }
  func.func @transform_1(%arg0: i32) -> (i32, i32) {
    %c0_i32 = arith.constant 0 : i32
    %c0_i32_0 = arith.constant 0 : i32
    %c0_i32_1 = arith.constant 0 : i32
    return %c0_i32, %c0_i32_0 : i32, i32
  }
  func.func @transform_2(%arg0: i32) -> (i32, i32) {
    %c0_i32 = arith.constant 0 : i32
    %c0_i32_0 = arith.constant 0 : i32
    %c0_i32_1 = arith.constant 0 : i32
    return %c0_i32, %c0_i32_0 : i32, i32
  }
  func.func @transform_3(%arg0: i32) -> (i32, i32) {
    %c0_i32 = arith.constant 0 : i32
    %c0_i32_0 = arith.constant 0 : i32
    %c0_i32_1 = arith.constant 0 : i32
    return %c0_i32, %c0_i32_0 : i32, i32
  }
  func.func @transform_4(%arg0: i32) -> (i32, i32) {
    %c0_i32 = arith.constant 0 : i32
    %c0_i32_0 = arith.constant 0 : i32
    %c0_i32_1 = arith.constant 0 : i32
    return %c0_i32, %c0_i32_0 : i32, i32
  }
  func.func @transform_5(%arg0: i32) -> (i32, i32) {
    %c0_i32 = arith.constant 0 : i32
    %c0_i32_0 = arith.constant 0 : i32
    %c0_i32_1 = arith.constant 0 : i32
    return %c0_i32, %c0_i32_0 : i32, i32
  }
  func.func @transform_6(%arg0: i32) -> (i32, i32) {
    %c0_i32 = arith.constant 0 : i32
    %c0_i32_0 = arith.constant 0 : i32
    %c0_i32_1 = arith.constant 0 : i32
    return %c0_i32, %c0_i32_0 : i32, i32
  }
  func.func @transform_7(%arg0: i32) -> (i32, i32) {
    %c0_i32 = arith.constant 0 : i32
    %c0_i32_0 = arith.constant 0 : i32
    %c0_i32_1 = arith.constant 0 : i32
    return %c0_i32, %c0_i32_0 : i32, i32
  }
}

</mosaic_0001>

<llo_original>
// kernel: net_forward.4
$region0: #{net_forward.4}
  #allocation0 [shape = 'u32[]', space=smem, size = 0x4, offset = 0x4, fixed_abs, tag = 'smem constant byte address 0x4 - core index']
  #allocation1 [shape = 'u32[144,128]{1,0:T(1,128)}', space=vmem, size = 0x12000, scoped, tag = 'internal scratch']
  %s0 = inlined_call_operand.vmem [shape: f32[16,128], index: 0, kind: input, shape index: {}]
  %s1 = inlined_call_operand.vmem [shape: f32[128,7680], index: 1, kind: input, shape index: {}]
  %s2 = inlined_call_operand.vmem [shape: f32[16,1], index: 2, kind: input, shape index: {}]
  %s3 = inlined_call_operand.vmem [shape: f32[16,7680], index: 3, kind: output, shape index: {}]
  %s4 = sld [smem:[#allocation0]]
  $region87: #{net_forward.4} parent=0
    _
  %s6 = ssub.s32 1, %s4
  %s7 = scalar_select 0, %s6, %s4
  $region1: #{net_forward.4} parent=0
    #allocation2 [shape = 'u8[3932160]{0}', space=vmem, size = 0x3c0000, scoped, tag = 'input window, operand 1']
    #allocation3 [shape = 'u8[491520]{0}', space=vmem, size = 0x78000, scoped, tag = 'output window, operand 0']
    loop: start=0, step=1, limit=4
    $region2: #{net_forward.4} parent=1 // loop_pre_header
      _
    $region3: #{net_forward.4} parent=1 // loop_header
      %s9 = sphi 0, %s13
      %p10 = scmp.ge.s32.totalorder %s9, 4
      %s17 = sphi 0, %s17
      %s19 = sphi 0, %s17
      %s20 = sphi 0, %s19
      %s34 = sphi 0, %s20
      %s40 = sphi 0, %s42
      %s43 = sphi 0, %s40
      %s44 = sphi 0, %s43
      %s60 = sphi 0, %s44
      %s64 = sphi 0, %s64
      %s66 = sphi 0, %s64
      %s67 = sphi 0, %s66
      %s81 = sphi 0, %s67
      %s87 = sphi 0, %s89
      %s90 = sphi 0, %s87
      %s91 = sphi 0, %s90
      %s107 = sphi 0, %s91
    $region4: #{net_forward.4} parent=1 // loop_header_branch
      %12 = sbr.rel (%p10) target = $region8
    $region5: #{net_forward.4} parent=1 // loop_body
      %s14 = ssub.s32 %s9, 1
      %s15 = ssub.s32 %s9, 2
      %s16 = sadd.s32 %s9, 1
      %s18 = sadd.s32 %s17, 1
      %p21 = scmp.eq.s32.totalorder %s9, 1
      %p22 = scmp.ne.s32.totalorder %s17, %s19
      %p23 = scmp.eq.s32.totalorder %s9, 0
      %p24 = por %p22, %p23
      %p25 = scmp.ne.s32.totalorder %s17, %s19
      %p26 = scmp.eq.s32.totalorder %s14, 1
      %p27 = por %p25, %p26
      %p28 = scmp.ne.s32.totalorder %s19, %s20
      %p29 = scmp.eq.s32.totalorder %s14, 0
      %p30 = por %p28, %p29
      %p31 = scmp.ne.s32.totalorder %s19, %s20
      %p32 = scmp.eq.s32.totalorder %s15, 1
      %p33 = por %p31, %p32
      %p35 = scmp.ne.s32.totalorder %s20, %s34
      %p36 = scmp.eq.s32.totalorder %s15, 0
      %p37 = por %p35, %p36
      %s38 = ssub.s32 %s9, %s16
      %p39 = scmp.eq.s32.totalorder %s38, 0
      %s41 = sadd.s32 %s40, 1
      %s42 = scalar_select %p39, %s40, %s41
      %p45 = pneg %p39
      %p46 = scmp.eq.s32.totalorder %s9, 1
      %p47 = por %p45, %p46
      %p48 = scmp.ne.s32.totalorder %s40, %s43
      %p49 = scmp.eq.s32.totalorder %s9, 0
      %p50 = por %p48, %p49
      %p51 = scmp.ne.s32.totalorder %s40, %s43
      %p52 = scmp.eq.s32.totalorder %s14, 1
      %p53 = por %p51, %p52
      %p54 = scmp.ne.s32.totalorder %s43, %s44
      %p55 = scmp.eq.s32.totalorder %s14, 0
      %p56 = por %p54, %p55
      %p57 = scmp.ne.s32.totalorder %s43, %s44
      %p58 = scmp.eq.s32.totalorder %s15, 1
      %p59 = por %p57, %p58
      %p61 = scmp.ne.s32.totalorder %s44, %s60
      %p62 = scmp.eq.s32.totalorder %s15, 0
      %p63 = por %p61, %p62
      %s65 = sadd.s32 %s64, 1
      %p68 = scmp.eq.s32.totalorder %s9, 1
      %p69 = scmp.ne.s32.totalorder %s64, %s66
      %p70 = scmp.eq.s32.totalorder %s9, 0
      %p71 = por %p69, %p70
      %p72 = scmp.ne.s32.totalorder %s64, %s66
      %p73 = scmp.eq.s32.totalorder %s14, 1
      %p74 = por %p72, %p73
      %p75 = scmp.ne.s32.totalorder %s66, %s67
      %p76 = scmp.eq.s32.totalorder %s14, 0
      %p77 = por %p75, %p76
      %p78 = scmp.ne.s32.totalorder %s66, %s67
      %p79 = scmp.eq.s32.totalorder %s15, 1
      %p80 = por %p78, %p79
      %p82 = scmp.ne.s32.totalorder %s67, %s81
      %p83 = scmp.eq.s32.totalorder %s15, 0
      %p84 = por %p82, %p83
      %s85 = ssub.s32 %s9, %s16
      %p86 = scmp.eq.s32.totalorder %s85, 0
      %s88 = sadd.s32 %s87, 1
      %s89 = scalar_select %p86, %s87, %s88
      %p92 = pneg %p86
      %p93 = scmp.eq.s32.totalorder %s9, 1
      %p94 = por %p92, %p93
      %p95 = scmp.ne.s32.totalorder %s87, %s90
      %p96 = scmp.eq.s32.totalorder %s9, 0
      %p97 = por %p95, %p96
      %p98 = scmp.ne.s32.totalorder %s87, %s90
      %p99 = scmp.eq.s32.totalorder %s14, 1
      %p100 = por %p98, %p99
      %p101 = scmp.ne.s32.totalorder %s90, %s91
      %p102 = scmp.eq.s32.totalorder %s14, 0
      %p103 = por %p101, %p102
      %p104 = scmp.ne.s32.totalorder %s90, %s91
      %p105 = scmp.eq.s32.totalorder %s15, 1
      %p106 = por %p104, %p105
      %p108 = scmp.ne.s32.totalorder %s91, %s107
      %p109 = scmp.eq.s32.totalorder %s15, 0
      %p110 = por %p108, %p109
      %p111 = scmp.le.s32.totalorder 1, %s9
      %p112 = scmp.lt.s32.totalorder %s9, 3
      %p113 = pnand %p111, %p112
      %p114 = pneg %p113
      // Predicated region
      $region9: #{net_forward.4} parent=5 // pred_check
        _
      $region10: #{net_forward.4} parent=5 // pred_check_branch
        %116 = sbr.rel (%p113) target = $region12
      $region11: #{net_forward.4} parent=5 // pred_region
        %s117 = ssub.s32 %s9, 1
        // Predicated region
        $region13: #{net_forward.4} parent=11 // pred_check
          %p118 = pneg %p30
        $region14: #{net_forward.4} parent=11 // pred_check_branch
          %120 = sbr.rel (%p118) target = $region16
        $region15: #{net_forward.4} parent=11 // pred_region
          _
        $region16: #{net_forward.4} parent=11 // pred_fallthru
          _
        // Predicated region
        $region17: #{net_forward.4} parent=11 // pred_check
          %p121 = pneg %p77
        $region18: #{net_forward.4} parent=11 // pred_check_branch
          %123 = sbr.rel (%p121) target = $region20
        $region19: #{net_forward.4} parent=11 // pred_region
          _
        $region20: #{net_forward.4} parent=11 // pred_fallthru
          _
      $region12: #{net_forward.4} parent=5 // pred_fallthru
        _
      %p124 = scmp.lt.s32.totalorder %s9, 2
      // Predicated region
      $region21: #{net_forward.4} parent=5 // pred_check
        %p125 = pneg %p124
      $region22: #{net_forward.4} parent=5 // pred_check_branch
        %127 = sbr.rel (%p125) target = $region24
      $region23: #{net_forward.4} parent=5 // pred_region
        // Predicated region
        $region25: #{net_forward.4} parent=23 // pred_check
          %p128 = pneg %p50
        $region26: #{net_forward.4} parent=23 // pred_check_branch
          %130 = sbr.rel (%p128) target = $region28
        $region27: #{net_forward.4} parent=23 // pred_region
          %s131 = sand.u32 %s40, 1
          %s132 = sand.u32 %s40, 1
          %s133 = smul.addr %s132, 3840
          %s134 = scalar_lea.vmem [#allocation2], %s133
          %s135 = smul.u32 30, %s9
          %s136 = smul.addr %s135, 8
          %s137 = scalar_lea.vmem %s1, %s136
          // Predicated region
          $region29: #{net_forward.4} parent=27 // pred_check
            _
          $region30: #{net_forward.4} parent=27 // pred_check_branch
            %139 = sbr.rel (0) target = $region32
          $region31: #{net_forward.4} parent=27 // pred_region
            // Predicated region
            $region33: #{net_forward.4} parent=31 // pred_check
              _
            $region34: #{net_forward.4} parent=31 // pred_check_branch
              %141 = sbr.rel (0) target = $region36
            $region35: #{net_forward.4} parent=31 // pred_region
              loop: start=0, step=1, limit=1
              $region37: #{net_forward.4} parent=35 // loop_pre_header
                _
              $region38: #{net_forward.4} parent=35 // loop_header
                %s143 = sphi 0, %s147
                %p144 = scmp.ge.s32.totalorder %s143, 1
                %s148 = sphi %s137, %s137
                %s149 = sphi %s134, %s134
              $region39: #{net_forward.4} parent=35 // loop_header_branch
                %146 = sbr.rel (%p144) target = $region43
              $region40: #{net_forward.4} parent=35 // loop_body
                %v150 = vld [vmem:[%s148] sm:$0xff]
                %151 = vst [vmem:[%s149] sm:$0xff] %v150
                %v152 = vld [vmem:[%s148 + $0x8] sm:$0xff]
                %153 = vst [vmem:[%s149 + $0x8] sm:$0xff] %v152
                %v154 = vld [vmem:[%s148 + $0x10] sm:$0xff]
                %155 = vst [vmem:[%s149 + $0x10] sm:$0xff] %v154
                %v156 = vld [vmem:[%s148 + $0x18] sm:$0xff]
                %157 = vst [vmem:[%s149 + $0x18] sm:$0xff] %v156
                %v158 = vld [vmem:[%s148 + $0x20] sm:$0xff]
                %159 = vst [vmem:[%s149 + $0x20] sm:$0xff] %v158
                %v160 = vld [vmem:[%s148 + $0x28] sm:$0xff]
                %161 = vst [vmem:[%s149 + $0x28] sm:$0xff] %v160
                %v162 = vld [vmem:[%s148 + $0x30] sm:$0xff]
                %163 = vst [vmem:[%s149 + $0x30] sm:$0xff] %v162
                %v164 = vld [vmem:[%s148 + $0x38] sm:$0xff]
                %165 = vst [vmem:[%s149 + $0x38] sm:$0xff] %v164
                %v166 = vld [vmem:[%s148 + $0x40] sm:$0xff]
                %167 = vst [vmem:[%s149 + $0x40] sm:$0xff] %v166
                %v168 = vld [vmem:[%s148 + $0x48] sm:$0xff]
                %169 = vst [vmem:[%s149 + $0x48] sm:$0xff] %v168
                %v170 = vld [vmem:[%s148 + $0x50] sm:$0xff]
                %171 = vst [vmem:[%s149 + $0x50] sm:$0xff] %v170
                %v172 = vld [vmem:[%s148 + $0x58] sm:$0xff]
                %173 = vst [vmem:[%s149 + $0x58] sm:$0xff] %v172
                %v174 = vld [vmem:[%s148 + $0x60] sm:$0xff]
                %175 = vst [vmem:[%s149 + $0x60] sm:$0xff] %v174
                %v176 = vld [vmem:[%s148 + $0x68] sm:$0xff]
                %177 = vst [vmem:[%s149 + $0x68] sm:$0xff] %v176
                %v178 = vld [vmem:[%s148 + $0x70] sm:$0xff]
                %179 = vst [vmem:[%s149 + $0x70] sm:$0xff] %v178
                %v180 = vld [vmem:[%s148 + $0x78] sm:$0xff]
                %181 = vst [vmem:[%s149 + $0x78] sm:$0xff] %v180
                %v182 = vld [vmem:[%s148 + $0x80] sm:$0xff]
                %183 = vst [vmem:[%s149 + $0x80] sm:$0xff] %v182
                %v184 = vld [vmem:[%s148 + $0x88] sm:$0xff]
                %185 = vst [vmem:[%s149 + $0x88] sm:$0xff] %v184
                %v186 = vld [vmem:[%s148 + $0x90] sm:$0xff]
                %187 = vst [vmem:[%s149 + $0x90] sm:$0xff] %v186
                %v188 = vld [vmem:[%s148 + $0x98] sm:$0xff]
                %189 = vst [vmem:[%s149 + $0x98] sm:$0xff] %v188
                %v190 = vld [vmem:[%s148 + $0xa0] sm:$0xff]
                %191 = vst [vmem:[%s149 + $0xa0] sm:$0xff] %v190
                %v192 = vld [vmem:[%s148 + $0xa8] sm:$0xff]
                %193 = vst [vmem:[%s149 + $0xa8] sm:$0xff] %v192
                %v194 = vld [vmem:[%s148 + $0xb0] sm:$0xff]
                %195 = vst [vmem:[%s149 + $0xb0] sm:$0xff] %v194
                %v196 = vld [vmem:[%s148 + $0xb8] sm:$0xff]
                %197 = vst [vmem:[%s149 + $0xb8] sm:$0xff] %v196
                %v198 = vld [vmem:[%s148 + $0xc0] sm:$0xff]
                %199 = vst [vmem:[%s149 + $0xc0] sm:$0xff] %v198
                %v200 = vld [vmem:[%s148 + $0xc8] sm:$0xff]
                %201 = vst [vmem:[%s149 + $0xc8] sm:$0xff] %v200
                %v202 = vld [vmem:[%s148 + $0xd0] sm:$0xff]
                %203 = vst [vmem:[%s149 + $0xd0] sm:$0xff] %v202
                %v204 = vld [vmem:[%s148 + $0xd8] sm:$0xff]
                %205 = vst [vmem:[%s149 + $0xd8] sm:$0xff] %v204
                %v206 = vld [vmem:[%s148 + $0xe0] sm:$0xff]
                %207 = vst [vmem:[%s149 + $0xe0] sm:$0xff] %v206
                %v208 = vld [vmem:[%s148 + $0xe8] sm:$0xff]
                %209 = vst [vmem:[%s149 + $0xe8] sm:$0xff] %v208
                %v210 = vld [vmem:[%s148 + $0x1e0] sm:$0xff]
                %211 = vst [vmem:[%s149 + $0xf0] sm:$0xff] %v210
                %v212 = vld [vmem:[%s148 + $0x1e8] sm:$0xff]
                %213 = vst [vmem:[%s149 + $0xf8] sm:$0xff] %v212
                %v214 = vld [vmem:[%s148 + $0x1f0] sm:$0xff]
                %215 = vst [vmem:[%s149 + $0x100] sm:$0xff] %v214
                %v216 = vld [vmem:[%s148 + $0x1f8] sm:$0xff]
                %217 = vst [vmem:[%s149 + $0x108] sm:$0xff] %v216
                %v218 = vld [vmem:[%s148 + $0x200] sm:$0xff]
                %219 = vst [vmem:[%s149 + $0x110] sm:$0xff] %v218
                %v220 = vld [vmem:[%s148 + $0x208] sm:$0xff]
                %221 = vst [vmem:[%s149 + $0x118] sm:$0xff] %v220
                %v222 = vld [vmem:[%s148 + $0x210] sm:$0xff]
                %223 = vst [vmem:[%s149 + $0x120] sm:$0xff] %v222
                %v224 = vld [vmem:[%s148 + $0x218] sm:$0xff]
                %225 = vst [vmem:[%s149 + $0x128] sm:$0xff] %v224
                %v226 = vld [vmem:[%s148 + $0x220] sm:$0xff]
                %227 = vst [vmem:[%s149 + $0x130] sm:$0xff] %v226
                %v228 = vld [vmem:[%s148 + $0x228] sm:$0xff]
                %229 = vst [vmem:[%s149 + $0x138] sm:$0xff] %v228
                %v230 = vld [vmem:[%s148 + $0x230] sm:$0xff]
                %231 = vst [vmem:[%s149 + $0x140] sm:$0xff] %v230
                %v232 = vld [vmem:[%s148 + $0x238] sm:$0xff]
                %233 = vst [vmem:[%s149 + $0x148] sm:$0xff] %v232
                %v234 = vld [vmem:[%s148 + $0x240] sm:$0xff]
                %235 = vst [vmem:[%s149 + $0x150] sm:$0xff] %v234
                %v236 = vld [vmem:[%s148 + $0x248] sm:$0xff]
                %237 = vst [vmem:[%s149 + $0x158] sm:$0xff] %v236
                %v238 = vld [vmem:[%s148 + $0x250] sm:$0xff]
                %239 = vst [vmem:[%s149 + $0x160] sm:$0xff] %v238
                %v240 = vld [vmem:[%s148 + $0x258] sm:$0xff]
                %241 = vst [vmem:[%s149 + $0x168] sm:$0xff] %v240
                %v242 = vld [vmem:[%s148 + $0x260] sm:$0xff]
                %243 = vst [vmem:[%s149 + $0x170] sm:$0xff] %v242
                %v244 = vld [vmem:[%s148 + $0x268] sm:$0xff]
                %245 = vst [vmem:[%s149 + $0x178] sm:$0xff] %v244
                %v246 = vld [vmem:[%s148 + $0x270] sm:$0xff]
                %247 = vst [vmem:[%s149 + $0x180] sm:$0xff] %v246
                %v248 = vld [vmem:[%s148 + $0x278] sm:$0xff]
                %249 = vst [vmem:[%s149 + $0x188] sm:$0xff] %v248
                %v250 = vld [vmem:[%s148 + $0x280] sm:$0xff]
                %251 = vst [vmem:[%s149 + $0x190] sm:$0xff] %v250
                %v252 = vld [vmem:[%s148 + $0x288] sm:$0xff]
                %253 = vst [vmem:[%s149 + $0x198] sm:$0xff] %v252
                %v254 = vld [vmem:[%s148 + $0x290] sm:$0xff]
                %255 = vst [vmem:[%s149 + $0x1a0] sm:$0xff] %v254
                %v256 = vld [vmem:[%s148 + $0x298] sm:$0xff]
                %257 = vst [vmem:[%s149 + $0x1a8] sm:$0xff] %v256
                %v258 = vld [vmem:[%s148 + $0x2a0] sm:$0xff]
                %259 = vst [vmem:[%s149 + $0x1b0] sm:$0xff] %v258
                %v260 = vld [vmem:[%s148 + $0x2a8] sm:$0xff]
                %261 = vst [vmem:[%s149 + $0x1b8] sm:$0xff] %v260
                %v262 = vld [vmem:[%s148 + $0x2b0] sm:$0xff]
                %263 = vst [vmem:[%s149 + $0x1c0] sm:$0xff] %v262
                %v264 = vld [vmem:[%s148 + $0x2b8] sm:$0xff]
                %265 = vst [vmem:[%s149 + $0x1c8] sm:$0xff] %v264
                %v266 = vld [vmem:[%s148 + $0x2c0] sm:$0xff]
                %267 = vst [vmem:[%s149 + $0x1d0] sm:$0xff] %v266
                %v268 = vld [vmem:[%s148 + $0x2c8] sm:$0xff]
                %269 = vst [vmem:[%s149 + $0x1d8] sm:$0xff] %v268
                %v270 = vld [vmem:[%s148 + $0x3c0] sm:$0xff]
                %271 = vst [vmem:[%s149 + $0x1e0] sm:$0xff] %v270
                %v272 = vld [vmem:[%s148 + $0x3c8] sm:$0xff]
                %273 = vst [vmem:[%s149 + $0x1e8] sm:$0xff] %v272
                %v274 = vld [vmem:[%s148 + $0x3d0] sm:$0xff]
                %275 = vst [vmem:[%s149 + $0x1f0] sm:$0xff] %v274
                %v276 = vld [vmem:[%s148 + $0x3d8] sm:$0xff]
                %277 = vst [vmem:[%s149 + $0x1f8] sm:$0xff] %v276
                %v278 = vld [vmem:[%s148 + $0x3e0] sm:$0xff]
                %279 = vst [vmem:[%s149 + $0x200] sm:$0xff] %v278
                %v280 = vld [vmem:[%s148 + $0x3e8] sm:$0xff]
                %281 = vst [vmem:[%s149 + $0x208] sm:$0xff] %v280
                %v282 = vld [vmem:[%s148 + $0x3f0] sm:$0xff]
                %283 = vst [vmem:[%s149 + $0x210] sm:$0xff] %v282
                %v284 = vld [vmem:[%s148 + $0x3f8] sm:$0xff]
                %285 = vst [vmem:[%s149 + $0x218] sm:$0xff] %v284
                %v286 = vld [vmem:[%s148 + $0x400] sm:$0xff]
                %287 = vst [vmem:[%s149 + $0x220] sm:$0xff] %v286
                %v288 = vld [vmem:[%s148 + $0x408] sm:$0xff]
                %289 = vst [vmem:[%s149 + $0x228] sm:$0xff] %v288
                %v290 = vld [vmem:[%s148 + $0x410] sm:$0xff]
                %291 = vst [vmem:[%s149 + $0x230] sm:$0xff] %v290
                %v292 = vld [vmem:[%s148 + $0x418] sm:$0xff]
                %293 = vst [vmem:[%s149 + $0x238] sm:$0xff] %v292
                %v294 = vld [vmem:[%s148 + $0x420] sm:$0xff]
                %295 = vst [vmem:[%s149 + $0x240] sm:$0xff] %v294
                %v296 = vld [vmem:[%s148 + $0x428] sm:$0xff]
                %297 = vst [vmem:[%s149 + $0x248] sm:$0xff] %v296
                %v298 = vld [vmem:[%s148 + $0x430] sm:$0xff]
                %299 = vst [vmem:[%s149 + $0x250] sm:$0xff] %v298
                %v300 = vld [vmem:[%s148 + $0x438] sm:$0xff]
                %301 = vst [vmem:[%s149 + $0x258] sm:$0xff] %v300
                %v302 = vld [vmem:[%s148 + $0x440] sm:$0xff]
                %303 = vst [vmem:[%s149 + $0x260] sm:$0xff] %v302
                %v304 = vld [vmem:[%s148 + $0x448] sm:$0xff]
                %305 = vst [vmem:[%s149 + $0x268] sm:$0xff] %v304
                %v306 = vld [vmem:[%s148 + $0x450] sm:$0xff]
                %307 = vst [vmem:[%s149 + $0x270] sm:$0xff] %v306
                %v308 = vld [vmem:[%s148 + $0x458] sm:$0xff]
                %309 = vst [vmem:[%s149 + $0x278] sm:$0xff] %v308
                %v310 = vld [vmem:[%s148 + $0x460] sm:$0xff]
                %311 = vst [vmem:[%s149 + $0x280] sm:$0xff] %v310
                %v312 = vld [vmem:[%s148 + $0x468] sm:$0xff]
                %313 = vst [vmem:[%s149 + $0x288] sm:$0xff] %v312
                %v314 = vld [vmem:[%s148 + $0x470] sm:$0xff]
                %315 = vst [vmem:[%s149 + $0x290] sm:$0xff] %v314
                %v316 = vld [vmem:[%s148 + $0x478] sm:$0xff]
                %317 = vst [vmem:[%s149 + $0x298] sm:$0xff] %v316
                %v318 = vld [vmem:[%s148 + $0x480] sm:$0xff]
                %319 = vst [vmem:[%s149 + $0x2a0] sm:$0xff] %v318
                %v320 = vld [vmem:[%s148 + $0x488] sm:$0xff]
                %321 = vst [vmem:[%s149 + $0x2a8] sm:$0xff] %v320
                %v322 = vld [vmem:[%s148 + $0x490] sm:$0xff]
                %323 = vst [vmem:[%s149 + $0x2b0] sm:$0xff] %v322
                %v324 = vld [vmem:[%s148 + $0x498] sm:$0xff]
                %325 = vst [vmem:[%s149 + $0x2b8] sm:$0xff] %v324
                %v326 = vld [vmem:[%s148 + $0x4a0] sm:$0xff]
                %327 = vst [vmem:[%s149 + $0x2c0] sm:$0xff] %v326
                %v328 = vld [vmem:[%s148 + $0x4a8] sm:$0xff]
                %329 = vst [vmem:[%s149 + $0x2c8] sm:$0xff] %v328
                %v330 = vld [vmem:[%s148 + $0x5a0] sm:$0xff]
                %331 = vst [vmem:[%s149 + $0x2d0] sm:$0xff] %v330
                %v332 = vld [vmem:[%s148 + $0x5a8] sm:$0xff]
                %333 = vst [vmem:[%s149 + $0x2d8] sm:$0xff] %v332
                %v334 = vld [vmem:[%s148 + $0x5b0] sm:$0xff]
                %335 = vst [vmem:[%s149 + $0x2e0] sm:$0xff] %v334
                %v336 = vld [vmem:[%s148 + $0x5b8] sm:$0xff]
                %337 = vst [vmem:[%s149 + $0x2e8] sm:$0xff] %v336
                %v338 = vld [vmem:[%s148 + $0x5c0] sm:$0xff]
                %339 = vst [vmem:[%s149 + $0x2f0] sm:$0xff] %v338
                %v340 = vld [vmem:[%s148 + $0x5c8] sm:$0xff]
                %341 = vst [vmem:[%s149 + $0x2f8] sm:$0xff] %v340
                %v342 = vld [vmem:[%s148 + $0x5d0] sm:$0xff]
                %343 = vst [vmem:[%s149 + $0x300] sm:$0xff] %v342
                %v344 = vld [vmem:[%s148 + $0x5d8] sm:$0xff]
                %345 = vst [vmem:[%s149 + $0x308] sm:$0xff] %v344
                %v346 = vld [vmem:[%s148 + $0x5e0] sm:$0xff]
                %347 = vst [vmem:[%s149 + $0x310] sm:$0xff] %v346
                %v348 = vld [vmem:[%s148 + $0x5e8] sm:$0xff]
                %349 = vst [vmem:[%s149 + $0x318] sm:$0xff] %v348
                %v350 = vld [vmem:[%s148 + $0x5f0] sm:$0xff]
                %351 = vst [vmem:[%s149 + $0x320] sm:$0xff] %v350
                %v352 = vld [vmem:[%s148 + $0x5f8] sm:$0xff]
                %353 = vst [vmem:[%s149 + $0x328] sm:$0xff] %v352
                %v354 = vld [vmem:[%s148 + $0x600] sm:$0xff]
                %355 = vst [vmem:[%s149 + $0x330] sm:$0xff] %v354
                %v356 = vld [vmem:[%s148 + $0x608] sm:$0xff]
                %357 = vst [vmem:[%s149 + $0x338] sm:$0xff] %v356
                %v358 = vld [vmem:[%s148 + $0x610] sm:$0xff]
                %359 = vst [vmem:[%s149 + $0x340] sm:$0xff] %v358
                %v360 = vld [vmem:[%s148 + $0x618] sm:$0xff]
                %361 = vst [vmem:[%s149 + $0x348] sm:$0xff] %v360
                %v362 = vld [vmem:[%s148 + $0x620] sm:$0xff]
                %363 = vst [vmem:[%s149 + $0x350] sm:$0xff] %v362
                %v364 = vld [vmem:[%s148 + $0x628] sm:$0xff]
                %365 = vst [vmem:[%s149 + $0x358] sm:$0xff] %v364
                %v366 = vld [vmem:[%s148 + $0x630] sm:$0xff]
                %367 = vst [vmem:[%s149 + $0x360] sm:$0xff] %v366
                %v368 = vld [vmem:[%s148 + $0x638] sm:$0xff]
                %369 = vst [vmem:[%s149 + $0x368] sm:$0xff] %v368
                %v370 = vld [vmem:[%s148 + $0x640] sm:$0xff]
                %371 = vst [vmem:[%s149 + $0x370] sm:$0xff] %v370
                %v372 = vld [vmem:[%s148 + $0x648] sm:$0xff]
                %373 = vst [vmem:[%s149 + $0x378] sm:$0xff] %v372
                %v374 = vld [vmem:[%s148 + $0x650] sm:$0xff]
                %375 = vst [vmem:[%s149 + $0x380] sm:$0xff] %v374
                %v376 = vld [vmem:[%s148 + $0x658] sm:$0xff]
                %377 = vst [vmem:[%s149 + $0x388] sm:$0xff] %v376
                %v378 = vld [vmem:[%s148 + $0x660] sm:$0xff]
                %379 = vst [vmem:[%s149 + $0x390] sm:$0xff] %v378
                %v380 = vld [vmem:[%s148 + $0x668] sm:$0xff]
                %381 = vst [vmem:[%s149 + $0x398] sm:$0xff] %v380
                %v382 = vld [vmem:[%s148 + $0x670] sm:$0xff]
                %383 = vst [vmem:[%s149 + $0x3a0] sm:$0xff] %v382
                %v384 = vld [vmem:[%s148 + $0x678] sm:$0xff]
                %385 = vst [vmem:[%s149 + $0x3a8] sm:$0xff] %v384
                %v386 = vld [vmem:[%s148 + $0x680] sm:$0xff]
                %387 = vst [vmem:[%s149 + $0x3b0] sm:$0xff] %v386
                %v388 = vld [vmem:[%s148 + $0x688] sm:$0xff]
                %389 = vst [vmem:[%s149 + $0x3b8] sm:$0xff] %v388
                %v390 = vld [vmem:[%s148 + $0x780] sm:$0xff]
                %391 = vst [vmem:[%s149 + $0x3c0] sm:$0xff] %v390
                %v392 = vld [vmem:[%s148 + $0x788] sm:$0xff]
                %393 = vst [vmem:[%s149 + $0x3c8] sm:$0xff] %v392
                %v394 = vld [vmem:[%s148 + $0x790] sm:$0xff]
                %395 = vst [vmem:[%s149 + $0x3d0] sm:$0xff] %v394
                %v396 = vld [vmem:[%s148 + $0x798] sm:$0xff]
                %397 = vst [vmem:[%s149 + $0x3d8] sm:$0xff] %v396
                %v398 = vld [vmem:[%s148 + $0x7a0] sm:$0xff]
                %399 = vst [vmem:[%s149 + $0x3e0] sm:$0xff] %v398
                %v400 = vld [vmem:[%s148 + $0x7a8] sm:$0xff]
                %401 = vst [vmem:[%s149 + $0x3e8] sm:$0xff] %v400
                %v402 = vld [vmem:[%s148 + $0x7b0] sm:$0xff]
                %403 = vst [vmem:[%s149 + $0x3f0] sm:$0xff] %v402
                %v404 = vld [vmem:[%s148 + $0x7b8] sm:$0xff]
                %405 = vst [vmem:[%s149 + $0x3f8] sm:$0xff] %v404
                %v406 = vld [vmem:[%s148 + $0x7c0] sm:$0xff]
                %407 = vst [vmem:[%s149 + $0x400] sm:$0xff] %v406
                %v408 = vld [vmem:[%s148 + $0x7c8] sm:$0xff]
                %409 = vst [vmem:[%s149 + $0x408] sm:$0xff] %v408
                %v410 = vld [vmem:[%s148 + $0x7d0] sm:$0xff]
                %411 = vst [vmem:[%s149 + $0x410] sm:$0xff] %v410
                %v412 = vld [vmem:[%s148 + $0x7d8] sm:$0xff]
                %413 = vst [vmem:[%s149 + $0x418] sm:$0xff] %v412
                %v414 = vld [vmem:[%s148 + $0x7e0] sm:$0xff]
                %415 = vst [vmem:[%s149 + $0x420] sm:$0xff] %v414
                %v416 = vld [vmem:[%s148 + $0x7e8] sm:$0xff]
                %417 = vst [vmem:[%s149 + $0x428] sm:$0xff] %v416
                %v418 = vld [vmem:[%s148 + $0x7f0] sm:$0xff]
                %419 = vst [vmem:[%s149 + $0x430] sm:$0xff] %v418
                %v420 = vld [vmem:[%s148 + $0x7f8] sm:$0xff]
                %421 = vst [vmem:[%s149 + $0x438] sm:$0xff] %v420
                %v422 = vld [vmem:[%s148 + $0x800] sm:$0xff]
                %423 = vst [vmem:[%s149 + $0x440] sm:$0xff] %v422
                %v424 = vld [vmem:[%s148 + $0x808] sm:$0xff]
                %425 = vst [vmem:[%s149 + $0x448] sm:$0xff] %v424
                %v426 = vld [vmem:[%s148 + $0x810] sm:$0xff]
                %427 = vst [vmem:[%s149 + $0x450] sm:$0xff] %v426
                %v428 = vld [vmem:[%s148 + $0x818] sm:$0xff]
                %429 = vst [vmem:[%s149 + $0x458] sm:$0xff] %v428
                %v430 = vld [vmem:[%s148 + $0x820] sm:$0xff]
                %431 = vst [vmem:[%s149 + $0x460] sm:$0xff] %v430
                %v432 = vld [vmem:[%s148 + $0x828] sm:$0xff]
                %433 = vst [vmem:[%s149 + $0x468] sm:$0xff] %v432
                %v434 = vld [vmem:[%s148 + $0x830] sm:$0xff]
                %435 = vst [vmem:[%s149 + $0x470] sm:$0xff] %v434
                %v436 = vld [vmem:[%s148 + $0x838] sm:$0xff]
                %437 = vst [vmem:[%s149 + $0x478] sm:$0xff] %v436
                %v438 = vld [vmem:[%s148 + $0x840] sm:$0xff]
                %439 = vst [vmem:[%s149 + $0x480] sm:$0xff] %v438
                %v440 = vld [vmem:[%s148 + $0x848] sm:$0xff]
                %441 = vst [vmem:[%s149 + $0x488] sm:$0xff] %v440
                %v442 = vld [vmem:[%s148 + $0x850] sm:$0xff]
                %443 = vst [vmem:[%s149 + $0x490] sm:$0xff] %v442
                %v444 = vld [vmem:[%s148 + $0x858] sm:$0xff]
                %445 = vst [vmem:[%s149 + $0x498] sm:$0xff] %v444
                %v446 = vld [vmem:[%s148 + $0x860] sm:$0xff]
                %447 = vst [vmem:[%s149 + $0x4a0] sm:$0xff] %v446
                %v448 = vld [vmem:[%s148 + $0x868] sm:$0xff]
                %449 = vst [vmem:[%s149 + $0x4a8] sm:$0xff] %v448
                %v450 = vld [vmem:[%s148 + $0x960] sm:$0xff]
                %451 = vst [vmem:[%s149 + $0x4b0] sm:$0xff] %v450
                %v452 = vld [vmem:[%s148 + $0x968] sm:$0xff]
                %453 = vst [vmem:[%s149 + $0x4b8] sm:$0xff] %v452
                %v454 = vld [vmem:[%s148 + $0x970] sm:$0xff]
                %455 = vst [vmem:[%s149 + $0x4c0] sm:$0xff] %v454
                %v456 = vld [vmem:[%s148 + $0x978] sm:$0xff]
                %457 = vst [vmem:[%s149 + $0x4c8] sm:$0xff] %v456
                %v458 = vld [vmem:[%s148 + $0x980] sm:$0xff]
                %459 = vst [vmem:[%s149 + $0x4d0] sm:$0xff] %v458
                %v460 = vld [vmem:[%s148 + $0x988] sm:$0xff]
                %461 = vst [vmem:[%s149 + $0x4d8] sm:$0xff] %v460
                %v462 = vld [vmem:[%s148 + $0x990] sm:$0xff]
                %463 = vst [vmem:[%s149 + $0x4e0] sm:$0xff] %v462
                %v464 = vld [vmem:[%s148 + $0x998] sm:$0xff]
                %465 = vst [vmem:[%s149 + $0x4e8] sm:$0xff] %v464
                %v466 = vld [vmem:[%s148 + $0x9a0] sm:$0xff]
                %467 = vst [vmem:[%s149 + $0x4f0] sm:$0xff] %v466
                %v468 = vld [vmem:[%s148 + $0x9a8] sm:$0xff]
                %469 = vst [vmem:[%s149 + $0x4f8] sm:$0xff] %v468
                %v470 = vld [vmem:[%s148 + $0x9b0] sm:$0xff]
                %471 = vst [vmem:[%s149 + $0x500] sm:$0xff] %v470
                %v472 = vld [vmem:[%s148 + $0x9b8] sm:$0xff]
                %473 = vst [vmem:[%s149 + $0x508] sm:$0xff] %v472
                %v474 = vld [vmem:[%s148 + $0x9c0] sm:$0xff]
                %475 = vst [vmem:[%s149 + $0x510] sm:$0xff] %v474
                %v476 = vld [vmem:[%s148 + $0x9c8] sm:$0xff]
                %477 = vst [vmem:[%s149 + $0x518] sm:$0xff] %v476
                %v478 = vld [vmem:[%s148 + $0x9d0] sm:$0xff]
                %479 = vst [vmem:[%s149 + $0x520] sm:$0xff] %v478
                %v480 = vld [vmem:[%s148 + $0x9d8] sm:$0xff]
                %481 = vst [vmem:[%s149 + $0x528] sm:$0xff] %v480
                %v482 = vld [vmem:[%s148 + $0x9e0] sm:$0xff]
                %483 = vst [vmem:[%s149 + $0x530] sm:$0xff] %v482
                %v484 = vld [vmem:[%s148 + $0x9e8] sm:$0xff]
                %485 = vst [vmem:[%s149 + $0x538] sm:$0xff] %v484
                %v486 = vld [vmem:[%s148 + $0x9f0] sm:$0xff]
                %487 = vst [vmem:[%s149 + $0x540] sm:$0xff] %v486
                %v488 = vld [vmem:[%s148 + $0x9f8] sm:$0xff]
                %489 = vst [vmem:[%s149 + $0x548] sm:$0xff] %v488
                %v490 = vld [vmem:[%s148 + $0xa00] sm:$0xff]
                %491 = vst [vmem:[%s149 + $0x550] sm:$0xff] %v490
                %v492 = vld [vmem:[%s148 + $0xa08] sm:$0xff]
                %493 = vst [vmem:[%s149 + $0x558] sm:$0xff] %v492
                %v494 = vld [vmem:[%s148 + $0xa10] sm:$0xff]
                %495 = vst [vmem:[%s149 + $0x560] sm:$0xff] %v494
                %v496 = vld [vmem:[%s148 + $0xa18] sm:$0xff]
                %497 = vst [vmem:[%s149 + $0x568] sm:$0xff] %v496
                %v498 = vld [vmem:[%s148 + $0xa20] sm:$0xff]
                %499 = vst [vmem:[%s149 + $0x570] sm:$0xff] %v498
                %v500 = vld [vmem:[%s148 + $0xa28] sm:$0xff]
                %501 = vst [vmem:[%s149 + $0x578] sm:$0xff] %v500
                %v502 = vld [vmem:[%s148 + $0xa30] sm:$0xff]
                %503 = vst [vmem:[%s149 + $0x580] sm:$0xff] %v502
                %v504 = vld [vmem:[%s148 + $0xa38] sm:$0xff]
                %505 = vst [vmem:[%s149 + $0x588] sm:$0xff] %v504
                %v506 = vld [vmem:[%s148 + $0xa40] sm:$0xff]
                %507 = vst [vmem:[%s149 + $0x590] sm:$0xff] %v506
                %v508 = vld [vmem:[%s148 + $0xa48] sm:$0xff]
                %509 = vst [vmem:[%s149 + $0x598] sm:$0xff] %v508
                %v510 = vld [vmem:[%s148 + $0xb40] sm:$0xff]
                %511 = vst [vmem:[%s149 + $0x5a0] sm:$0xff] %v510
                %v512 = vld [vmem:[%s148 + $0xb48] sm:$0xff]
                %513 = vst [vmem:[%s149 + $0x5a8] sm:$0xff] %v512
                %v514 = vld [vmem:[%s148 + $0xb50] sm:$0xff]
                %515 = vst [vmem:[%s149 + $0x5b0] sm:$0xff] %v514
                %v516 = vld [vmem:[%s148 + $0xb58] sm:$0xff]
                %517 = vst [vmem:[%s149 + $0x5b8] sm:$0xff] %v516
                %v518 = vld [vmem:[%s148 + $0xb60] sm:$0xff]
                %519 = vst [vmem:[%s149 + $0x5c0] sm:$0xff] %v518
                %v520 = vld [vmem:[%s148 + $0xb68] sm:$0xff]
                %521 = vst [vmem:[%s149 + $0x5c8] sm:$0xff] %v520
                %v522 = vld [vmem:[%s148 + $0xb70] sm:$0xff]
                %523 = vst [vmem:[%s149 + $0x5d0] sm:$0xff] %v522
                %v524 = vld [vmem:[%s148 + $0xb78] sm:$0xff]
                %525 = vst [vmem:[%s149 + $0x5d8] sm:$0xff] %v524
                %v526 = vld [vmem:[%s148 + $0xb80] sm:$0xff]
                %527 = vst [vmem:[%s149 + $0x5e0] sm:$0xff] %v526
                %v528 = vld [vmem:[%s148 + $0xb88] sm:$0xff]
                %529 = vst [vmem:[%s149 + $0x5e8] sm:$0xff] %v528
                %v530 = vld [vmem:[%s148 + $0xb90] sm:$0xff]
                %531 = vst [vmem:[%s149 + $0x5f0] sm:$0xff] %v530
                %v532 = vld [vmem:[%s148 + $0xb98] sm:$0xff]
                %533 = vst [vmem:[%s149 + $0x5f8] sm:$0xff] %v532
                %v534 = vld [vmem:[%s148 + $0xba0] sm:$0xff]
                %535 = vst [vmem:[%s149 + $0x600] sm:$0xff] %v534
                %v536 = vld [vmem:[%s148 + $0xba8] sm:$0xff]
                %537 = vst [vmem:[%s149 + $0x608] sm:$0xff] %v536
                %v538 = vld [vmem:[%s148 + $0xbb0] sm:$0xff]
                %539 = vst [vmem:[%s149 + $0x610] sm:$0xff] %v538
                %v540 = vld [vmem:[%s148 + $0xbb8] sm:$0xff]
                %541 = vst [vmem:[%s149 + $0x618] sm:$0xff] %v540
                %v542 = vld [vmem:[%s148 + $0xbc0] sm:$0xff]
                %543 = vst [vmem:[%s149 + $0x620] sm:$0xff] %v542
                %v544 = vld [vmem:[%s148 + $0xbc8] sm:$0xff]
                %545 = vst [vmem:[%s149 + $0x628] sm:$0xff] %v544
                %v546 = vld [vmem:[%s148 + $0xbd0] sm:$0xff]
                %547 = vst [vmem:[%s149 + $0x630] sm:$0xff] %v546
                %v548 = vld [vmem:[%s148 + $0xbd8] sm:$0xff]
                %549 = vst [vmem:[%s149 + $0x638] sm:$0xff] %v548
                %v550 = vld [vmem:[%s148 + $0xbe0] sm:$0xff]
                %551 = vst [vmem:[%s149 + $0x640] sm:$0xff] %v550
                %v552 = vld [vmem:[%s148 + $0xbe8] sm:$0xff]
                %553 = vst [vmem:[%s149 + $0x648] sm:$0xff] %v552
                %v554 = vld [vmem:[%s148 + $0xbf0] sm:$0xff]
                %555 = vst [vmem:[%s149 + $0x650] sm:$0xff] %v554
                %v556 = vld [vmem:[%s148 + $0xbf8] sm:$0xff]
                %557 = vst [vmem:[%s149 + $0x658] sm:$0xff] %v556
                %v558 = vld [vmem:[%s148 + $0xc00] sm:$0xff]
                %559 = vst [vmem:[%s149 + $0x660] sm:$0xff] %v558
                %v560 = vld [vmem:[%s148 + $0xc08] sm:$0xff]
                %561 = vst [vmem:[%s149 + $0x668] sm:$0xff] %v560
                %v562 = vld [vmem:[%s148 + $0xc10] sm:$0xff]
                %563 = vst [vmem:[%s149 + $0x670] sm:$0xff] %v562
                %v564 = vld [vmem:[%s148 + $0xc18] sm:$0xff]
                %565 = vst [vmem:[%s149 + $0x678] sm:$0xff] %v564
                %v566 = vld [vmem:[%s148 + $0xc20] sm:$0xff]
                %567 = vst [vmem:[%s149 + $0x680] sm:$0xff] %v566
                %v568 = vld [vmem:[%s148 + $0xc28] sm:$0xff]
                %569 = vst [vmem:[%s149 + $0x688] sm:$0xff] %v568
                %v570 = vld [vmem:[%s148 + $0xd20] sm:$0xff]
                %571 = vst [vmem:[%s149 + $0x690] sm:$0xff] %v570
                %v572 = vld [vmem:[%s148 + $0xd28] sm:$0xff]
                %573 = vst [vmem:[%s149 + $0x698] sm:$0xff] %v572
                %v574 = vld [vmem:[%s148 + $0xd30] sm:$0xff]
                %575 = vst [vmem:[%s149 + $0x6a0] sm:$0xff] %v574
                %v576 = vld [vmem:[%s148 + $0xd38] sm:$0xff]
                %577 = vst [vmem:[%s149 + $0x6a8] sm:$0xff] %v576
                %v578 = vld [vmem:[%s148 + $0xd40] sm:$0xff]
                %579 = vst [vmem:[%s149 + $0x6b0] sm:$0xff] %v578
                %v580 = vld [vmem:[%s148 + $0xd48] sm:$0xff]
                %581 = vst [vmem:[%s149 + $0x6b8] sm:$0xff] %v580
                %v582 = vld [vmem:[%s148 + $0xd50] sm:$0xff]
                %583 = vst [vmem:[%s149 + $0x6c0] sm:$0xff] %v582
                %v584 = vld [vmem:[%s148 + $0xd58] sm:$0xff]
                %585 = vst [vmem:[%s149 + $0x6c8] sm:$0xff] %v584
                %v586 = vld [vmem:[%s148 + $0xd60] sm:$0xff]
                %587 = vst [vmem:[%s149 + $0x6d0] sm:$0xff] %v586
                %v588 = vld [vmem:[%s148 + $0xd68] sm:$0xff]
                %589 = vst [vmem:[%s149 + $0x6d8] sm:$0xff] %v588
                %v590 = vld [vmem:[%s148 + $0xd70] sm:$0xff]
                %591 = vst [vmem:[%s149 + $0x6e0] sm:$0xff] %v590
                %v592 = vld [vmem:[%s148 + $0xd78] sm:$0xff]
                %593 = vst [vmem:[%s149 + $0x6e8] sm:$0xff] %v592
                %v594 = vld [vmem:[%s148 + $0xd80] sm:$0xff]
                %595 = vst [vmem:[%s149 + $0x6f0] sm:$0xff] %v594
                %v596 = vld [vmem:[%s148 + $0xd88] sm:$0xff]
                %597 = vst [vmem:[%s149 + $0x6f8] sm:$0xff] %v596
                %v598 = vld [vmem:[%s148 + $0xd90] sm:$0xff]
                %599 = vst [vmem:[%s149 + $0x700] sm:$0xff] %v598
                %v600 = vld [vmem:[%s148 + $0xd98] sm:$0xff]
                %601 = vst [vmem:[%s149 + $0x708] sm:$0xff] %v600
                %v602 = vld [vmem:[%s148 + $0xda0] sm:$0xff]
                %603 = vst [vmem:[%s149 + $0x710] sm:$0xff] %v602
                %v604 = vld [vmem:[%s148 + $0xda8] sm:$0xff]
                %605 = vst [vmem:[%s149 + $0x718] sm:$0xff] %v604
                %v606 = vld [vmem:[%s148 + $0xdb0] sm:$0xff]
                %607 = vst [vmem:[%s149 + $0x720] sm:$0xff] %v606
                %v608 = vld [vmem:[%s148 + $0xdb8] sm:$0xff]
                %609 = vst [vmem:[%s149 + $0x728] sm:$0xff] %v608
                %v610 = vld [vmem:[%s148 + $0xdc0] sm:$0xff]
                %611 = vst [vmem:[%s149 + $0x730] sm:$0xff] %v610
                %v612 = vld [vmem:[%s148 + $0xdc8] sm:$0xff]
                %613 = vst [vmem:[%s149 + $0x738] sm:$0xff] %v612
                %v614 = vld [vmem:[%s148 + $0xdd0] sm:$0xff]
                %615 = vst [vmem:[%s149 + $0x740] sm:$0xff] %v614
                %v616 = vld [vmem:[%s148 + $0xdd8] sm:$0xff]
                %617 = vst [vmem:[%s149 + $0x748] sm:$0xff] %v616
                %v618 = vld [vmem:[%s148 + $0xde0] sm:$0xff]
                %619 = vst [vmem:[%s149 + $0x750] sm:$0xff] %v618
                %v620 = vld [vmem:[%s148 + $0xde8] sm:$0xff]
                %621 = vst [vmem:[%s149 + $0x758] sm:$0xff] %v620
                %v622 = vld [vmem:[%s148 + $0xdf0] sm:$0xff]
                %623 = vst [vmem:[%s149 + $0x760] sm:$0xff] %v622
                %v624 = vld [vmem:[%s148 + $0xdf8] sm:$0xff]
                %625 = vst [vmem:[%s149 + $0x768] sm:$0xff] %v624
                %v626 = vld [vmem:[%s148 + $0xe00] sm:$0xff]
                %627 = vst [vmem:[%s149 + $0x770] sm:$0xff] %v626
                %v628 = vld [vmem:[%s148 + $0xe08] sm:$0xff]
                %629 = vst [vmem:[%s149 + $0x778] sm:$0xff] %v628
                %v630 = vld [vmem:[%s148 + $0xf00] sm:$0xff]
                %631 = vst [vmem:[%s149 + $0x780] sm:$0xff] %v630
                %v632 = vld [vmem:[%s148 + $0xf08] sm:$0xff]
                %633 = vst [vmem:[%s149 + $0x788] sm:$0xff] %v632
                %v634 = vld [vmem:[%s148 + $0xf10] sm:$0xff]
                %635 = vst [vmem:[%s149 + $0x790] sm:$0xff] %v634
                %v636 = vld [vmem:[%s148 + $0xf18] sm:$0xff]
                %637 = vst [vmem:[%s149 + $0x798] sm:$0xff] %v636
                %v638 = vld [vmem:[%s148 + $0xf20] sm:$0xff]
                %639 = vst [vmem:[%s149 + $0x7a0] sm:$0xff] %v638
                %v640 = vld [vmem:[%s148 + $0xf28] sm:$0xff]
                %641 = vst [vmem:[%s149 + $0x7a8] sm:$0xff] %v640
                %v642 = vld [vmem:[%s148 + $0xf30] sm:$0xff]
                %643 = vst [vmem:[%s149 + $0x7b0] sm:$0xff] %v642
                %v644 = vld [vmem:[%s148 + $0xf38] sm:$0xff]
                %645 = vst [vmem:[%s149 + $0x7b8] sm:$0xff] %v644
                %v646 = vld [vmem:[%s148 + $0xf40] sm:$0xff]
                %647 = vst [vmem:[%s149 + $0x7c0] sm:$0xff] %v646
                %v648 = vld [vmem:[%s148 + $0xf48] sm:$0xff]
                %649 = vst [vmem:[%s149 + $0x7c8] sm:$0xff] %v648
                %v650 = vld [vmem:[%s148 + $0xf50] sm:$0xff]
                %651 = vst [vmem:[%s149 + $0x7d0] sm:$0xff] %v650
                %v652 = vld [vmem:[%s148 + $0xf58] sm:$0xff]
                %653 = vst [vmem:[%s149 + $0x7d8] sm:$0xff] %v652
                %v654 = vld [vmem:[%s148 + $0xf60] sm:$0xff]
                %655 = vst [vmem:[%s149 + $0x7e0] sm:$0xff] %v654
                %v656 = vld [vmem:[%s148 + $0xf68] sm:$0xff]
                %657 = vst [vmem:[%s149 + $0x7e8] sm:$0xff] %v656
                %v658 = vld [vmem:[%s148 + $0xf70] sm:$0xff]
                %659 = vst [vmem:[%s149 + $0x7f0] sm:$0xff] %v658
                %v660 = vld [vmem:[%s148 + $0xf78] sm:$0xff]
                %661 = vst [vmem:[%s149 + $0x7f8] sm:$0xff] %v660
                %v662 = vld [vmem:[%s148 + $0xf80] sm:$0xff]
                %663 = vst [vmem:[%s149 + $0x800] sm:$0xff] %v662
                %v664 = vld [vmem:[%s148 + $0xf88] sm:$0xff]
                %665 = vst [vmem:[%s149 + $0x808] sm:$0xff] %v664
                %v666 = vld [vmem:[%s148 + $0xf90] sm:$0xff]
                %667 = vst [vmem:[%s149 + $0x810] sm:$0xff] %v666
                %v668 = vld [vmem:[%s148 + $0xf98] sm:$0xff]
                %669 = vst [vmem:[%s149 + $0x818] sm:$0xff] %v668
                %v670 = vld [vmem:[%s148 + $0xfa0] sm:$0xff]
                %671 = vst [vmem:[%s149 + $0x820] sm:$0xff] %v670
                %v672 = vld [vmem:[%s148 + $0xfa8] sm:$0xff]
                %673 = vst [vmem:[%s149 + $0x828] sm:$0xff] %v672
                %v674 = vld [vmem:[%s148 + $0xfb0] sm:$0xff]
                %675 = vst [vmem:[%s149 + $0x830] sm:$0xff] %v674
                %v676 = vld [vmem:[%s148 + $0xfb8] sm:$0xff]
                %677 = vst [vmem:[%s149 + $0x838] sm:$0xff] %v676
                %v678 = vld [vmem:[%s148 + $0xfc0] sm:$0xff]
                %679 = vst [vmem:[%s149 + $0x840] sm:$0xff] %v678
                %v680 = vld [vmem:[%s148 + $0xfc8] sm:$0xff]
                %681 = vst [vmem:[%s149 + $0x848] sm:$0xff] %v680
                %v682 = vld [vmem:[%s148 + $0xfd0] sm:$0xff]
                %683 = vst [vmem:[%s149 + $0x850] sm:$0xff] %v682
                %v684 = vld [vmem:[%s148 + $0xfd8] sm:$0xff]
                %685 = vst [vmem:[%s149 + $0x858] sm:$0xff] %v684
                %v686 = vld [vmem:[%s148 + $0xfe0] sm:$0xff]
                %687 = vst [vmem:[%s149 + $0x860] sm:$0xff] %v686
                %v688 = vld [vmem:[%s148 + $0xfe8] sm:$0xff]
                %689 = vst [vmem:[%s149 + $0x868] sm:$0xff] %v688
                %v690 = vld [vmem:[%s148 + $0x10e0] sm:$0xff]
                %691 = vst [vmem:[%s149 + $0x870] sm:$0xff] %v690
                %v692 = vld [vmem:[%s148 + $0x10e8] sm:$0xff]
                %693 = vst [vmem:[%s149 + $0x878] sm:$0xff] %v692
                %v694 = vld [vmem:[%s148 + $0x10f0] sm:$0xff]
                %695 = vst [vmem:[%s149 + $0x880] sm:$0xff] %v694
                %v696 = vld [vmem:[%s148 + $0x10f8] sm:$0xff]
                %697 = vst [vmem:[%s149 + $0x888] sm:$0xff] %v696
                %v698 = vld [vmem:[%s148 + $0x1100] sm:$0xff]
                %699 = vst [vmem:[%s149 + $0x890] sm:$0xff] %v698
                %v700 = vld [vmem:[%s148 + $0x1108] sm:$0xff]
                %701 = vst [vmem:[%s149 + $0x898] sm:$0xff] %v700
                %v702 = vld [vmem:[%s148 + $0x1110] sm:$0xff]
                %703 = vst [vmem:[%s149 + $0x8a0] sm:$0xff] %v702
                %v704 = vld [vmem:[%s148 + $0x1118] sm:$0xff]
                %705 = vst [vmem:[%s149 + $0x8a8] sm:$0xff] %v704
                %v706 = vld [vmem:[%s148 + $0x1120] sm:$0xff]
                %707 = vst [vmem:[%s149 + $0x8b0] sm:$0xff] %v706
                %v708 = vld [vmem:[%s148 + $0x1128] sm:$0xff]
                %709 = vst [vmem:[%s149 + $0x8b8] sm:$0xff] %v708
                %v710 = vld [vmem:[%s148 + $0x1130] sm:$0xff]
                %711 = vst [vmem:[%s149 + $0x8c0] sm:$0xff] %v710
                %v712 = vld [vmem:[%s148 + $0x1138] sm:$0xff]
                %713 = vst [vmem:[%s149 + $0x8c8] sm:$0xff] %v712
                %v714 = vld [vmem:[%s148 + $0x1140] sm:$0xff]
                %715 = vst [vmem:[%s149 + $0x8d0] sm:$0xff] %v714
                %v716 = vld [vmem:[%s148 + $0x1148] sm:$0xff]
                %717 = vst [vmem:[%s149 + $0x8d8] sm:$0xff] %v716
                %v718 = vld [vmem:[%s148 + $0x1150] sm:$0xff]
                %719 = vst [vmem:[%s149 + $0x8e0] sm:$0xff] %v718
                %v720 = vld [vmem:[%s148 + $0x1158] sm:$0xff]
                %721 = vst [vmem:[%s149 + $0x8e8] sm:$0xff] %v720
                %v722 = vld [vmem:[%s148 + $0x1160] sm:$0xff]
                %723 = vst [vmem:[%s149 + $0x8f0] sm:$0xff] %v722
                %v724 = vld [vmem:[%s148 + $0x1168] sm:$0xff]
                %725 = vst [vmem:[%s149 + $0x8f8] sm:$0xff] %v724
                %v726 = vld [vmem:[%s148 + $0x1170] sm:$0xff]
                %727 = vst [vmem:[%s149 + $0x900] sm:$0xff] %v726
                %v728 = vld [vmem:[%s148 + $0x1178] sm:$0xff]
                %729 = vst [vmem:[%s149 + $0x908] sm:$0xff] %v728
                %v730 = vld [vmem:[%s148 + $0x1180] sm:$0xff]
                %731 = vst [vmem:[%s149 + $0x910] sm:$0xff] %v730
                %v732 = vld [vmem:[%s148 + $0x1188] sm:$0xff]
                %733 = vst [vmem:[%s149 + $0x918] sm:$0xff] %v732
                %v734 = vld [vmem:[%s148 + $0x1190] sm:$0xff]
                %735 = vst [vmem:[%s149 + $0x920] sm:$0xff] %v734
                %v736 = vld [vmem:[%s148 + $0x1198] sm:$0xff]
                %737 = vst [vmem:[%s149 + $0x928] sm:$0xff] %v736
                %v738 = vld [vmem:[%s148 + $0x11a0] sm:$0xff]
                %739 = vst [vmem:[%s149 + $0x930] sm:$0xff] %v738
                %v740 = vld [vmem:[%s148 + $0x11a8] sm:$0xff]
                %741 = vst [vmem:[%s149 + $0x938] sm:$0xff] %v740
                %v742 = vld [vmem:[%s148 + $0x11b0] sm:$0xff]
                %743 = vst [vmem:[%s149 + $0x940] sm:$0xff] %v742
                %v744 = vld [vmem:[%s148 + $0x11b8] sm:$0xff]
                %745 = vst [vmem:[%s149 + $0x948] sm:$0xff] %v744
                %v746 = vld [vmem:[%s148 + $0x11c0] sm:$0xff]
                %747 = vst [vmem:[%s149 + $0x950] sm:$0xff] %v746
                %v748 = vld [vmem:[%s148 + $0x11c8] sm:$0xff]
                %749 = vst [vmem:[%s149 + $0x958] sm:$0xff] %v748
                %v750 = vld [vmem:[%s148 + $0x12c0] sm:$0xff]
                %751 = vst [vmem:[%s149 + $0x960] sm:$0xff] %v750
                %v752 = vld [vmem:[%s148 + $0x12c8] sm:$0xff]
                %753 = vst [vmem:[%s149 + $0x968] sm:$0xff] %v752
                %v754 = vld [vmem:[%s148 + $0x12d0] sm:$0xff]
                %755 = vst [vmem:[%s149 + $0x970] sm:$0xff] %v754
                %v756 = vld [vmem:[%s148 + $0x12d8] sm:$0xff]
                %757 = vst [vmem:[%s149 + $0x978] sm:$0xff] %v756
                %v758 = vld [vmem:[%s148 + $0x12e0] sm:$0xff]
                %759 = vst [vmem:[%s149 + $0x980] sm:$0xff] %v758
                %v760 = vld [vmem:[%s148 + $0x12e8] sm:$0xff]
                %761 = vst [vmem:[%s149 + $0x988] sm:$0xff] %v760
                %v762 = vld [vmem:[%s148 + $0x12f0] sm:$0xff]
                %763 = vst [vmem:[%s149 + $0x990] sm:$0xff] %v762
                %v764 = vld [vmem:[%s148 + $0x12f8] sm:$0xff]
                %765 = vst [vmem:[%s149 + $0x998] sm:$0xff] %v764
                %v766 = vld [vmem:[%s148 + $0x1300] sm:$0xff]
                %767 = vst [vmem:[%s149 + $0x9a0] sm:$0xff] %v766
                %v768 = vld [vmem:[%s148 + $0x1308] sm:$0xff]
                %769 = vst [vmem:[%s149 + $0x9a8] sm:$0xff] %v768
                %v770 = vld [vmem:[%s148 + $0x1310] sm:$0xff]
                %771 = vst [vmem:[%s149 + $0x9b0] sm:$0xff] %v770
                %v772 = vld [vmem:[%s148 + $0x1318] sm:$0xff]
                %773 = vst [vmem:[%s149 + $0x9b8] sm:$0xff] %v772
                %v774 = vld [vmem:[%s148 + $0x1320] sm:$0xff]
                %775 = vst [vmem:[%s149 + $0x9c0] sm:$0xff] %v774
                %v776 = vld [vmem:[%s148 + $0x1328] sm:$0xff]
                %777 = vst [vmem:[%s149 + $0x9c8] sm:$0xff] %v776
                %v778 = vld [vmem:[%s148 + $0x1330] sm:$0xff]
                %779 = vst [vmem:[%s149 + $0x9d0] sm:$0xff] %v778
                %v780 = vld [vmem:[%s148 + $0x1338] sm:$0xff]
                %781 = vst [vmem:[%s149 + $0x9d8] sm:$0xff] %v780
                %v782 = vld [vmem:[%s148 + $0x1340] sm:$0xff]
                %783 = vst [vmem:[%s149 + $0x9e0] sm:$0xff] %v782
                %v784 = vld [vmem:[%s148 + $0x1348] sm:$0xff]
                %785 = vst [vmem:[%s149 + $0x9e8] sm:$0xff] %v784
                %v786 = vld [vmem:[%s148 + $0x1350] sm:$0xff]
                %787 = vst [vmem:[%s149 + $0x9f0] sm:$0xff] %v786
                %v788 = vld [vmem:[%s148 + $0x1358] sm:$0xff]
                %789 = vst [vmem:[%s149 + $0x9f8] sm:$0xff] %v788
                %v790 = vld [vmem:[%s148 + $0x1360] sm:$0xff]
                %791 = vst [vmem:[%s149 + $0xa00] sm:$0xff] %v790
                %v792 = vld [vmem:[%s148 + $0x1368] sm:$0xff]
                %793 = vst [vmem:[%s149 + $0xa08] sm:$0xff] %v792
                %v794 = vld [vmem:[%s148 + $0x1370] sm:$0xff]
                %795 = vst [vmem:[%s149 + $0xa10] sm:$0xff] %v794
                %v796 = vld [vmem:[%s148 + $0x1378] sm:$0xff]
                %797 = vst [vmem:[%s149 + $0xa18] sm:$0xff] %v796
                %v798 = vld [vmem:[%s148 + $0x1380] sm:$0xff]
                %799 = vst [vmem:[%s149 + $0xa20] sm:$0xff] %v798
                %v800 = vld [vmem:[%s148 + $0x1388] sm:$0xff]
                %801 = vst [vmem:[%s149 + $0xa28] sm:$0xff] %v800
                %v802 = vld [vmem:[%s148 + $0x1390] sm:$0xff]
                %803 = vst [vmem:[%s149 + $0xa30] sm:$0xff] %v802
                %v804 = vld [vmem:[%s148 + $0x1398] sm:$0xff]
                %805 = vst [vmem:[%s149 + $0xa38] sm:$0xff] %v804
                %v806 = vld [vmem:[%s148 + $0x13a0] sm:$0xff]
                %807 = vst [vmem:[%s149 + $0xa40] sm:$0xff] %v806
                %v808 = vld [vmem:[%s148 + $0x13a8] sm:$0xff]
                %809 = vst [vmem:[%s149 + $0xa48] sm:$0xff] %v808
                %v810 = vld [vmem:[%s148 + $0x14a0] sm:$0xff]
                %811 = vst [vmem:[%s149 + $0xa50] sm:$0xff] %v810
                %v812 = vld [vmem:[%s148 + $0x14a8] sm:$0xff]
                %813 = vst [vmem:[%s149 + $0xa58] sm:$0xff] %v812
                %v814 = vld [vmem:[%s148 + $0x14b0] sm:$0xff]
                %815 = vst [vmem:[%s149 + $0xa60] sm:$0xff] %v814
                %v816 = vld [vmem:[%s148 + $0x14b8] sm:$0xff]
                %817 = vst [vmem:[%s149 + $0xa68] sm:$0xff] %v816
                %v818 = vld [vmem:[%s148 + $0x14c0] sm:$0xff]
                %819 = vst [vmem:[%s149 + $0xa70] sm:$0xff] %v818
                %v820 = vld [vmem:[%s148 + $0x14c8] sm:$0xff]
                %821 = vst [vmem:[%s149 + $0xa78] sm:$0xff] %v820
                %v822 = vld [vmem:[%s148 + $0x14d0] sm:$0xff]
                %823 = vst [vmem:[%s149 + $0xa80] sm:$0xff] %v822
                %v824 = vld [vmem:[%s148 + $0x14d8] sm:$0xff]
                %825 = vst [vmem:[%s149 + $0xa88] sm:$0xff] %v824
                %v826 = vld [vmem:[%s148 + $0x14e0] sm:$0xff]
                %827 = vst [vmem:[%s149 + $0xa90] sm:$0xff] %v826
                %v828 = vld [vmem:[%s148 + $0x14e8] sm:$0xff]
                %829 = vst [vmem:[%s149 + $0xa98] sm:$0xff] %v828
                %v830 = vld [vmem:[%s148 + $0x14f0] sm:$0xff]
                %831 = vst [vmem:[%s149 + $0xaa0] sm:$0xff] %v830
                %v832 = vld [vmem:[%s148 + $0x14f8] sm:$0xff]
                %833 = vst [vmem:[%s149 + $0xaa8] sm:$0xff] %v832
                %v834 = vld [vmem:[%s148 + $0x1500] sm:$0xff]
                %835 = vst [vmem:[%s149 + $0xab0] sm:$0xff] %v834
                %v836 = vld [vmem:[%s148 + $0x1508] sm:$0xff]
                %837 = vst [vmem:[%s149 + $0xab8] sm:$0xff] %v836
                %v838 = vld [vmem:[%s148 + $0x1510] sm:$0xff]
                %839 = vst [vmem:[%s149 + $0xac0] sm:$0xff] %v838
                %v840 = vld [vmem:[%s148 + $0x1518] sm:$0xff]
                %841 = vst [vmem:[%s149 + $0xac8] sm:$0xff] %v840
                %v842 = vld [vmem:[%s148 + $0x1520] sm:$0xff]
                %843 = vst [vmem:[%s149 + $0xad0] sm:$0xff] %v842
                %v844 = vld [vmem:[%s148 + $0x1528] sm:$0xff]
                %845 = vst [vmem:[%s149 + $0xad8] sm:$0xff] %v844
                %v846 = vld [vmem:[%s148 + $0x1530] sm:$0xff]
                %847 = vst [vmem:[%s149 + $0xae0] sm:$0xff] %v846
                %v848 = vld [vmem:[%s148 + $0x1538] sm:$0xff]
                %849 = vst [vmem:[%s149 + $0xae8] sm:$0xff] %v848
                %v850 = vld [vmem:[%s148 + $0x1540] sm:$0xff]
                %851 = vst [vmem:[%s149 + $0xaf0] sm:$0xff] %v850
                %v852 = vld [vmem:[%s148 + $0x1548] sm:$0xff]
                %853 = vst [vmem:[%s149 + $0xaf8] sm:$0xff] %v852
                %v854 = vld [vmem:[%s148 + $0x1550] sm:$0xff]
                %855 = vst [vmem:[%s149 + $0xb00] sm:$0xff] %v854
                %v856 = vld [vmem:[%s148 + $0x1558] sm:$0xff]
                %857 = vst [vmem:[%s149 + $0xb08] sm:$0xff] %v856
                %v858 = vld [vmem:[%s148 + $0x1560] sm:$0xff]
                %859 = vst [vmem:[%s149 + $0xb10] sm:$0xff] %v858
                %v860 = vld [vmem:[%s148 + $0x1568] sm:$0xff]
                %861 = vst [vmem:[%s149 + $0xb18] sm:$0xff] %v860
                %v862 = vld [vmem:[%s148 + $0x1570] sm:$0xff]
                %863 = vst [vmem:[%s149 + $0xb20] sm:$0xff] %v862
                %v864 = vld [vmem:[%s148 + $0x1578] sm:$0xff]
                %865 = vst [vmem:[%s149 + $0xb28] sm:$0xff] %v864
                %v866 = vld [vmem:[%s148 + $0x1580] sm:$0xff]
                %867 = vst [vmem:[%s149 + $0xb30] sm:$0xff] %v866
                %v868 = vld [vmem:[%s148 + $0x1588] sm:$0xff]
                %869 = vst [vmem:[%s149 + $0xb38] sm:$0xff] %v868
                %v870 = vld [vmem:[%s148 + $0x1680] sm:$0xff]
                %871 = vst [vmem:[%s149 + $0xb40] sm:$0xff] %v870
                %v872 = vld [vmem:[%s148 + $0x1688] sm:$0xff]
                %873 = vst [vmem:[%s149 + $0xb48] sm:$0xff] %v872
                %v874 = vld [vmem:[%s148 + $0x1690] sm:$0xff]
                %875 = vst [vmem:[%s149 + $0xb50] sm:$0xff] %v874
                %v876 = vld [vmem:[%s148 + $0x1698] sm:$0xff]
                %877 = vst [vmem:[%s149 + $0xb58] sm:$0xff] %v876
                %v878 = vld [vmem:[%s148 + $0x16a0] sm:$0xff]
                %879 = vst [vmem:[%s149 + $0xb60] sm:$0xff] %v878
                %v880 = vld [vmem:[%s148 + $0x16a8] sm:$0xff]
                %881 = vst [vmem:[%s149 + $0xb68] sm:$0xff] %v880
                %v882 = vld [vmem:[%s148 + $0x16b0] sm:$0xff]
                %883 = vst [vmem:[%s149 + $0xb70] sm:$0xff] %v882
                %v884 = vld [vmem:[%s148 + $0x16b8] sm:$0xff]
                %885 = vst [vmem:[%s149 + $0xb78] sm:$0xff] %v884
                %v886 = vld [vmem:[%s148 + $0x16c0] sm:$0xff]
                %887 = vst [vmem:[%s149 + $0xb80] sm:$0xff] %v886
                %v888 = vld [vmem:[%s148 + $0x16c8] sm:$0xff]
                %889 = vst [vmem:[%s149 + $0xb88] sm:$0xff] %v888
                %v890 = vld [vmem:[%s148 + $0x16d0] sm:$0xff]
                %891 = vst [vmem:[%s149 + $0xb90] sm:$0xff] %v890
                %v892 = vld [vmem:[%s148 + $0x16d8] sm:$0xff]
                %893 = vst [vmem:[%s149 + $0xb98] sm:$0xff] %v892
                %v894 = vld [vmem:[%s148 + $0x16e0] sm:$0xff]
                %895 = vst [vmem:[%s149 + $0xba0] sm:$0xff] %v894
                %v896 = vld [vmem:[%s148 + $0x16e8] sm:$0xff]
                %897 = vst [vmem:[%s149 + $0xba8] sm:$0xff] %v896
                %v898 = vld [vmem:[%s148 + $0x16f0] sm:$0xff]
                %899 = vst [vmem:[%s149 + $0xbb0] sm:$0xff] %v898
                %v900 = vld [vmem:[%s148 + $0x16f8] sm:$0xff]
                %901 = vst [vmem:[%s149 + $0xbb8] sm:$0xff] %v900
                %v902 = vld [vmem:[%s148 + $0x1700] sm:$0xff]
                %903 = vst [vmem:[%s149 + $0xbc0] sm:$0xff] %v902
                %v904 = vld [vmem:[%s148 + $0x1708] sm:$0xff]
                %905 = vst [vmem:[%s149 + $0xbc8] sm:$0xff] %v904
                %v906 = vld [vmem:[%s148 + $0x1710] sm:$0xff]
                %907 = vst [vmem:[%s149 + $0xbd0] sm:$0xff] %v906
                %v908 = vld [vmem:[%s148 + $0x1718] sm:$0xff]
                %909 = vst [vmem:[%s149 + $0xbd8] sm:$0xff] %v908
                %v910 = vld [vmem:[%s148 + $0x1720] sm:$0xff]
                %911 = vst [vmem:[%s149 + $0xbe0] sm:$0xff] %v910
                %v912 = vld [vmem:[%s148 + $0x1728] sm:$0xff]
                %913 = vst [vmem:[%s149 + $0xbe8] sm:$0xff] %v912
                %v914 = vld [vmem:[%s148 + $0x1730] sm:$0xff]
                %915 = vst [vmem:[%s149 + $0xbf0] sm:$0xff] %v914
                %v916 = vld [vmem:[%s148 + $0x1738] sm:$0xff]
                %917 = vst [vmem:[%s149 + $0xbf8] sm:$0xff] %v916
                %v918 = vld [vmem:[%s148 + $0x1740] sm:$0xff]
                %919 = vst [vmem:[%s149 + $0xc00] sm:$0xff] %v918
                %v920 = vld [vmem:[%s148 + $0x1748] sm:$0xff]
                %921 = vst [vmem:[%s149 + $0xc08] sm:$0xff] %v920
                %v922 = vld [vmem:[%s148 + $0x1750] sm:$0xff]
                %923 = vst [vmem:[%s149 + $0xc10] sm:$0xff] %v922
                %v924 = vld [vmem:[%s148 + $0x1758] sm:$0xff]
                %925 = vst [vmem:[%s149 + $0xc18] sm:$0xff] %v924
                %v926 = vld [vmem:[%s148 + $0x1760] sm:$0xff]
                %927 = vst [vmem:[%s149 + $0xc20] sm:$0xff] %v926
                %v928 = vld [vmem:[%s148 + $0x1768] sm:$0xff]
                %929 = vst [vmem:[%s149 + $0xc28] sm:$0xff] %v928
                %v930 = vld [vmem:[%s148 + $0x1860] sm:$0xff]
                %931 = vst [vmem:[%s149 + $0xc30] sm:$0xff] %v930
                %v932 = vld [vmem:[%s148 + $0x1868] sm:$0xff]
                %933 = vst [vmem:[%s149 + $0xc38] sm:$0xff] %v932
                %v934 = vld [vmem:[%s148 + $0x1870] sm:$0xff]
                %935 = vst [vmem:[%s149 + $0xc40] sm:$0xff] %v934
                %v936 = vld [vmem:[%s148 + $0x1878] sm:$0xff]
                %937 = vst [vmem:[%s149 + $0xc48] sm:$0xff] %v936
                %v938 = vld [vmem:[%s148 + $0x1880] sm:$0xff]
                %939 = vst [vmem:[%s149 + $0xc50] sm:$0xff] %v938
                %v940 = vld [vmem:[%s148 + $0x1888] sm:$0xff]
                %941 = vst [vmem:[%s149 + $0xc58] sm:$0xff] %v940
                %v942 = vld [vmem:[%s148 + $0x1890] sm:$0xff]
                %943 = vst [vmem:[%s149 + $0xc60] sm:$0xff] %v942
                %v944 = vld [vmem:[%s148 + $0x1898] sm:$0xff]
                %945 = vst [vmem:[%s149 + $0xc68] sm:$0xff] %v944
                %v946 = vld [vmem:[%s148 + $0x18a0] sm:$0xff]
                %947 = vst [vmem:[%s149 + $0xc70] sm:$0xff] %v946
                %v948 = vld [vmem:[%s148 + $0x18a8] sm:$0xff]
                %949 = vst [vmem:[%s149 + $0xc78] sm:$0xff] %v948
                %v950 = vld [vmem:[%s148 + $0x18b0] sm:$0xff]
                %951 = vst [vmem:[%s149 + $0xc80] sm:$0xff] %v950
                %v952 = vld [vmem:[%s148 + $0x18b8] sm:$0xff]
                %953 = vst [vmem:[%s149 + $0xc88] sm:$0xff] %v952
                %v954 = vld [vmem:[%s148 + $0x18c0] sm:$0xff]
                %955 = vst [vmem:[%s149 + $0xc90] sm:$0xff] %v954
                %v956 = vld [vmem:[%s148 + $0x18c8] sm:$0xff]
                %957 = vst [vmem:[%s149 + $0xc98] sm:$0xff] %v956
                %v958 = vld [vmem:[%s148 + $0x18d0] sm:$0xff]
                %959 = vst [vmem:[%s149 + $0xca0] sm:$0xff] %v958
                %v960 = vld [vmem:[%s148 + $0x18d8] sm:$0xff]
                %961 = vst [vmem:[%s149 + $0xca8] sm:$0xff] %v960
                %v962 = vld [vmem:[%s148 + $0x18e0] sm:$0xff]
                %963 = vst [vmem:[%s149 + $0xcb0] sm:$0xff] %v962
                %v964 = vld [vmem:[%s148 + $0x18e8] sm:$0xff]
                %965 = vst [vmem:[%s149 + $0xcb8] sm:$0xff] %v964
                %v966 = vld [vmem:[%s148 + $0x18f0] sm:$0xff]
                %967 = vst [vmem:[%s149 + $0xcc0] sm:$0xff] %v966
                %v968 = vld [vmem:[%s148 + $0x18f8] sm:$0xff]
                %969 = vst [vmem:[%s149 + $0xcc8] sm:$0xff] %v968
                %v970 = vld [vmem:[%s148 + $0x1900] sm:$0xff]
                %971 = vst [vmem:[%s149 + $0xcd0] sm:$0xff] %v970
                %v972 = vld [vmem:[%s148 + $0x1908] sm:$0xff]
                %973 = vst [vmem:[%s149 + $0xcd8] sm:$0xff] %v972
                %v974 = vld [vmem:[%s148 + $0x1910] sm:$0xff]
                %975 = vst [vmem:[%s149 + $0xce0] sm:$0xff] %v974
                %v976 = vld [vmem:[%s148 + $0x1918] sm:$0xff]
                %977 = vst [vmem:[%s149 + $0xce8] sm:$0xff] %v976
                %v978 = vld [vmem:[%s148 + $0x1920] sm:$0xff]
                %979 = vst [vmem:[%s149 + $0xcf0] sm:$0xff] %v978
                %v980 = vld [vmem:[%s148 + $0x1928] sm:$0xff]
                %981 = vst [vmem:[%s149 + $0xcf8] sm:$0xff] %v980
                %v982 = vld [vmem:[%s148 + $0x1930] sm:$0xff]
                %983 = vst [vmem:[%s149 + $0xd00] sm:$0xff] %v982
                %v984 = vld [vmem:[%s148 + $0x1938] sm:$0xff]
                %985 = vst [vmem:[%s149 + $0xd08] sm:$0xff] %v984
                %v986 = vld [vmem:[%s148 + $0x1940] sm:$0xff]
                %987 = vst [vmem:[%s149 + $0xd10] sm:$0xff] %v986
                %v988 = vld [vmem:[%s148 + $0x1948] sm:$0xff]
                %989 = vst [vmem:[%s149 + $0xd18] sm:$0xff] %v988
                %v990 = vld [vmem:[%s148 + $0x1a40] sm:$0xff]
                %991 = vst [vmem:[%s149 + $0xd20] sm:$0xff] %v990
                %v992 = vld [vmem:[%s148 + $0x1a48] sm:$0xff]
                %993 = vst [vmem:[%s149 + $0xd28] sm:$0xff] %v992
                %v994 = vld [vmem:[%s148 + $0x1a50] sm:$0xff]
                %995 = vst [vmem:[%s149 + $0xd30] sm:$0xff] %v994
                %v996 = vld [vmem:[%s148 + $0x1a58] sm:$0xff]
                %997 = vst [vmem:[%s149 + $0xd38] sm:$0xff] %v996
                %v998 = vld [vmem:[%s148 + $0x1a60] sm:$0xff]
                %999 = vst [vmem:[%s149 + $0xd40] sm:$0xff] %v998
                %v1000 = vld [vmem:[%s148 + $0x1a68] sm:$0xff]
                %1001 = vst [vmem:[%s149 + $0xd48] sm:$0xff] %v1000
                %v1002 = vld [vmem:[%s148 + $0x1a70] sm:$0xff]
                %1003 = vst [vmem:[%s149 + $0xd50] sm:$0xff] %v1002
                %v1004 = vld [vmem:[%s148 + $0x1a78] sm:$0xff]
                %1005 = vst [vmem:[%s149 + $0xd58] sm:$0xff] %v1004
                %v1006 = vld [vmem:[%s148 + $0x1a80] sm:$0xff]
                %1007 = vst [vmem:[%s149 + $0xd60] sm:$0xff] %v1006
                %v1008 = vld [vmem:[%s148 + $0x1a88] sm:$0xff]
                %1009 = vst [vmem:[%s149 + $0xd68] sm:$0xff] %v1008
                %v1010 = vld [vmem:[%s148 + $0x1a90] sm:$0xff]
                %1011 = vst [vmem:[%s149 + $0xd70] sm:$0xff] %v1010
                %v1012 = vld [vmem:[%s148 + $0x1a98] sm:$0xff]
                %1013 = vst [vmem:[%s149 + $0xd78] sm:$0xff] %v1012
                %v1014 = vld [vmem:[%s148 + $0x1aa0] sm:$0xff]
                %1015 = vst [vmem:[%s149 + $0xd80] sm:$0xff] %v1014
                %v1016 = vld [vmem:[%s148 + $0x1aa8] sm:$0xff]
                %1017 = vst [vmem:[%s149 + $0xd88] sm:$0xff] %v1016
                %v1018 = vld [vmem:[%s148 + $0x1ab0] sm:$0xff]
                %1019 = vst [vmem:[%s149 + $0xd90] sm:$0xff] %v1018
                %v1020 = vld [vmem:[%s148 + $0x1ab8] sm:$0xff]
                %1021 = vst [vmem:[%s149 + $0xd98] sm:$0xff] %v1020
                %v1022 = vld [vmem:[%s148 + $0x1ac0] sm:$0xff]
                %1023 = vst [vmem:[%s149 + $0xda0] sm:$0xff] %v1022
                %v1024 = vld [vmem:[%s148 + $0x1ac8] sm:$0xff]
                %1025 = vst [vmem:[%s149 + $0xda8] sm:$0xff] %v1024
                %v1026 = vld [vmem:[%s148 + $0x1ad0] sm:$0xff]
                %1027 = vst [vmem:[%s149 + $0xdb0] sm:$0xff] %v1026
                %v1028 = vld [vmem:[%s148 + $0x1ad8] sm:$0xff]
                %1029 = vst [vmem:[%s149 + $0xdb8] sm:$0xff] %v1028
                %v1030 = vld [vmem:[%s148 + $0x1ae0] sm:$0xff]
                %1031 = vst [vmem:[%s149 + $0xdc0] sm:$0xff] %v1030
                %v1032 = vld [vmem:[%s148 + $0x1ae8] sm:$0xff]
                %1033 = vst [vmem:[%s149 + $0xdc8] sm:$0xff] %v1032
                %v1034 = vld [vmem:[%s148 + $0x1af0] sm:$0xff]
                %1035 = vst [vmem:[%s149 + $0xdd0] sm:$0xff] %v1034
                %v1036 = vld [vmem:[%s148 + $0x1af8] sm:$0xff]
                %1037 = vst [vmem:[%s149 + $0xdd8] sm:$0xff] %v1036
                %v1038 = vld [vmem:[%s148 + $0x1b00] sm:$0xff]
                %1039 = vst [vmem:[%s149 + $0xde0] sm:$0xff] %v1038
                %v1040 = vld [vmem:[%s148 + $0x1b08] sm:$0xff]
                %1041 = vst [vmem:[%s149 + $0xde8] sm:$0xff] %v1040
                %v1042 = vld [vmem:[%s148 + $0x1b10] sm:$0xff]
                %1043 = vst [vmem:[%s149 + $0xdf0] sm:$0xff] %v1042
                %v1044 = vld [vmem:[%s148 + $0x1b18] sm:$0xff]
                %1045 = vst [vmem:[%s149 + $0xdf8] sm:$0xff] %v1044
                %v1046 = vld [vmem:[%s148 + $0x1b20] sm:$0xff]
                %1047 = vst [vmem:[%s149 + $0xe00] sm:$0xff] %v1046
                %v1048 = vld [vmem:[%s148 + $0x1b28] sm:$0xff]
                %1049 = vst [vmem:[%s149 + $0xe08] sm:$0xff] %v1048
                %v1050 = vld [vmem:[%s148 + $0x1c20] sm:$0xff]
                %1051 = vst [vmem:[%s149 + $0xe10] sm:$0xff] %v1050
                %v1052 = vld [vmem:[%s148 + $0x1c28] sm:$0xff]
                %1053 = vst [vmem:[%s149 + $0xe18] sm:$0xff] %v1052
                %v1054 = vld [vmem:[%s148 + $0x1c30] sm:$0xff]
                %1055 = vst [vmem:[%s149 + $0xe20] sm:$0xff] %v1054
                %v1056 = vld [vmem:[%s148 + $0x1c38] sm:$0xff]
                %1057 = vst [vmem:[%s149 + $0xe28] sm:$0xff] %v1056
                %v1058 = vld [vmem:[%s148 + $0x1c40] sm:$0xff]
                %1059 = vst [vmem:[%s149 + $0xe30] sm:$0xff] %v1058
                %v1060 = vld [vmem:[%s148 + $0x1c48] sm:$0xff]
                %1061 = vst [vmem:[%s149 + $0xe38] sm:$0xff] %v1060
                %v1062 = vld [vmem:[%s148 + $0x1c50] sm:$0xff]
                %1063 = vst [vmem:[%s149 + $0xe40] sm:$0xff] %v1062
                %v1064 = vld [vmem:[%s148 + $0x1c58] sm:$0xff]
                %1065 = vst [vmem:[%s149 + $0xe48] sm:$0xff] %v1064
                %v1066 = vld [vmem:[%s148 + $0x1c60] sm:$0xff]
                %1067 = vst [vmem:[%s149 + $0xe50] sm:$0xff] %v1066
                %v1068 = vld [vmem:[%s148 + $0x1c68] sm:$0xff]
                %1069 = vst [vmem:[%s149 + $0xe58] sm:$0xff] %v1068
                %v1070 = vld [vmem:[%s148 + $0x1c70] sm:$0xff]
                %1071 = vst [vmem:[%s149 + $0xe60] sm:$0xff] %v1070
                %v1072 = vld [vmem:[%s148 + $0x1c78] sm:$0xff]
                %1073 = vst [vmem:[%s149 + $0xe68] sm:$0xff] %v1072
                %v1074 = vld [vmem:[%s148 + $0x1c80] sm:$0xff]
                %1075 = vst [vmem:[%s149 + $0xe70] sm:$0xff] %v1074
                %v1076 = vld [vmem:[%s148 + $0x1c88] sm:$0xff]
                %1077 = vst [vmem:[%s149 + $0xe78] sm:$0xff] %v1076
                %v1078 = vld [vmem:[%s148 + $0x1c90] sm:$0xff]
                %1079 = vst [vmem:[%s149 + $0xe80] sm:$0xff] %v1078
                %v1080 = vld [vmem:[%s148 + $0x1c98] sm:$0xff]
                %1081 = vst [vmem:[%s149 + $0xe88] sm:$0xff] %v1080
                %v1082 = vld [vmem:[%s148 + $0x1ca0] sm:$0xff]
                %1083 = vst [vmem:[%s149 + $0xe90] sm:$0xff] %v1082
                %v1084 = vld [vmem:[%s148 + $0x1ca8] sm:$0xff]
                %1085 = vst [vmem:[%s149 + $0xe98] sm:$0xff] %v1084
                %v1086 = vld [vmem:[%s148 + $0x1cb0] sm:$0xff]
                %1087 = vst [vmem:[%s149 + $0xea0] sm:$0xff] %v1086
                %v1088 = vld [vmem:[%s148 + $0x1cb8] sm:$0xff]
                %1089 = vst [vmem:[%s149 + $0xea8] sm:$0xff] %v1088
                %v1090 = vld [vmem:[%s148 + $0x1cc0] sm:$0xff]
                %1091 = vst [vmem:[%s149 + $0xeb0] sm:$0xff] %v1090
                %v1092 = vld [vmem:[%s148 + $0x1cc8] sm:$0xff]
                %1093 = vst [vmem:[%s149 + $0xeb8] sm:$0xff] %v1092
                %v1094 = vld [vmem:[%s148 + $0x1cd0] sm:$0xff]
                %1095 = vst [vmem:[%s149 + $0xec0] sm:$0xff] %v1094
                %v1096 = vld [vmem:[%s148 + $0x1cd8] sm:$0xff]
                %1097 = vst [vmem:[%s149 + $0xec8] sm:$0xff] %v1096
                %v1098 = vld [vmem:[%s148 + $0x1ce0] sm:$0xff]
                %1099 = vst [vmem:[%s149 + $0xed0] sm:$0xff] %v1098
                %v1100 = vld [vmem:[%s148 + $0x1ce8] sm:$0xff]
                %1101 = vst [vmem:[%s149 + $0xed8] sm:$0xff] %v1100
                %v1102 = vld [vmem:[%s148 + $0x1cf0] sm:$0xff]
                %1103 = vst [vmem:[%s149 + $0xee0] sm:$0xff] %v1102
                %v1104 = vld [vmem:[%s148 + $0x1cf8] sm:$0xff]
                %1105 = vst [vmem:[%s149 + $0xee8] sm:$0xff] %v1104
                %v1106 = vld [vmem:[%s148 + $0x1d00] sm:$0xff]
                %1107 = vst [vmem:[%s149 + $0xef0] sm:$0xff] %v1106
                %v1108 = vld [vmem:[%s148 + $0x1d08] sm:$0xff]
                %1109 = vst [vmem:[%s149 + $0xef8] sm:$0xff] %v1108
              $region41: #{net_forward.4} parent=35 // loop_footer
                %s147 = sadd.s32 1, %s143
              $region42: #{net_forward.4} parent=35 // loop_footer_branch
                %142 = sbr.rel target = $region38
              $region43: #{net_forward.4} parent=35 // loop_exit
                _
            $region36: #{net_forward.4} parent=31 // pred_fallthru
              _
            // Predicated region
            $region44: #{net_forward.4} parent=31 // pred_check
              _
            $region45: #{net_forward.4} parent=31 // pred_check_branch
              %1111 = sbr.rel target = $region47
            $region46: #{net_forward.4} parent=31 // pred_region
              _
            $region47: #{net_forward.4} parent=31 // pred_fallthru
              _
          $region32: #{net_forward.4} parent=27 // pred_fallthru
            _
          %1112 = vnop
        $region28: #{net_forward.4} parent=23 // pred_fallthru
          _
      $region24: #{net_forward.4} parent=5 // pred_fallthru
        _
      %p1113 = scmp.le.s32.totalorder 1, %s9
      %p1114 = scmp.lt.s32.totalorder %s9, 3
      %p1115 = pnand %p1113, %p1114
      %p1116 = pneg %p1115
      // Predicated region
      $region48: #{net_forward.4} parent=5 // pred_check
        _
      $region49: #{net_forward.4} parent=5 // pred_check_branch
        %1118 = sbr.rel (%p1115) target = $region51
      $region50: #{net_forward.4} parent=5 // pred_region
        %s1119 = ssub.s32 %s9, 1
        %s1120 = sand.u32 %s43, 1
        %s1121 = sand.u32 %s43, 1
        %s1122 = smul.addr %s1121, 3840
        %s1123 = scalar_lea.vmem [#allocation2], %s1122
        // Predicated region
        $region52: #{net_forward.4} parent=50 // pred_check
          %p1124 = pneg %p56
        $region53: #{net_forward.4} parent=50 // pred_check_branch
          %1126 = sbr.rel (%p1124) target = $region55
        $region54: #{net_forward.4} parent=50 // pred_region
          _
        $region55: #{net_forward.4} parent=50 // pred_fallthru
          _
        %p1127 = pneg %p30
        %p1128 = pneg %p27
        %s1129 = sand.u32 %s43, 1
        %s1130 = sand.u32 %s43, 1
        %s1131 = smul.addr %s1130, 3840
        %s1132 = scalar_lea.vmem [#allocation2], %s1131
        %p1133 = pneg %p56
        %p1134 = pneg %p53
        %p1135 = pneg %p77
        %p1136 = pneg %p74
        %p1137 = pneg %p103
        %p1138 = pneg %p100
        %s1139 = sand.u32 %s90, 1
        %s1140 = sand.u32 %s90, 1
        %s1141 = smul.addr %s1140, 480
        %s1142 = scalar_lea.vmem [#allocation3], %s1141
        %s1143 = smul.u32 30, %s14
        %s1144 = smul.u32 30, %s14
        %v1145 = vld [vmem:[%s0] sm:$0xff]
        %v1146 = vld [vmem:[%s0 + $0x8] sm:$0xff]
        %v1147 = vld [vmem:[%s1123] sm:$0xff]
        %v1148 = vld [vmem:[%s1123 + $0x8] sm:$0xff]
        %v1149 = vld [vmem:[%s1123 + $0x10] sm:$0xff]
        %v1150 = vld [vmem:[%s1123 + $0x18] sm:$0xff]
        %v1151 = vld [vmem:[%s1123 + $0x20] sm:$0xff]
        %v1152 = vld [vmem:[%s1123 + $0x28] sm:$0xff]
        %v1153 = vld [vmem:[%s1123 + $0x30] sm:$0xff]
        %v1154 = vld [vmem:[%s1123 + $0x38] sm:$0xff]
        %v1155 = vld [vmem:[%s1123 + $0x40] sm:$0xff]
        %v1156 = vld [vmem:[%s1123 + $0x48] sm:$0xff]
        %v1157 = vld [vmem:[%s1123 + $0x50] sm:$0xff]
        %v1158 = vld [vmem:[%s1123 + $0x58] sm:$0xff]
        %v1159 = vld [vmem:[%s1123 + $0x60] sm:$0xff]
        %v1160 = vld [vmem:[%s1123 + $0x68] sm:$0xff]
        %v1161 = vld [vmem:[%s1123 + $0x70] sm:$0xff]
        %v1162 = vld [vmem:[%s1123 + $0x78] sm:$0xff]
        %v1163 = vld [vmem:[%s1123 + $0x80] sm:$0xff]
        %v1164 = vld [vmem:[%s1123 + $0x88] sm:$0xff]
        %v1165 = vld [vmem:[%s1123 + $0x90] sm:$0xff]
        %v1166 = vld [vmem:[%s1123 + $0x98] sm:$0xff]
        %v1167 = vld [vmem:[%s1123 + $0xa0] sm:$0xff]
        %v1168 = vld [vmem:[%s1123 + $0xa8] sm:$0xff]
        %v1169 = vld [vmem:[%s1123 + $0xb0] sm:$0xff]
        %v1170 = vld [vmem:[%s1123 + $0xb8] sm:$0xff]
        %v1171 = vld [vmem:[%s1123 + $0xc0] sm:$0xff]
        %v1172 = vld [vmem:[%s1123 + $0xc8] sm:$0xff]
        %v1173 = vld [vmem:[%s1123 + $0xd0] sm:$0xff]
        %v1174 = vld [vmem:[%s1123 + $0xd8] sm:$0xff]
        %v1175 = vld [vmem:[%s1123 + $0xe0] sm:$0xff]
        %v1176 = vld [vmem:[%s1123 + $0xe8] sm:$0xff]
        %v1177 = vld [vmem:[%s1123 + $0xf0] sm:$0xff]
        %v1178 = vld [vmem:[%s1123 + $0xf8] sm:$0xff]
        %v1179 = vld [vmem:[%s1123 + $0x100] sm:$0xff]
        %v1180 = vld [vmem:[%s1123 + $0x108] sm:$0xff]
        %v1181 = vld [vmem:[%s1123 + $0x110] sm:$0xff]
        %v1182 = vld [vmem:[%s1123 + $0x118] sm:$0xff]
        %v1183 = vld [vmem:[%s1123 + $0x120] sm:$0xff]
        %v1184 = vld [vmem:[%s1123 + $0x128] sm:$0xff]
        %v1185 = vld [vmem:[%s1123 + $0x130] sm:$0xff]
        %v1186 = vld [vmem:[%s1123 + $0x138] sm:$0xff]
        %v1187 = vld [vmem:[%s1123 + $0x140] sm:$0xff]
        %v1188 = vld [vmem:[%s1123 + $0x148] sm:$0xff]
        %v1189 = vld [vmem:[%s1123 + $0x150] sm:$0xff]
        %v1190 = vld [vmem:[%s1123 + $0x158] sm:$0xff]
        %v1191 = vld [vmem:[%s1123 + $0x160] sm:$0xff]
        %v1192 = vld [vmem:[%s1123 + $0x168] sm:$0xff]
        %v1193 = vld [vmem:[%s1123 + $0x170] sm:$0xff]
        %v1194 = vld [vmem:[%s1123 + $0x178] sm:$0xff]
        %v1195 = vld [vmem:[%s1123 + $0x180] sm:$0xff]
        %v1196 = vld [vmem:[%s1123 + $0x188] sm:$0xff]
        %v1197 = vld [vmem:[%s1123 + $0x190] sm:$0xff]
        %v1198 = vld [vmem:[%s1123 + $0x198] sm:$0xff]
        %v1199 = vld [vmem:[%s1123 + $0x1a0] sm:$0xff]
        %v1200 = vld [vmem:[%s1123 + $0x1a8] sm:$0xff]
        %v1201 = vld [vmem:[%s1123 + $0x1b0] sm:$0xff]
        %v1202 = vld [vmem:[%s1123 + $0x1b8] sm:$0xff]
        %v1203 = vld [vmem:[%s1123 + $0x1c0] sm:$0xff]
        %v1204 = vld [vmem:[%s1123 + $0x1c8] sm:$0xff]
        %v1205 = vld [vmem:[%s1123 + $0x1d0] sm:$0xff]
        %v1206 = vld [vmem:[%s1123 + $0x1d8] sm:$0xff]
        %v1207 = vld [vmem:[%s1123 + $0x1e0] sm:$0xff]
        %v1208 = vld [vmem:[%s1123 + $0x1e8] sm:$0xff]
        %v1209 = vld [vmem:[%s1123 + $0x1f0] sm:$0xff]
        %v1210 = vld [vmem:[%s1123 + $0x1f8] sm:$0xff]
        %v1211 = vld [vmem:[%s1123 + $0x200] sm:$0xff]
        %v1212 = vld [vmem:[%s1123 + $0x208] sm:$0xff]
        %v1213 = vld [vmem:[%s1123 + $0x210] sm:$0xff]
        %v1214 = vld [vmem:[%s1123 + $0x218] sm:$0xff]
        %v1215 = vld [vmem:[%s1123 + $0x220] sm:$0xff]
        %v1216 = vld [vmem:[%s1123 + $0x228] sm:$0xff]
        %v1217 = vld [vmem:[%s1123 + $0x230] sm:$0xff]
        %v1218 = vld [vmem:[%s1123 + $0x238] sm:$0xff]
        %v1219 = vld [vmem:[%s1123 + $0x240] sm:$0xff]
        %v1220 = vld [vmem:[%s1123 + $0x248] sm:$0xff]
        %v1221 = vld [vmem:[%s1123 + $0x250] sm:$0xff]
        %v1222 = vld [vmem:[%s1123 + $0x258] sm:$0xff]
        %v1223 = vld [vmem:[%s1123 + $0x260] sm:$0xff]
        %v1224 = vld [vmem:[%s1123 + $0x268] sm:$0xff]
        %v1225 = vld [vmem:[%s1123 + $0x270] sm:$0xff]
        %v1226 = vld [vmem:[%s1123 + $0x278] sm:$0xff]
        %v1227 = vld [vmem:[%s1123 + $0x280] sm:$0xff]
        %v1228 = vld [vmem:[%s1123 + $0x288] sm:$0xff]
        %v1229 = vld [vmem:[%s1123 + $0x290] sm:$0xff]
        %v1230 = vld [vmem:[%s1123 + $0x298] sm:$0xff]
        %v1231 = vld [vmem:[%s1123 + $0x2a0] sm:$0xff]
        %v1232 = vld [vmem:[%s1123 + $0x2a8] sm:$0xff]
        %v1233 = vld [vmem:[%s1123 + $0x2b0] sm:$0xff]
        %v1234 = vld [vmem:[%s1123 + $0x2b8] sm:$0xff]
        %v1235 = vld [vmem:[%s1123 + $0x2c0] sm:$0xff]
        %v1236 = vld [vmem:[%s1123 + $0x2c8] sm:$0xff]
        %v1237 = vld [vmem:[%s1123 + $0x2d0] sm:$0xff]
        %v1238 = vld [vmem:[%s1123 + $0x2d8] sm:$0xff]
        %v1239 = vld [vmem:[%s1123 + $0x2e0] sm:$0xff]
        %v1240 = vld [vmem:[%s1123 + $0x2e8] sm:$0xff]
        %v1241 = vld [vmem:[%s1123 + $0x2f0] sm:$0xff]
        %v1242 = vld [vmem:[%s1123 + $0x2f8] sm:$0xff]
        %v1243 = vld [vmem:[%s1123 + $0x300] sm:$0xff]
        %v1244 = vld [vmem:[%s1123 + $0x308] sm:$0xff]
        %v1245 = vld [vmem:[%s1123 + $0x310] sm:$0xff]
        %v1246 = vld [vmem:[%s1123 + $0x318] sm:$0xff]
        %v1247 = vld [vmem:[%s1123 + $0x320] sm:$0xff]
        %v1248 = vld [vmem:[%s1123 + $0x328] sm:$0xff]
        %v1249 = vld [vmem:[%s1123 + $0x330] sm:$0xff]
        %v1250 = vld [vmem:[%s1123 + $0x338] sm:$0xff]
        %v1251 = vld [vmem:[%s1123 + $0x340] sm:$0xff]
        %v1252 = vld [vmem:[%s1123 + $0x348] sm:$0xff]
        %v1253 = vld [vmem:[%s1123 + $0x350] sm:$0xff]
        %v1254 = vld [vmem:[%s1123 + $0x358] sm:$0xff]
        %v1255 = vld [vmem:[%s1123 + $0x360] sm:$0xff]
        %v1256 = vld [vmem:[%s1123 + $0x368] sm:$0xff]
        %v1257 = vld [vmem:[%s1123 + $0x370] sm:$0xff]
        %v1258 = vld [vmem:[%s1123 + $0x378] sm:$0xff]
        %v1259 = vld [vmem:[%s1123 + $0x380] sm:$0xff]
        %v1260 = vld [vmem:[%s1123 + $0x388] sm:$0xff]
        %v1261 = vld [vmem:[%s1123 + $0x390] sm:$0xff]
        %v1262 = vld [vmem:[%s1123 + $0x398] sm:$0xff]
        %v1263 = vld [vmem:[%s1123 + $0x3a0] sm:$0xff]
        %v1264 = vld [vmem:[%s1123 + $0x3a8] sm:$0xff]
        %v1265 = vld [vmem:[%s1123 + $0x3b0] sm:$0xff]
        %v1266 = vld [vmem:[%s1123 + $0x3b8] sm:$0xff]
        %v1267 = vld [vmem:[%s1123 + $0x3c0] sm:$0xff]
        %v1268 = vld [vmem:[%s1123 + $0x3c8] sm:$0xff]
        %v1269 = vld [vmem:[%s1123 + $0x3d0] sm:$0xff]
        %v1270 = vld [vmem:[%s1123 + $0x3d8] sm:$0xff]
        %v1271 = vld [vmem:[%s1123 + $0x3e0] sm:$0xff]
        %v1272 = vld [vmem:[%s1123 + $0x3e8] sm:$0xff]
        %v1273 = vld [vmem:[%s1123 + $0x3f0] sm:$0xff]
        %v1274 = vld [vmem:[%s1123 + $0x3f8] sm:$0xff]
        %v1275 = vld [vmem:[%s1123 + $0x400] sm:$0xff]
        %v1276 = vld [vmem:[%s1123 + $0x408] sm:$0xff]
        %v1277 = vld [vmem:[%s1123 + $0x410] sm:$0xff]
        %v1278 = vld [vmem:[%s1123 + $0x418] sm:$0xff]
        %v1279 = vld [vmem:[%s1123 + $0x420] sm:$0xff]
        %v1280 = vld [vmem:[%s1123 + $0x428] sm:$0xff]
        %v1281 = vld [vmem:[%s1123 + $0x430] sm:$0xff]
        %v1282 = vld [vmem:[%s1123 + $0x438] sm:$0xff]
        %v1283 = vld [vmem:[%s1123 + $0x440] sm:$0xff]
        %v1284 = vld [vmem:[%s1123 + $0x448] sm:$0xff]
        %v1285 = vld [vmem:[%s1123 + $0x450] sm:$0xff]
        %v1286 = vld [vmem:[%s1123 + $0x458] sm:$0xff]
        %v1287 = vld [vmem:[%s1123 + $0x460] sm:$0xff]
        %v1288 = vld [vmem:[%s1123 + $0x468] sm:$0xff]
        %v1289 = vld [vmem:[%s1123 + $0x470] sm:$0xff]
        %v1290 = vld [vmem:[%s1123 + $0x478] sm:$0xff]
        %v1291 = vld [vmem:[%s1123 + $0x480] sm:$0xff]
        %v1292 = vld [vmem:[%s1123 + $0x488] sm:$0xff]
        %v1293 = vld [vmem:[%s1123 + $0x490] sm:$0xff]
        %v1294 = vld [vmem:[%s1123 + $0x498] sm:$0xff]
        %v1295 = vld [vmem:[%s1123 + $0x4a0] sm:$0xff]
        %v1296 = vld [vmem:[%s1123 + $0x4a8] sm:$0xff]
        %v1297 = vld [vmem:[%s1123 + $0x4b0] sm:$0xff]
        %v1298 = vld [vmem:[%s1123 + $0x4b8] sm:$0xff]
        %v1299 = vld [vmem:[%s1123 + $0x4c0] sm:$0xff]
        %v1300 = vld [vmem:[%s1123 + $0x4c8] sm:$0xff]
        %v1301 = vld [vmem:[%s1123 + $0x4d0] sm:$0xff]
        %v1302 = vld [vmem:[%s1123 + $0x4d8] sm:$0xff]
        %v1303 = vld [vmem:[%s1123 + $0x4e0] sm:$0xff]
        %v1304 = vld [vmem:[%s1123 + $0x4e8] sm:$0xff]
        %v1305 = vld [vmem:[%s1123 + $0x4f0] sm:$0xff]
        %v1306 = vld [vmem:[%s1123 + $0x4f8] sm:$0xff]
        %v1307 = vld [vmem:[%s1123 + $0x500] sm:$0xff]
        %v1308 = vld [vmem:[%s1123 + $0x508] sm:$0xff]
        %v1309 = vld [vmem:[%s1123 + $0x510] sm:$0xff]
        %v1310 = vld [vmem:[%s1123 + $0x518] sm:$0xff]
        %v1311 = vld [vmem:[%s1123 + $0x520] sm:$0xff]
        %v1312 = vld [vmem:[%s1123 + $0x528] sm:$0xff]
        %v1313 = vld [vmem:[%s1123 + $0x530] sm:$0xff]
        %v1314 = vld [vmem:[%s1123 + $0x538] sm:$0xff]
        %v1315 = vld [vmem:[%s1123 + $0x540] sm:$0xff]
        %v1316 = vld [vmem:[%s1123 + $0x548] sm:$0xff]
        %v1317 = vld [vmem:[%s1123 + $0x550] sm:$0xff]
        %v1318 = vld [vmem:[%s1123 + $0x558] sm:$0xff]
        %v1319 = vld [vmem:[%s1123 + $0x560] sm:$0xff]
        %v1320 = vld [vmem:[%s1123 + $0x568] sm:$0xff]
        %v1321 = vld [vmem:[%s1123 + $0x570] sm:$0xff]
        %v1322 = vld [vmem:[%s1123 + $0x578] sm:$0xff]
        %v1323 = vld [vmem:[%s1123 + $0x580] sm:$0xff]
        %v1324 = vld [vmem:[%s1123 + $0x588] sm:$0xff]
        %v1325 = vld [vmem:[%s1123 + $0x590] sm:$0xff]
        %v1326 = vld [vmem:[%s1123 + $0x598] sm:$0xff]
        %v1327 = vld [vmem:[%s1123 + $0x5a0] sm:$0xff]
        %v1328 = vld [vmem:[%s1123 + $0x5a8] sm:$0xff]
        %v1329 = vld [vmem:[%s1123 + $0x5b0] sm:$0xff]
        %v1330 = vld [vmem:[%s1123 + $0x5b8] sm:$0xff]
        %v1331 = vld [vmem:[%s1123 + $0x5c0] sm:$0xff]
        %v1332 = vld [vmem:[%s1123 + $0x5c8] sm:$0xff]
        %v1333 = vld [vmem:[%s1123 + $0x5d0] sm:$0xff]
        %v1334 = vld [vmem:[%s1123 + $0x5d8] sm:$0xff]
        %v1335 = vld [vmem:[%s1123 + $0x5e0] sm:$0xff]
        %v1336 = vld [vmem:[%s1123 + $0x5e8] sm:$0xff]
        %v1337 = vld [vmem:[%s1123 + $0x5f0] sm:$0xff]
        %v1338 = vld [vmem:[%s1123 + $0x5f8] sm:$0xff]
        %v1339 = vld [vmem:[%s1123 + $0x600] sm:$0xff]
        %v1340 = vld [vmem:[%s1123 + $0x608] sm:$0xff]
        %v1341 = vld [vmem:[%s1123 + $0x610] sm:$0xff]
        %v1342 = vld [vmem:[%s1123 + $0x618] sm:$0xff]
        %v1343 = vld [vmem:[%s1123 + $0x620] sm:$0xff]
        %v1344 = vld [vmem:[%s1123 + $0x628] sm:$0xff]
        %v1345 = vld [vmem:[%s1123 + $0x630] sm:$0xff]
        %v1346 = vld [vmem:[%s1123 + $0x638] sm:$0xff]
        %v1347 = vld [vmem:[%s1123 + $0x640] sm:$0xff]
        %v1348 = vld [vmem:[%s1123 + $0x648] sm:$0xff]
        %v1349 = vld [vmem:[%s1123 + $0x650] sm:$0xff]
        %v1350 = vld [vmem:[%s1123 + $0x658] sm:$0xff]
        %v1351 = vld [vmem:[%s1123 + $0x660] sm:$0xff]
        %v1352 = vld [vmem:[%s1123 + $0x668] sm:$0xff]
        %v1353 = vld [vmem:[%s1123 + $0x670] sm:$0xff]
        %v1354 = vld [vmem:[%s1123 + $0x678] sm:$0xff]
        %v1355 = vld [vmem:[%s1123 + $0x680] sm:$0xff]
        %v1356 = vld [vmem:[%s1123 + $0x688] sm:$0xff]
        %v1357 = vld [vmem:[%s1123 + $0x690] sm:$0xff]
        %v1358 = vld [vmem:[%s1123 + $0x698] sm:$0xff]
        %v1359 = vld [vmem:[%s1123 + $0x6a0] sm:$0xff]
        %v1360 = vld [vmem:[%s1123 + $0x6a8] sm:$0xff]
        %v1361 = vld [vmem:[%s1123 + $0x6b0] sm:$0xff]
        %v1362 = vld [vmem:[%s1123 + $0x6b8] sm:$0xff]
        %v1363 = vld [vmem:[%s1123 + $0x6c0] sm:$0xff]
        %v1364 = vld [vmem:[%s1123 + $0x6c8] sm:$0xff]
        %v1365 = vld [vmem:[%s1123 + $0x6d0] sm:$0xff]
        %v1366 = vld [vmem:[%s1123 + $0x6d8] sm:$0xff]
        %v1367 = vld [vmem:[%s1123 + $0x6e0] sm:$0xff]
        %v1368 = vld [vmem:[%s1123 + $0x6e8] sm:$0xff]
        %v1369 = vld [vmem:[%s1123 + $0x6f0] sm:$0xff]
        %v1370 = vld [vmem:[%s1123 + $0x6f8] sm:$0xff]
        %v1371 = vld [vmem:[%s1123 + $0x700] sm:$0xff]
        %v1372 = vld [vmem:[%s1123 + $0x708] sm:$0xff]
        %v1373 = vld [vmem:[%s1123 + $0x710] sm:$0xff]
        %v1374 = vld [vmem:[%s1123 + $0x718] sm:$0xff]
        %v1375 = vld [vmem:[%s1123 + $0x720] sm:$0xff]
        %v1376 = vld [vmem:[%s1123 + $0x728] sm:$0xff]
        %v1377 = vld [vmem:[%s1123 + $0x730] sm:$0xff]
        %v1378 = vld [vmem:[%s1123 + $0x738] sm:$0xff]
        %v1379 = vld [vmem:[%s1123 + $0x740] sm:$0xff]
        %v1380 = vld [vmem:[%s1123 + $0x748] sm:$0xff]
        %v1381 = vld [vmem:[%s1123 + $0x750] sm:$0xff]
        %v1382 = vld [vmem:[%s1123 + $0x758] sm:$0xff]
        %v1383 = vld [vmem:[%s1123 + $0x760] sm:$0xff]
        %v1384 = vld [vmem:[%s1123 + $0x768] sm:$0xff]
        %v1385 = vld [vmem:[%s1123 + $0x770] sm:$0xff]
        %v1386 = vld [vmem:[%s1123 + $0x778] sm:$0xff]
        %v1387 = vld [vmem:[%s1123 + $0x780] sm:$0xff]
        %v1388 = vld [vmem:[%s1123 + $0x788] sm:$0xff]
        %v1389 = vld [vmem:[%s1123 + $0x790] sm:$0xff]
        %v1390 = vld [vmem:[%s1123 + $0x798] sm:$0xff]
        %v1391 = vld [vmem:[%s1123 + $0x7a0] sm:$0xff]
        %v1392 = vld [vmem:[%s1123 + $0x7a8] sm:$0xff]
        %v1393 = vld [vmem:[%s1123 + $0x7b0] sm:$0xff]
        %v1394 = vld [vmem:[%s1123 + $0x7b8] sm:$0xff]
        %v1395 = vld [vmem:[%s1123 + $0x7c0] sm:$0xff]
        %v1396 = vld [vmem:[%s1123 + $0x7c8] sm:$0xff]
        %v1397 = vld [vmem:[%s1123 + $0x7d0] sm:$0xff]
        %v1398 = vld [vmem:[%s1123 + $0x7d8] sm:$0xff]
        %v1399 = vld [vmem:[%s1123 + $0x7e0] sm:$0xff]
        %v1400 = vld [vmem:[%s1123 + $0x7e8] sm:$0xff]
        %v1401 = vld [vmem:[%s1123 + $0x7f0] sm:$0xff]
        %v1402 = vld [vmem:[%s1123 + $0x7f8] sm:$0xff]
        %v1403 = vld [vmem:[%s1123 + $0x800] sm:$0xff]
        %v1404 = vld [vmem:[%s1123 + $0x808] sm:$0xff]
        %v1405 = vld [vmem:[%s1123 + $0x810] sm:$0xff]
        %v1406 = vld [vmem:[%s1123 + $0x818] sm:$0xff]
        %v1407 = vld [vmem:[%s1123 + $0x820] sm:$0xff]
        %v1408 = vld [vmem:[%s1123 + $0x828] sm:$0xff]
        %v1409 = vld [vmem:[%s1123 + $0x830] sm:$0xff]
        %v1410 = vld [vmem:[%s1123 + $0x838] sm:$0xff]
        %v1411 = vld [vmem:[%s1123 + $0x840] sm:$0xff]
        %v1412 = vld [vmem:[%s1123 + $0x848] sm:$0xff]
        %v1413 = vld [vmem:[%s1123 + $0x850] sm:$0xff]
        %v1414 = vld [vmem:[%s1123 + $0x858] sm:$0xff]
        %v1415 = vld [vmem:[%s1123 + $0x860] sm:$0xff]
        %v1416 = vld [vmem:[%s1123 + $0x868] sm:$0xff]
        %v1417 = vld [vmem:[%s1123 + $0x870] sm:$0xff]
        %v1418 = vld [vmem:[%s1123 + $0x878] sm:$0xff]
        %v1419 = vld [vmem:[%s1123 + $0x880] sm:$0xff]
        %v1420 = vld [vmem:[%s1123 + $0x888] sm:$0xff]
        %v1421 = vld [vmem:[%s1123 + $0x890] sm:$0xff]
        %v1422 = vld [vmem:[%s1123 + $0x898] sm:$0xff]
        %v1423 = vld [vmem:[%s1123 + $0x8a0] sm:$0xff]
        %v1424 = vld [vmem:[%s1123 + $0x8a8] sm:$0xff]
        %v1425 = vld [vmem:[%s1123 + $0x8b0] sm:$0xff]
        %v1426 = vld [vmem:[%s1123 + $0x8b8] sm:$0xff]
        %v1427 = vld [vmem:[%s1123 + $0x8c0] sm:$0xff]
        %v1428 = vld [vmem:[%s1123 + $0x8c8] sm:$0xff]
        %v1429 = vld [vmem:[%s1123 + $0x8d0] sm:$0xff]
        %v1430 = vld [vmem:[%s1123 + $0x8d8] sm:$0xff]
        %v1431 = vld [vmem:[%s1123 + $0x8e0] sm:$0xff]
        %v1432 = vld [vmem:[%s1123 + $0x8e8] sm:$0xff]
        %v1433 = vld [vmem:[%s1123 + $0x8f0] sm:$0xff]
        %v1434 = vld [vmem:[%s1123 + $0x8f8] sm:$0xff]
        %v1435 = vld [vmem:[%s1123 + $0x900] sm:$0xff]
        %v1436 = vld [vmem:[%s1123 + $0x908] sm:$0xff]
        %v1437 = vld [vmem:[%s1123 + $0x910] sm:$0xff]
        %v1438 = vld [vmem:[%s1123 + $0x918] sm:$0xff]
        %v1439 = vld [vmem:[%s1123 + $0x920] sm:$0xff]
        %v1440 = vld [vmem:[%s1123 + $0x928] sm:$0xff]
        %v1441 = vld [vmem:[%s1123 + $0x930] sm:$0xff]
        %v1442 = vld [vmem:[%s1123 + $0x938] sm:$0xff]
        %v1443 = vld [vmem:[%s1123 + $0x940] sm:$0xff]
        %v1444 = vld [vmem:[%s1123 + $0x948] sm:$0xff]
        %v1445 = vld [vmem:[%s1123 + $0x950] sm:$0xff]
        %v1446 = vld [vmem:[%s1123 + $0x958] sm:$0xff]
        %v1447 = vld [vmem:[%s1123 + $0x960] sm:$0xff]
        %v1448 = vld [vmem:[%s1123 + $0x968] sm:$0xff]
        %v1449 = vld [vmem:[%s1123 + $0x970] sm:$0xff]
        %v1450 = vld [vmem:[%s1123 + $0x978] sm:$0xff]
        %v1451 = vld [vmem:[%s1123 + $0x980] sm:$0xff]
        %v1452 = vld [vmem:[%s1123 + $0x988] sm:$0xff]
        %v1453 = vld [vmem:[%s1123 + $0x990] sm:$0xff]
        %v1454 = vld [vmem:[%s1123 + $0x998] sm:$0xff]
        %v1455 = vld [vmem:[%s1123 + $0x9a0] sm:$0xff]
        %v1456 = vld [vmem:[%s1123 + $0x9a8] sm:$0xff]
        %v1457 = vld [vmem:[%s1123 + $0x9b0] sm:$0xff]
        %v1458 = vld [vmem:[%s1123 + $0x9b8] sm:$0xff]
        %v1459 = vld [vmem:[%s1123 + $0x9c0] sm:$0xff]
        %v1460 = vld [vmem:[%s1123 + $0x9c8] sm:$0xff]
        %v1461 = vld [vmem:[%s1123 + $0x9d0] sm:$0xff]
        %v1462 = vld [vmem:[%s1123 + $0x9d8] sm:$0xff]
        %v1463 = vld [vmem:[%s1123 + $0x9e0] sm:$0xff]
        %v1464 = vld [vmem:[%s1123 + $0x9e8] sm:$0xff]
        %v1465 = vld [vmem:[%s1123 + $0x9f0] sm:$0xff]
        %v1466 = vld [vmem:[%s1123 + $0x9f8] sm:$0xff]
        %v1467 = vld [vmem:[%s1123 + $0xa00] sm:$0xff]
        %v1468 = vld [vmem:[%s1123 + $0xa08] sm:$0xff]
        %v1469 = vld [vmem:[%s1123 + $0xa10] sm:$0xff]
        %v1470 = vld [vmem:[%s1123 + $0xa18] sm:$0xff]
        %v1471 = vld [vmem:[%s1123 + $0xa20] sm:$0xff]
        %v1472 = vld [vmem:[%s1123 + $0xa28] sm:$0xff]
        %v1473 = vld [vmem:[%s1123 + $0xa30] sm:$0xff]
        %v1474 = vld [vmem:[%s1123 + $0xa38] sm:$0xff]
        %v1475 = vld [vmem:[%s1123 + $0xa40] sm:$0xff]
        %v1476 = vld [vmem:[%s1123 + $0xa48] sm:$0xff]
        %v1477 = vld [vmem:[%s1123 + $0xa50] sm:$0xff]
        %v1478 = vld [vmem:[%s1123 + $0xa58] sm:$0xff]
        %v1479 = vld [vmem:[%s1123 + $0xa60] sm:$0xff]
        %v1480 = vld [vmem:[%s1123 + $0xa68] sm:$0xff]
        %v1481 = vld [vmem:[%s1123 + $0xa70] sm:$0xff]
        %v1482 = vld [vmem:[%s1123 + $0xa78] sm:$0xff]
        %v1483 = vld [vmem:[%s1123 + $0xa80] sm:$0xff]
        %v1484 = vld [vmem:[%s1123 + $0xa88] sm:$0xff]
        %v1485 = vld [vmem:[%s1123 + $0xa90] sm:$0xff]
        %v1486 = vld [vmem:[%s1123 + $0xa98] sm:$0xff]
        %v1487 = vld [vmem:[%s1123 + $0xaa0] sm:$0xff]
        %v1488 = vld [vmem:[%s1123 + $0xaa8] sm:$0xff]
        %v1489 = vld [vmem:[%s1123 + $0xab0] sm:$0xff]
        %v1490 = vld [vmem:[%s1123 + $0xab8] sm:$0xff]
        %v1491 = vld [vmem:[%s1123 + $0xac0] sm:$0xff]
        %v1492 = vld [vmem:[%s1123 + $0xac8] sm:$0xff]
        %v1493 = vld [vmem:[%s1123 + $0xad0] sm:$0xff]
        %v1494 = vld [vmem:[%s1123 + $0xad8] sm:$0xff]
        %v1495 = vld [vmem:[%s1123 + $0xae0] sm:$0xff]
        %v1496 = vld [vmem:[%s1123 + $0xae8] sm:$0xff]
        %v1497 = vld [vmem:[%s1123 + $0xaf0] sm:$0xff]
        %v1498 = vld [vmem:[%s1123 + $0xaf8] sm:$0xff]
        %v1499 = vld [vmem:[%s1123 + $0xb00] sm:$0xff]
        %v1500 = vld [vmem:[%s1123 + $0xb08] sm:$0xff]
        %v1501 = vld [vmem:[%s1123 + $0xb10] sm:$0xff]
        %v1502 = vld [vmem:[%s1123 + $0xb18] sm:$0xff]
        %v1503 = vld [vmem:[%s1123 + $0xb20] sm:$0xff]
        %v1504 = vld [vmem:[%s1123 + $0xb28] sm:$0xff]
        %v1505 = vld [vmem:[%s1123 + $0xb30] sm:$0xff]
        %v1506 = vld [vmem:[%s1123 + $0xb38] sm:$0xff]
        %v1507 = vld [vmem:[%s1123 + $0xb40] sm:$0xff]
        %v1508 = vld [vmem:[%s1123 + $0xb48] sm:$0xff]
        %v1509 = vld [vmem:[%s1123 + $0xb50] sm:$0xff]
        %v1510 = vld [vmem:[%s1123 + $0xb58] sm:$0xff]
        %v1511 = vld [vmem:[%s1123 + $0xb60] sm:$0xff]
        %v1512 = vld [vmem:[%s1123 + $0xb68] sm:$0xff]
        %v1513 = vld [vmem:[%s1123 + $0xb70] sm:$0xff]
        %v1514 = vld [vmem:[%s1123 + $0xb78] sm:$0xff]
        %v1515 = vld [vmem:[%s1123 + $0xb80] sm:$0xff]
        %v1516 = vld [vmem:[%s1123 + $0xb88] sm:$0xff]
        %v1517 = vld [vmem:[%s1123 + $0xb90] sm:$0xff]
        %v1518 = vld [vmem:[%s1123 + $0xb98] sm:$0xff]
        %v1519 = vld [vmem:[%s1123 + $0xba0] sm:$0xff]
        %v1520 = vld [vmem:[%s1123 + $0xba8] sm:$0xff]
        %v1521 = vld [vmem:[%s1123 + $0xbb0] sm:$0xff]
        %v1522 = vld [vmem:[%s1123 + $0xbb8] sm:$0xff]
        %v1523 = vld [vmem:[%s1123 + $0xbc0] sm:$0xff]
        %v1524 = vld [vmem:[%s1123 + $0xbc8] sm:$0xff]
        %v1525 = vld [vmem:[%s1123 + $0xbd0] sm:$0xff]
        %v1526 = vld [vmem:[%s1123 + $0xbd8] sm:$0xff]
        %v1527 = vld [vmem:[%s1123 + $0xbe0] sm:$0xff]
        %v1528 = vld [vmem:[%s1123 + $0xbe8] sm:$0xff]
        %v1529 = vld [vmem:[%s1123 + $0xbf0] sm:$0xff]
        %v1530 = vld [vmem:[%s1123 + $0xbf8] sm:$0xff]
        %v1531 = vld [vmem:[%s1123 + $0xc00] sm:$0xff]
        %v1532 = vld [vmem:[%s1123 + $0xc08] sm:$0xff]
        %v1533 = vld [vmem:[%s1123 + $0xc10] sm:$0xff]
        %v1534 = vld [vmem:[%s1123 + $0xc18] sm:$0xff]
        %v1535 = vld [vmem:[%s1123 + $0xc20] sm:$0xff]
        %v1536 = vld [vmem:[%s1123 + $0xc28] sm:$0xff]
        %v1537 = vld [vmem:[%s1123 + $0xc30] sm:$0xff]
        %v1538 = vld [vmem:[%s1123 + $0xc38] sm:$0xff]
        %v1539 = vld [vmem:[%s1123 + $0xc40] sm:$0xff]
        %v1540 = vld [vmem:[%s1123 + $0xc48] sm:$0xff]
        %v1541 = vld [vmem:[%s1123 + $0xc50] sm:$0xff]
        %v1542 = vld [vmem:[%s1123 + $0xc58] sm:$0xff]
        %v1543 = vld [vmem:[%s1123 + $0xc60] sm:$0xff]
        %v1544 = vld [vmem:[%s1123 + $0xc68] sm:$0xff]
        %v1545 = vld [vmem:[%s1123 + $0xc70] sm:$0xff]
        %v1546 = vld [vmem:[%s1123 + $0xc78] sm:$0xff]
        %v1547 = vld [vmem:[%s1123 + $0xc80] sm:$0xff]
        %v1548 = vld [vmem:[%s1123 + $0xc88] sm:$0xff]
        %v1549 = vld [vmem:[%s1123 + $0xc90] sm:$0xff]
        %v1550 = vld [vmem:[%s1123 + $0xc98] sm:$0xff]
        %v1551 = vld [vmem:[%s1123 + $0xca0] sm:$0xff]
        %v1552 = vld [vmem:[%s1123 + $0xca8] sm:$0xff]
        %v1553 = vld [vmem:[%s1123 + $0xcb0] sm:$0xff]
        %v1554 = vld [vmem:[%s1123 + $0xcb8] sm:$0xff]
        %v1555 = vld [vmem:[%s1123 + $0xcc0] sm:$0xff]
        %v1556 = vld [vmem:[%s1123 + $0xcc8] sm:$0xff]
        %v1557 = vld [vmem:[%s1123 + $0xcd0] sm:$0xff]
        %v1558 = vld [vmem:[%s1123 + $0xcd8] sm:$0xff]
        %v1559 = vld [vmem:[%s1123 + $0xce0] sm:$0xff]
        %v1560 = vld [vmem:[%s1123 + $0xce8] sm:$0xff]
        %v1561 = vld [vmem:[%s1123 + $0xcf0] sm:$0xff]
        %v1562 = vld [vmem:[%s1123 + $0xcf8] sm:$0xff]
        %v1563 = vld [vmem:[%s1123 + $0xd00] sm:$0xff]
        %v1564 = vld [vmem:[%s1123 + $0xd08] sm:$0xff]
        %v1565 = vld [vmem:[%s1123 + $0xd10] sm:$0xff]
        %v1566 = vld [vmem:[%s1123 + $0xd18] sm:$0xff]
        %v1567 = vld [vmem:[%s1123 + $0xd20] sm:$0xff]
        %v1568 = vld [vmem:[%s1123 + $0xd28] sm:$0xff]
        %v1569 = vld [vmem:[%s1123 + $0xd30] sm:$0xff]
        %v1570 = vld [vmem:[%s1123 + $0xd38] sm:$0xff]
        %v1571 = vld [vmem:[%s1123 + $0xd40] sm:$0xff]
        %v1572 = vld [vmem:[%s1123 + $0xd48] sm:$0xff]
        %v1573 = vld [vmem:[%s1123 + $0xd50] sm:$0xff]
        %v1574 = vld [vmem:[%s1123 + $0xd58] sm:$0xff]
        %v1575 = vld [vmem:[%s1123 + $0xd60] sm:$0xff]
        %v1576 = vld [vmem:[%s1123 + $0xd68] sm:$0xff]
        %v1577 = vld [vmem:[%s1123 + $0xd70] sm:$0xff]
        %v1578 = vld [vmem:[%s1123 + $0xd78] sm:$0xff]
        %v1579 = vld [vmem:[%s1123 + $0xd80] sm:$0xff]
        %v1580 = vld [vmem:[%s1123 + $0xd88] sm:$0xff]
        %v1581 = vld [vmem:[%s1123 + $0xd90] sm:$0xff]
        %v1582 = vld [vmem:[%s1123 + $0xd98] sm:$0xff]
        %v1583 = vld [vmem:[%s1123 + $0xda0] sm:$0xff]
        %v1584 = vld [vmem:[%s1123 + $0xda8] sm:$0xff]
        %v1585 = vld [vmem:[%s1123 + $0xdb0] sm:$0xff]
        %v1586 = vld [vmem:[%s1123 + $0xdb8] sm:$0xff]
        %v1587 = vld [vmem:[%s1123 + $0xdc0] sm:$0xff]
        %v1588 = vld [vmem:[%s1123 + $0xdc8] sm:$0xff]
        %v1589 = vld [vmem:[%s1123 + $0xdd0] sm:$0xff]
        %v1590 = vld [vmem:[%s1123 + $0xdd8] sm:$0xff]
        %v1591 = vld [vmem:[%s1123 + $0xde0] sm:$0xff]
        %v1592 = vld [vmem:[%s1123 + $0xde8] sm:$0xff]
        %v1593 = vld [vmem:[%s1123 + $0xdf0] sm:$0xff]
        %v1594 = vld [vmem:[%s1123 + $0xdf8] sm:$0xff]
        %v1595 = vld [vmem:[%s1123 + $0xe00] sm:$0xff]
        %v1596 = vld [vmem:[%s1123 + $0xe08] sm:$0xff]
        %v1597 = vld [vmem:[%s1123 + $0xe10] sm:$0xff]
        %v1598 = vld [vmem:[%s1123 + $0xe18] sm:$0xff]
        %v1599 = vld [vmem:[%s1123 + $0xe20] sm:$0xff]
        %v1600 = vld [vmem:[%s1123 + $0xe28] sm:$0xff]
        %v1601 = vld [vmem:[%s1123 + $0xe30] sm:$0xff]
        %v1602 = vld [vmem:[%s1123 + $0xe38] sm:$0xff]
        %v1603 = vld [vmem:[%s1123 + $0xe40] sm:$0xff]
        %v1604 = vld [vmem:[%s1123 + $0xe48] sm:$0xff]
        %v1605 = vld [vmem:[%s1123 + $0xe50] sm:$0xff]
        %v1606 = vld [vmem:[%s1123 + $0xe58] sm:$0xff]
        %v1607 = vld [vmem:[%s1123 + $0xe60] sm:$0xff]
        %v1608 = vld [vmem:[%s1123 + $0xe68] sm:$0xff]
        %v1609 = vld [vmem:[%s1123 + $0xe70] sm:$0xff]
        %v1610 = vld [vmem:[%s1123 + $0xe78] sm:$0xff]
        %v1611 = vld [vmem:[%s1123 + $0xe80] sm:$0xff]
        %v1612 = vld [vmem:[%s1123 + $0xe88] sm:$0xff]
        %v1613 = vld [vmem:[%s1123 + $0xe90] sm:$0xff]
        %v1614 = vld [vmem:[%s1123 + $0xe98] sm:$0xff]
        %v1615 = vld [vmem:[%s1123 + $0xea0] sm:$0xff]
        %v1616 = vld [vmem:[%s1123 + $0xea8] sm:$0xff]
        %v1617 = vld [vmem:[%s1123 + $0xeb0] sm:$0xff]
        %v1618 = vld [vmem:[%s1123 + $0xeb8] sm:$0xff]
        %v1619 = vld [vmem:[%s1123 + $0xec0] sm:$0xff]
        %v1620 = vld [vmem:[%s1123 + $0xec8] sm:$0xff]
        %v1621 = vld [vmem:[%s1123 + $0xed0] sm:$0xff]
        %v1622 = vld [vmem:[%s1123 + $0xed8] sm:$0xff]
        %v1623 = vld [vmem:[%s1123 + $0xee0] sm:$0xff]
        %v1624 = vld [vmem:[%s1123 + $0xee8] sm:$0xff]
        %v1625 = vld [vmem:[%s1123 + $0xef0] sm:$0xff]
        %v1626 = vld [vmem:[%s1123 + $0xef8] sm:$0xff]
        %v1627 = vld [vmem:[%s2] sm:$0xff]
        %v1628 = vld [vmem:[%s2 + $0x8] sm:$0xff]
        %1630 = vset.pattern.permute.xlu0 0
        %1631 = vperm.xlu0 %1630, %v1627
        %v1632 = vpop.permute.xlu0 %1631
        %1635 = vset.pattern.permute.xlu0 0
        %1636 = vperm.xlu0 %1635, %v1628
        %v1637 = vpop.permute.xlu0 %1636
        %1639 = vmatprep.subr.mxu0 %v1598
        %1640 = vmatpush1.msra.mxu0 %v1597
        %1641 = vmatprep.subr.mxu0 %v1568
        %1642 = vmatpush1.msra.mxu0 %v1567
        %1643 = vmatprep.subr.mxu0 %v1538
        %1644 = vmatpush1.msra.mxu0 %v1537
        %1645 = vmatprep.subr.mxu0 %v1508
        %1646 = vmatpush1.msra.mxu0 %v1507
        %1647 = vmatprep.subr.mxu0 %v1478
        %1648 = vmatpush1.msra.mxu0 %v1477
        %1649 = vmatprep.subr.mxu0 %v1448
        %1650 = vmatpush1.msra.mxu0 %v1447
        %1651 = vmatprep.subr.mxu0 %v1418
        %1652 = vmatpush1.msra.mxu0 %v1417
        %1653 = vmatprep.subr.mxu0 %v1388
        %1654 = vmatpush1.msra.mxu0 %v1387
        %1655 = vmatprep.subr.mxu0 %v1358
        %1656 = vmatpush1.msra.mxu0 %v1357
        %1657 = vmatprep.subr.mxu0 %v1328
        %1658 = vmatpush1.msra.mxu0 %v1327
        %1659 = vmatprep.subr.mxu0 %v1298
        %1660 = vmatpush1.msra.mxu0 %v1297
        %1661 = vmatprep.subr.mxu0 %v1268
        %1662 = vmatpush1.msra.mxu0 %v1267
        %1663 = vmatprep.subr.mxu0 %v1238
        %1664 = vmatpush1.msra.mxu0 %v1237
        %1665 = vmatprep.subr.mxu0 %v1208
        %1666 = vmatpush1.msra.mxu0 %v1207
        %1667 = vmatprep.subr.mxu0 %v1178
        %1668 = vmatpush1.msra.mxu0 %v1177
        %1669 = vmatprep.subr.mxu0 %v1148
        %1670 = vmatpush1.msra.mxu0 %v1147
        %1671 = vmatprep.subr.mxu0 0.0
        %1672 = vmatpush2.msra.mxu0 0.0
        %1673 = vmatprep.subr.mxu0 0.0
        %1674 = vmatpush2.msra.mxu0 0.0
        %1675 = vmatprep.subr.mxu0 0.0
        %1676 = vmatpush2.msra.mxu0 0.0
        %1677 = vmatprep.subr.mxu0 0.0
        %1678 = vmatpush2.msra.mxu0 0.0
        %1679 = vmatprep.subr.mxu0 0.0
        %1680 = vmatpush2.msra.mxu0 0.0
        %1681 = vmatprep.subr.mxu0 0.0
        %1682 = vmatpush2.msra.mxu0 0.0
        %1683 = vmatprep.subr.mxu0 0.0
        %1684 = vmatpush2.msra.mxu0 0.0
        %1685 = vmatprep.subr.mxu0 0.0
        %1686 = vmatpush2.msra.mxu0 0.0
        %1687 = vmatprep.subr.mxu0 0.0
        %1688 = vmatpush2.msra.mxu0 0.0
        %1689 = vmatprep.subr.mxu0 0.0
        %1690 = vmatpush2.msra.mxu0 0.0
        %1691 = vmatprep.subr.mxu0 0.0
        %1692 = vmatpush2.msra.mxu0 0.0
        %1693 = vmatprep.subr.mxu0 0.0
        %1694 = vmatpush2.msra.mxu0 0.0
        %1695 = vmatprep.subr.mxu0 0.0
        %1696 = vmatpush2.msra.mxu0 0.0
        %1697 = vmatprep.subr.mxu0 0.0
        %1698 = vmatpush2.msra.mxu0 0.0
        %1699 = vmatprep.subr.mxu0 0.0
        %1700 = vmatpush2.msra.mxu0 0.0
        %1701 = vmatprep.subr.mxu0 0.0
        %1702 = vmatpush2.msra.mxu0 0.0
        %1703 = vmatprep.mubr.f32.mxu0 0.0
        %1704 = vmatmul.mubr.f32.gmra.mxu0 %v1145
        %v1705 = vpop.f32.mrf.mxu0
        %v1706 = vadd.f32 %v1632, %v1705
        %v1707 = vpop.f32.mrf.mxu0
        %v1708 = vadd.f32 %v1632, %v1707
        %1709 = vmatprep.mubr.f32.mxu0 0.0
        %1710 = vmatmul.mubr.f32.gmra.mxu0 %v1146
        %v1711 = vpop.f32.mrf.mxu0
        %v1712 = vadd.f32 %v1637, %v1711
        %v1713 = vpop.f32.mrf.mxu0
        %v1714 = vadd.f32 %v1637, %v1713
        %1715 = vdwg.mxu0
        %1716 = vmatprep.subr.mxu0 %v1600
        %1717 = vmatpush1.msra.mxu0 %v1599
        %1718 = vmatprep.subr.mxu0 %v1570
        %1719 = vmatpush1.msra.mxu0 %v1569
        %1720 = vmatprep.subr.mxu0 %v1540
        %1721 = vmatpush1.msra.mxu0 %v1539
        %1722 = vmatprep.subr.mxu0 %v1510
        %1723 = vmatpush1.msra.mxu0 %v1509
        %1724 = vmatprep.subr.mxu0 %v1480
        %1725 = vmatpush1.msra.mxu0 %v1479
        %1726 = vmatprep.subr.mxu0 %v1450
        %1727 = vmatpush1.msra.mxu0 %v1449
        %1728 = vmatprep.subr.mxu0 %v1420
        %1729 = vmatpush1.msra.mxu0 %v1419
        %1730 = vmatprep.subr.mxu0 %v1390
        %1731 = vmatpush1.msra.mxu0 %v1389
        %1732 = vmatprep.subr.mxu0 %v1360
        %1733 = vmatpush1.msra.mxu0 %v1359
        %1734 = vmatprep.subr.mxu0 %v1330
        %1735 = vmatpush1.msra.mxu0 %v1329
        %1736 = vmatprep.subr.mxu0 %v1300
        %1737 = vmatpush1.msra.mxu0 %v1299
        %1738 = vmatprep.subr.mxu0 %v1270
        %1739 = vmatpush1.msra.mxu0 %v1269
        %1740 = vmatprep.subr.mxu0 %v1240
        %1741 = vmatpush1.msra.mxu0 %v1239
        %1742 = vmatprep.subr.mxu0 %v1210
        %1743 = vmatpush1.msra.mxu0 %v1209
        %1744 = vmatprep.subr.mxu0 %v1180
        %1745 = vmatpush1.msra.mxu0 %v1179
        %1746 = vmatprep.subr.mxu0 %v1150
        %1747 = vmatpush1.msra.mxu0 %v1149
        %1748 = vmatprep.subr.mxu0 0.0
        %1749 = vmatpush2.msra.mxu0 0.0
        %1750 = vmatprep.subr.mxu0 0.0
        %1751 = vmatpush2.msra.mxu0 0.0
        %1752 = vmatprep.subr.mxu0 0.0
        %1753 = vmatpush2.msra.mxu0 0.0
        %1754 = vmatprep.subr.mxu0 0.0
        %1755 = vmatpush2.msra.mxu0 0.0
        %1756 = vmatprep.subr.mxu0 0.0
        %1757 = vmatpush2.msra.mxu0 0.0
        %1758 = vmatprep.subr.mxu0 0.0
        %1759 = vmatpush2.msra.mxu0 0.0
        %1760 = vmatprep.subr.mxu0 0.0
        %1761 = vmatpush2.msra.mxu0 0.0
        %1762 = vmatprep.subr.mxu0 0.0
        %1763 = vmatpush2.msra.mxu0 0.0
        %1764 = vmatprep.subr.mxu0 0.0
        %1765 = vmatpush2.msra.mxu0 0.0
        %1766 = vmatprep.subr.mxu0 0.0
        %1767 = vmatpush2.msra.mxu0 0.0
        %1768 = vmatprep.subr.mxu0 0.0
        %1769 = vmatpush2.msra.mxu0 0.0
        %1770 = vmatprep.subr.mxu0 0.0
        %1771 = vmatpush2.msra.mxu0 0.0
        %1772 = vmatprep.subr.mxu0 0.0
        %1773 = vmatpush2.msra.mxu0 0.0
        %1774 = vmatprep.subr.mxu0 0.0
        %1775 = vmatpush2.msra.mxu0 0.0
        %1776 = vmatprep.subr.mxu0 0.0
        %1777 = vmatpush2.msra.mxu0 0.0
        %1778 = vmatprep.subr.mxu0 0.0
        %1779 = vmatpush2.msra.mxu0 0.0
        %1780 = vmatprep.mubr.f32.mxu0 0.0
        %1781 = vmatmul.mubr.f32.gmra.mxu0 %v1145
        %v1782 = vpop.f32.mrf.mxu0
        %v1783 = vadd.f32 %v1632, %v1782
        %v1784 = vpop.f32.mrf.mxu0
        %v1785 = vadd.f32 %v1632, %v1784
        %1786 = vmatprep.mubr.f32.mxu0 0.0
        %1787 = vmatmul.mubr.f32.gmra.mxu0 %v1146
        %v1788 = vpop.f32.mrf.mxu0
        %v1789 = vadd.f32 %v1637, %v1788
        %v1790 = vpop.f32.mrf.mxu0
        %v1791 = vadd.f32 %v1637, %v1790
        %1792 = vdwg.mxu0
        %1793 = vmatprep.subr.mxu0 %v1602
        %1794 = vmatpush1.msra.mxu0 %v1601
        %1795 = vmatprep.subr.mxu0 %v1572
        %1796 = vmatpush1.msra.mxu0 %v1571
        %1797 = vmatprep.subr.mxu0 %v1542
        %1798 = vmatpush1.msra.mxu0 %v1541
        %1799 = vmatprep.subr.mxu0 %v1512
        %1800 = vmatpush1.msra.mxu0 %v1511
        %1801 = vmatprep.subr.mxu0 %v1482
        %1802 = vmatpush1.msra.mxu0 %v1481
        %1803 = vmatprep.subr.mxu0 %v1452
        %1804 = vmatpush1.msra.mxu0 %v1451
        %1805 = vmatprep.subr.mxu0 %v1422
        %1806 = vmatpush1.msra.mxu0 %v1421
        %1807 = vmatprep.subr.mxu0 %v1392
        %1808 = vmatpush1.msra.mxu0 %v1391
        %1809 = vmatprep.subr.mxu0 %v1362
        %1810 = vmatpush1.msra.mxu0 %v1361
        %1811 = vmatprep.subr.mxu0 %v1332
        %1812 = vmatpush1.msra.mxu0 %v1331
        %1813 = vmatprep.subr.mxu0 %v1302
        %1814 = vmatpush1.msra.mxu0 %v1301
        %1815 = vmatprep.subr.mxu0 %v1272
        %1816 = vmatpush1.msra.mxu0 %v1271
        %1817 = vmatprep.subr.mxu0 %v1242
        %1818 = vmatpush1.msra.mxu0 %v1241
        %1819 = vmatprep.subr.mxu0 %v1212
        %1820 = vmatpush1.msra.mxu0 %v1211
        %1821 = vmatprep.subr.mxu0 %v1182
        %1822 = vmatpush1.msra.mxu0 %v1181
        %1823 = vmatprep.subr.mxu0 %v1152
        %1824 = vmatpush1.msra.mxu0 %v1151
        %1825 = vmatprep.subr.mxu0 0.0
        %1826 = vmatpush2.msra.mxu0 0.0
        %1827 = vmatprep.subr.mxu0 0.0
        %1828 = vmatpush2.msra.mxu0 0.0
        %1829 = vmatprep.subr.mxu0 0.0
        %1830 = vmatpush2.msra.mxu0 0.0
        %1831 = vmatprep.subr.mxu0 0.0
        %1832 = vmatpush2.msra.mxu0 0.0
        %1833 = vmatprep.subr.mxu0 0.0
        %1834 = vmatpush2.msra.mxu0 0.0
        %1835 = vmatprep.subr.mxu0 0.0
        %1836 = vmatpush2.msra.mxu0 0.0
        %1837 = vmatprep.subr.mxu0 0.0
        %1838 = vmatpush2.msra.mxu0 0.0
        %1839 = vmatprep.subr.mxu0 0.0
        %1840 = vmatpush2.msra.mxu0 0.0
        %1841 = vmatprep.subr.mxu0 0.0
        %1842 = vmatpush2.msra.mxu0 0.0
        %1843 = vmatprep.subr.mxu0 0.0
        %1844 = vmatpush2.msra.mxu0 0.0
        %1845 = vmatprep.subr.mxu0 0.0
        %1846 = vmatpush2.msra.mxu0 0.0
        %1847 = vmatprep.subr.mxu0 0.0
        %1848 = vmatpush2.msra.mxu0 0.0
        %1849 = vmatprep.subr.mxu0 0.0
        %1850 = vmatpush2.msra.mxu0 0.0
        %1851 = vmatprep.subr.mxu0 0.0
        %1852 = vmatpush2.msra.mxu0 0.0
        %1853 = vmatprep.subr.mxu0 0.0
        %1854 = vmatpush2.msra.mxu0 0.0
        %1855 = vmatprep.subr.mxu0 0.0
        %1856 = vmatpush2.msra.mxu0 0.0
        %1857 = vmatprep.mubr.f32.mxu0 0.0
        %1858 = vmatmul.mubr.f32.gmra.mxu0 %v1145
        %v1859 = vpop.f32.mrf.mxu0
        %v1860 = vadd.f32 %v1632, %v1859
        %v1861 = vpop.f32.mrf.mxu0
        %v1862 = vadd.f32 %v1632, %v1861
        %1863 = vmatprep.mubr.f32.mxu0 0.0
        %1864 = vmatmul.mubr.f32.gmra.mxu0 %v1146
        %v1865 = vpop.f32.mrf.mxu0
        %v1866 = vadd.f32 %v1637, %v1865
        %v1867 = vpop.f32.mrf.mxu0
        %v1868 = vadd.f32 %v1637, %v1867
        %1869 = vdwg.mxu0
        %1870 = vmatprep.subr.mxu0 %v1604
        %1871 = vmatpush1.msra.mxu0 %v1603
        %1872 = vmatprep.subr.mxu0 %v1574
        %1873 = vmatpush1.msra.mxu0 %v1573
        %1874 = vmatprep.subr.mxu0 %v1544
        %1875 = vmatpush1.msra.mxu0 %v1543
        %1876 = vmatprep.subr.mxu0 %v1514
        %1877 = vmatpush1.msra.mxu0 %v1513
        %1878 = vmatprep.subr.mxu0 %v1484
        %1879 = vmatpush1.msra.mxu0 %v1483
        %1880 = vmatprep.subr.mxu0 %v1454
        %1881 = vmatpush1.msra.mxu0 %v1453
        %1882 = vmatprep.subr.mxu0 %v1424
        %1883 = vmatpush1.msra.mxu0 %v1423
        %1884 = vmatprep.subr.mxu0 %v1394
        %1885 = vmatpush1.msra.mxu0 %v1393
        %1886 = vmatprep.subr.mxu0 %v1364
        %1887 = vmatpush1.msra.mxu0 %v1363
        %1888 = vmatprep.subr.mxu0 %v1334
        %1889 = vmatpush1.msra.mxu0 %v1333
        %1890 = vmatprep.subr.mxu0 %v1304
        %1891 = vmatpush1.msra.mxu0 %v1303
        %1892 = vmatprep.subr.mxu0 %v1274
        %1893 = vmatpush1.msra.mxu0 %v1273
        %1894 = vmatprep.subr.mxu0 %v1244
        %1895 = vmatpush1.msra.mxu0 %v1243
        %1896 = vmatprep.subr.mxu0 %v1214
        %1897 = vmatpush1.msra.mxu0 %v1213
        %1898 = vmatprep.subr.mxu0 %v1184
        %1899 = vmatpush1.msra.mxu0 %v1183
        %1900 = vmatprep.subr.mxu0 %v1154
        %1901 = vmatpush1.msra.mxu0 %v1153
        %1902 = vmatprep.subr.mxu0 0.0
        %1903 = vmatpush2.msra.mxu0 0.0
        %1904 = vmatprep.subr.mxu0 0.0
        %1905 = vmatpush2.msra.mxu0 0.0
        %1906 = vmatprep.subr.mxu0 0.0
        %1907 = vmatpush2.msra.mxu0 0.0
        %1908 = vmatprep.subr.mxu0 0.0
        %1909 = vmatpush2.msra.mxu0 0.0
        %1910 = vmatprep.subr.mxu0 0.0
        %1911 = vmatpush2.msra.mxu0 0.0
        %1912 = vmatprep.subr.mxu0 0.0
        %1913 = vmatpush2.msra.mxu0 0.0
        %1914 = vmatprep.subr.mxu0 0.0
        %1915 = vmatpush2.msra.mxu0 0.0
        %1916 = vmatprep.subr.mxu0 0.0
        %1917 = vmatpush2.msra.mxu0 0.0
        %1918 = vmatprep.subr.mxu0 0.0
        %1919 = vmatpush2.msra.mxu0 0.0
        %1920 = vmatprep.subr.mxu0 0.0
        %1921 = vmatpush2.msra.mxu0 0.0
        %1922 = vmatprep.subr.mxu0 0.0
        %1923 = vmatpush2.msra.mxu0 0.0
        %1924 = vmatprep.subr.mxu0 0.0
        %1925 = vmatpush2.msra.mxu0 0.0
        %1926 = vmatprep.subr.mxu0 0.0
        %1927 = vmatpush2.msra.mxu0 0.0
        %1928 = vmatprep.subr.mxu0 0.0
        %1929 = vmatpush2.msra.mxu0 0.0
        %1930 = vmatprep.subr.mxu0 0.0
        %1931 = vmatpush2.msra.mxu0 0.0
        %1932 = vmatprep.subr.mxu0 0.0
        %1933 = vmatpush2.msra.mxu0 0.0
        %1934 = vmatprep.mubr.f32.mxu0 0.0
        %1935 = vmatmul.mubr.f32.gmra.mxu0 %v1145
        %v1936 = vpop.f32.mrf.mxu0
        %v1937 = vadd.f32 %v1632, %v1936
        %v1938 = vpop.f32.mrf.mxu0
        %v1939 = vadd.f32 %v1632, %v1938
        %1940 = vmatprep.mubr.f32.mxu0 0.0
        %1941 = vmatmul.mubr.f32.gmra.mxu0 %v1146
        %v1942 = vpop.f32.mrf.mxu0
        %v1943 = vadd.f32 %v1637, %v1942
        %v1944 = vpop.f32.mrf.mxu0
        %v1945 = vadd.f32 %v1637, %v1944
        %1946 = vdwg.mxu0
        %1947 = vmatprep.subr.mxu0 %v1606
        %1948 = vmatpush1.msra.mxu0 %v1605
        %1949 = vmatprep.subr.mxu0 %v1576
        %1950 = vmatpush1.msra.mxu0 %v1575
        %1951 = vmatprep.subr.mxu0 %v1546
        %1952 = vmatpush1.msra.mxu0 %v1545
        %1953 = vmatprep.subr.mxu0 %v1516
        %1954 = vmatpush1.msra.mxu0 %v1515
        %1955 = vmatprep.subr.mxu0 %v1486
        %1956 = vmatpush1.msra.mxu0 %v1485
        %1957 = vmatprep.subr.mxu0 %v1456
        %1958 = vmatpush1.msra.mxu0 %v1455
        %1959 = vmatprep.subr.mxu0 %v1426
        %1960 = vmatpush1.msra.mxu0 %v1425
        %1961 = vmatprep.subr.mxu0 %v1396
        %1962 = vmatpush1.msra.mxu0 %v1395
        %1963 = vmatprep.subr.mxu0 %v1366
        %1964 = vmatpush1.msra.mxu0 %v1365
        %1965 = vmatprep.subr.mxu0 %v1336
        %1966 = vmatpush1.msra.mxu0 %v1335
        %1967 = vmatprep.subr.mxu0 %v1306
        %1968 = vmatpush1.msra.mxu0 %v1305
        %1969 = vmatprep.subr.mxu0 %v1276
        %1970 = vmatpush1.msra.mxu0 %v1275
        %1971 = vmatprep.subr.mxu0 %v1246
        %1972 = vmatpush1.msra.mxu0 %v1245
        %1973 = vmatprep.subr.mxu0 %v1216
        %1974 = vmatpush1.msra.mxu0 %v1215
        %1975 = vmatprep.subr.mxu0 %v1186
        %1976 = vmatpush1.msra.mxu0 %v1185
        %1977 = vmatprep.subr.mxu0 %v1156
        %1978 = vmatpush1.msra.mxu0 %v1155
        %1979 = vmatprep.subr.mxu0 0.0
        %1980 = vmatpush2.msra.mxu0 0.0
        %1981 = vmatprep.subr.mxu0 0.0
        %1982 = vmatpush2.msra.mxu0 0.0
        %1983 = vmatprep.subr.mxu0 0.0
        %1984 = vmatpush2.msra.mxu0 0.0
        %1985 = vmatprep.subr.mxu0 0.0
        %1986 = vmatpush2.msra.mxu0 0.0
        %1987 = vmatprep.subr.mxu0 0.0
        %1988 = vmatpush2.msra.mxu0 0.0
        %1989 = vmatprep.subr.mxu0 0.0
        %1990 = vmatpush2.msra.mxu0 0.0
        %1991 = vmatprep.subr.mxu0 0.0
        %1992 = vmatpush2.msra.mxu0 0.0
        %1993 = vmatprep.subr.mxu0 0.0
        %1994 = vmatpush2.msra.mxu0 0.0
        %1995 = vmatprep.subr.mxu0 0.0
        %1996 = vmatpush2.msra.mxu0 0.0
        %1997 = vmatprep.subr.mxu0 0.0
        %1998 = vmatpush2.msra.mxu0 0.0
        %1999 = vmatprep.subr.mxu0 0.0
        %2000 = vmatpush2.msra.mxu0 0.0
        %2001 = vmatprep.subr.mxu0 0.0
        %2002 = vmatpush2.msra.mxu0 0.0
        %2003 = vmatprep.subr.mxu0 0.0
        %2004 = vmatpush2.msra.mxu0 0.0
        %2005 = vmatprep.subr.mxu0 0.0
        %2006 = vmatpush2.msra.mxu0 0.0
        %2007 = vmatprep.subr.mxu0 0.0
        %2008 = vmatpush2.msra.mxu0 0.0
        %2009 = vmatprep.subr.mxu0 0.0
        %2010 = vmatpush2.msra.mxu0 0.0
        %2011 = vmatprep.mubr.f32.mxu0 0.0
        %2012 = vmatmul.mubr.f32.gmra.mxu0 %v1145
        %v2013 = vpop.f32.mrf.mxu0
        %v2014 = vadd.f32 %v1632, %v2013
        %v2015 = vpop.f32.mrf.mxu0
        %v2016 = vadd.f32 %v1632, %v2015
        %2017 = vmatprep.mubr.f32.mxu0 0.0
        %2018 = vmatmul.mubr.f32.gmra.mxu0 %v1146
        %v2019 = vpop.f32.mrf.mxu0
        %v2020 = vadd.f32 %v1637, %v2019
        %v2021 = vpop.f32.mrf.mxu0
        %v2022 = vadd.f32 %v1637, %v2021
        %2023 = vdwg.mxu0
        %2024 = vmatprep.subr.mxu0 %v1608
        %2025 = vmatpush1.msra.mxu0 %v1607
        %2026 = vmatprep.subr.mxu0 %v1578
        %2027 = vmatpush1.msra.mxu0 %v1577
        %2028 = vmatprep.subr.mxu0 %v1548
        %2029 = vmatpush1.msra.mxu0 %v1547
        %2030 = vmatprep.subr.mxu0 %v1518
        %2031 = vmatpush1.msra.mxu0 %v1517
        %2032 = vmatprep.subr.mxu0 %v1488
        %2033 = vmatpush1.msra.mxu0 %v1487
        %2034 = vmatprep.subr.mxu0 %v1458
        %2035 = vmatpush1.msra.mxu0 %v1457
        %2036 = vmatprep.subr.mxu0 %v1428
        %2037 = vmatpush1.msra.mxu0 %v1427
        %2038 = vmatprep.subr.mxu0 %v1398
        %2039 = vmatpush1.msra.mxu0 %v1397
        %2040 = vmatprep.subr.mxu0 %v1368
        %2041 = vmatpush1.msra.mxu0 %v1367
        %2042 = vmatprep.subr.mxu0 %v1338
        %2043 = vmatpush1.msra.mxu0 %v1337
        %2044 = vmatprep.subr.mxu0 %v1308
        %2045 = vmatpush1.msra.mxu0 %v1307
        %2046 = vmatprep.subr.mxu0 %v1278
        %2047 = vmatpush1.msra.mxu0 %v1277
        %2048 = vmatprep.subr.mxu0 %v1248
        %2049 = vmatpush1.msra.mxu0 %v1247
        %2050 = vmatprep.subr.mxu0 %v1218
        %2051 = vmatpush1.msra.mxu0 %v1217
        %2052 = vmatprep.subr.mxu0 %v1188
        %2053 = vmatpush1.msra.mxu0 %v1187
        %2054 = vmatprep.subr.mxu0 %v1158
        %2055 = vmatpush1.msra.mxu0 %v1157
        %2056 = vmatprep.subr.mxu0 0.0
        %2057 = vmatpush2.msra.mxu0 0.0
        %2058 = vmatprep.subr.mxu0 0.0
        %2059 = vmatpush2.msra.mxu0 0.0
        %2060 = vmatprep.subr.mxu0 0.0
        %2061 = vmatpush2.msra.mxu0 0.0
        %2062 = vmatprep.subr.mxu0 0.0
        %2063 = vmatpush2.msra.mxu0 0.0
        %2064 = vmatprep.subr.mxu0 0.0
        %2065 = vmatpush2.msra.mxu0 0.0
        %2066 = vmatprep.subr.mxu0 0.0
        %2067 = vmatpush2.msra.mxu0 0.0
        %2068 = vmatprep.subr.mxu0 0.0
        %2069 = vmatpush2.msra.mxu0 0.0
        %2070 = vmatprep.subr.mxu0 0.0
        %2071 = vmatpush2.msra.mxu0 0.0
        %2072 = vmatprep.subr.mxu0 0.0
        %2073 = vmatpush2.msra.mxu0 0.0
        %2074 = vmatprep.subr.mxu0 0.0
        %2075 = vmatpush2.msra.mxu0 0.0
        %2076 = vmatprep.subr.mxu0 0.0
        %2077 = vmatpush2.msra.mxu0 0.0
        %2078 = vmatprep.subr.mxu0 0.0
        %2079 = vmatpush2.msra.mxu0 0.0
        %2080 = vmatprep.subr.mxu0 0.0
        %2081 = vmatpush2.msra.mxu0 0.0
        %2082 = vmatprep.subr.mxu0 0.0
        %2083 = vmatpush2.msra.mxu0 0.0
        %2084 = vmatprep.subr.mxu0 0.0
        %2085 = vmatpush2.msra.mxu0 0.0
        %2086 = vmatprep.subr.mxu0 0.0
        %2087 = vmatpush2.msra.mxu0 0.0
        %2088 = vmatprep.mubr.f32.mxu0 0.0
        %2089 = vmatmul.mubr.f32.gmra.mxu0 %v1145
        %v2090 = vpop.f32.mrf.mxu0
        %v2091 = vadd.f32 %v1632, %v2090
        %v2092 = vpop.f32.mrf.mxu0
        %v2093 = vadd.f32 %v1632, %v2092
        %2094 = vmatprep.mubr.f32.mxu0 0.0
        %2095 = vmatmul.mubr.f32.gmra.mxu0 %v1146
        %v2096 = vpop.f32.mrf.mxu0
        %v2097 = vadd.f32 %v1637, %v2096
        %v2098 = vpop.f32.mrf.mxu0
        %v2099 = vadd.f32 %v1637, %v2098
        %2100 = vdwg.mxu0
        %2101 = vmatprep.subr.mxu0 %v1610
        %2102 = vmatpush1.msra.mxu0 %v1609
        %2103 = vmatprep.subr.mxu0 %v1580
        %2104 = vmatpush1.msra.mxu0 %v1579
        %2105 = vmatprep.subr.mxu0 %v1550
        %2106 = vmatpush1.msra.mxu0 %v1549
        %2107 = vmatprep.subr.mxu0 %v1520
        %2108 = vmatpush1.msra.mxu0 %v1519
        %2109 = vmatprep.subr.mxu0 %v1490
        %2110 = vmatpush1.msra.mxu0 %v1489
        %2111 = vmatprep.subr.mxu0 %v1460
        %2112 = vmatpush1.msra.mxu0 %v1459
        %2113 = vmatprep.subr.mxu0 %v1430
        %2114 = vmatpush1.msra.mxu0 %v1429
        %2115 = vmatprep.subr.mxu0 %v1400
        %2116 = vmatpush1.msra.mxu0 %v1399
        %2117 = vmatprep.subr.mxu0 %v1370
        %2118 = vmatpush1.msra.mxu0 %v1369
        %2119 = vmatprep.subr.mxu0 %v1340
        %2120 = vmatpush1.msra.mxu0 %v1339
        %2121 = vmatprep.subr.mxu0 %v1310
        %2122 = vmatpush1.msra.mxu0 %v1309
        %2123 = vmatprep.subr.mxu0 %v1280
        %2124 = vmatpush1.msra.mxu0 %v1279
        %2125 = vmatprep.subr.mxu0 %v1250
        %2126 = vmatpush1.msra.mxu0 %v1249
        %2127 = vmatprep.subr.mxu0 %v1220
        %2128 = vmatpush1.msra.mxu0 %v1219
        %2129 = vmatprep.subr.mxu0 %v1190
        %2130 = vmatpush1.msra.mxu0 %v1189
        %2131 = vmatprep.subr.mxu0 %v1160
        %2132 = vmatpush1.msra.mxu0 %v1159
        %2133 = vmatprep.subr.mxu0 0.0
        %2134 = vmatpush2.msra.mxu0 0.0
        %2135 = vmatprep.subr.mxu0 0.0
        %2136 = vmatpush2.msra.mxu0 0.0
        %2137 = vmatprep.subr.mxu0 0.0
        %2138 = vmatpush2.msra.mxu0 0.0
        %2139 = vmatprep.subr.mxu0 0.0
        %2140 = vmatpush2.msra.mxu0 0.0
        %2141 = vmatprep.subr.mxu0 0.0
        %2142 = vmatpush2.msra.mxu0 0.0
        %2143 = vmatprep.subr.mxu0 0.0
        %2144 = vmatpush2.msra.mxu0 0.0
        %2145 = vmatprep.subr.mxu0 0.0
        %2146 = vmatpush2.msra.mxu0 0.0
        %2147 = vmatprep.subr.mxu0 0.0
        %2148 = vmatpush2.msra.mxu0 0.0
        %2149 = vmatprep.subr.mxu0 0.0
        %2150 = vmatpush2.msra.mxu0 0.0
        %2151 = vmatprep.subr.mxu0 0.0
        %2152 = vmatpush2.msra.mxu0 0.0
        %2153 = vmatprep.subr.mxu0 0.0
        %2154 = vmatpush2.msra.mxu0 0.0
        %2155 = vmatprep.subr.mxu0 0.0
        %2156 = vmatpush2.msra.mxu0 0.0
        %2157 = vmatprep.subr.mxu0 0.0
        %2158 = vmatpush2.msra.mxu0 0.0
        %2159 = vmatprep.subr.mxu0 0.0
        %2160 = vmatpush2.msra.mxu0 0.0
        %2161 = vmatprep.subr.mxu0 0.0
        %2162 = vmatpush2.msra.mxu0 0.0
        %2163 = vmatprep.subr.mxu0 0.0
        %2164 = vmatpush2.msra.mxu0 0.0
        %2165 = vmatprep.mubr.f32.mxu0 0.0
        %2166 = vmatmul.mubr.f32.gmra.mxu0 %v1145
        %v2167 = vpop.f32.mrf.mxu0
        %v2168 = vadd.f32 %v1632, %v2167
        %v2169 = vpop.f32.mrf.mxu0
        %v2170 = vadd.f32 %v1632, %v2169
        %2171 = vmatprep.mubr.f32.mxu0 0.0
        %2172 = vmatmul.mubr.f32.gmra.mxu0 %v1146
        %v2173 = vpop.f32.mrf.mxu0
        %v2174 = vadd.f32 %v1637, %v2173
        %v2175 = vpop.f32.mrf.mxu0
        %v2176 = vadd.f32 %v1637, %v2175
        %2177 = vdwg.mxu0
        %2178 = vmatprep.subr.mxu0 %v1612
        %2179 = vmatpush1.msra.mxu0 %v1611
        %2180 = vmatprep.subr.mxu0 %v1582
        %2181 = vmatpush1.msra.mxu0 %v1581
        %2182 = vmatprep.subr.mxu0 %v1552
        %2183 = vmatpush1.msra.mxu0 %v1551
        %2184 = vmatprep.subr.mxu0 %v1522
        %2185 = vmatpush1.msra.mxu0 %v1521
        %2186 = vmatprep.subr.mxu0 %v1492
        %2187 = vmatpush1.msra.mxu0 %v1491
        %2188 = vmatprep.subr.mxu0 %v1462
        %2189 = vmatpush1.msra.mxu0 %v1461
        %2190 = vmatprep.subr.mxu0 %v1432
        %2191 = vmatpush1.msra.mxu0 %v1431
        %2192 = vmatprep.subr.mxu0 %v1402
        %2193 = vmatpush1.msra.mxu0 %v1401
        %2194 = vmatprep.subr.mxu0 %v1372
        %2195 = vmatpush1.msra.mxu0 %v1371
        %2196 = vmatprep.subr.mxu0 %v1342
        %2197 = vmatpush1.msra.mxu0 %v1341
        %2198 = vmatprep.subr.mxu0 %v1312
        %2199 = vmatpush1.msra.mxu0 %v1311
        %2200 = vmatprep.subr.mxu0 %v1282
        %2201 = vmatpush1.msra.mxu0 %v1281
        %2202 = vmatprep.subr.mxu0 %v1252
        %2203 = vmatpush1.msra.mxu0 %v1251
        %2204 = vmatprep.subr.mxu0 %v1222
        %2205 = vmatpush1.msra.mxu0 %v1221
        %2206 = vmatprep.subr.mxu0 %v1192
        %2207 = vmatpush1.msra.mxu0 %v1191
        %2208 = vmatprep.subr.mxu0 %v1162
        %2209 = vmatpush1.msra.mxu0 %v1161
        %2210 = vmatprep.subr.mxu0 0.0
        %2211 = vmatpush2.msra.mxu0 0.0
        %2212 = vmatprep.subr.mxu0 0.0
        %2213 = vmatpush2.msra.mxu0 0.0
        %2214 = vmatprep.subr.mxu0 0.0
        %2215 = vmatpush2.msra.mxu0 0.0
        %2216 = vmatprep.subr.mxu0 0.0
        %2217 = vmatpush2.msra.mxu0 0.0
        %2218 = vmatprep.subr.mxu0 0.0
        %2219 = vmatpush2.msra.mxu0 0.0
        %2220 = vmatprep.subr.mxu0 0.0
        %2221 = vmatpush2.msra.mxu0 0.0
        %2222 = vmatprep.subr.mxu0 0.0
        %2223 = vmatpush2.msra.mxu0 0.0
        %2224 = vmatprep.subr.mxu0 0.0
        %2225 = vmatpush2.msra.mxu0 0.0
        %2226 = vmatprep.subr.mxu0 0.0
        %2227 = vmatpush2.msra.mxu0 0.0
        %2228 = vmatprep.subr.mxu0 0.0
        %2229 = vmatpush2.msra.mxu0 0.0
        %2230 = vmatprep.subr.mxu0 0.0
        %2231 = vmatpush2.msra.mxu0 0.0
        %2232 = vmatprep.subr.mxu0 0.0
        %2233 = vmatpush2.msra.mxu0 0.0
        %2234 = vmatprep.subr.mxu0 0.0
        %2235 = vmatpush2.msra.mxu0 0.0
        %2236 = vmatprep.subr.mxu0 0.0
        %2237 = vmatpush2.msra.mxu0 0.0
        %2238 = vmatprep.subr.mxu0 0.0
        %2239 = vmatpush2.msra.mxu0 0.0
        %2240 = vmatprep.subr.mxu0 0.0
        %2241 = vmatpush2.msra.mxu0 0.0
        %2242 = vmatprep.mubr.f32.mxu0 0.0
        %2243 = vmatmul.mubr.f32.gmra.mxu0 %v1145
        %v2244 = vpop.f32.mrf.mxu0
        %v2245 = vadd.f32 %v1632, %v2244
        %v2246 = vpop.f32.mrf.mxu0
        %v2247 = vadd.f32 %v1632, %v2246
        %2248 = vmatprep.mubr.f32.mxu0 0.0
        %2249 = vmatmul.mubr.f32.gmra.mxu0 %v1146
        %v2250 = vpop.f32.mrf.mxu0
        %v2251 = vadd.f32 %v1637, %v2250
        %v2252 = vpop.f32.mrf.mxu0
        %v2253 = vadd.f32 %v1637, %v2252
        %2254 = vdwg.mxu0
        %2255 = vmatprep.subr.mxu0 %v1614
        %2256 = vmatpush1.msra.mxu0 %v1613
        %2257 = vmatprep.subr.mxu0 %v1584
        %2258 = vmatpush1.msra.mxu0 %v1583
        %2259 = vmatprep.subr.mxu0 %v1554
        %2260 = vmatpush1.msra.mxu0 %v1553
        %2261 = vmatprep.subr.mxu0 %v1524
        %2262 = vmatpush1.msra.mxu0 %v1523
        %2263 = vmatprep.subr.mxu0 %v1494
        %2264 = vmatpush1.msra.mxu0 %v1493
        %2265 = vmatprep.subr.mxu0 %v1464
        %2266 = vmatpush1.msra.mxu0 %v1463
        %2267 = vmatprep.subr.mxu0 %v1434
        %2268 = vmatpush1.msra.mxu0 %v1433
        %2269 = vmatprep.subr.mxu0 %v1404
        %2270 = vmatpush1.msra.mxu0 %v1403
        %2271 = vmatprep.subr.mxu0 %v1374
        %2272 = vmatpush1.msra.mxu0 %v1373
        %2273 = vmatprep.subr.mxu0 %v1344
        %2274 = vmatpush1.msra.mxu0 %v1343
        %2275 = vmatprep.subr.mxu0 %v1314
        %2276 = vmatpush1.msra.mxu0 %v1313
        %2277 = vmatprep.subr.mxu0 %v1284
        %2278 = vmatpush1.msra.mxu0 %v1283
        %2279 = vmatprep.subr.mxu0 %v1254
        %2280 = vmatpush1.msra.mxu0 %v1253
        %2281 = vmatprep.subr.mxu0 %v1224
        %2282 = vmatpush1.msra.mxu0 %v1223
        %2283 = vmatprep.subr.mxu0 %v1194
        %2284 = vmatpush1.msra.mxu0 %v1193
        %2285 = vmatprep.subr.mxu0 %v1164
        %2286 = vmatpush1.msra.mxu0 %v1163
        %2287 = vmatprep.subr.mxu0 0.0
        %2288 = vmatpush2.msra.mxu0 0.0
        %2289 = vmatprep.subr.mxu0 0.0
        %2290 = vmatpush2.msra.mxu0 0.0
        %2291 = vmatprep.subr.mxu0 0.0
        %2292 = vmatpush2.msra.mxu0 0.0
        %2293 = vmatprep.subr.mxu0 0.0
        %2294 = vmatpush2.msra.mxu0 0.0
        %2295 = vmatprep.subr.mxu0 0.0
        %2296 = vmatpush2.msra.mxu0 0.0
        %2297 = vmatprep.subr.mxu0 0.0
        %2298 = vmatpush2.msra.mxu0 0.0
        %2299 = vmatprep.subr.mxu0 0.0
        %2300 = vmatpush2.msra.mxu0 0.0
        %2301 = vmatprep.subr.mxu0 0.0
        %2302 = vmatpush2.msra.mxu0 0.0
        %2303 = vmatprep.subr.mxu0 0.0
        %2304 = vmatpush2.msra.mxu0 0.0
        %2305 = vmatprep.subr.mxu0 0.0
        %2306 = vmatpush2.msra.mxu0 0.0
        %2307 = vmatprep.subr.mxu0 0.0
        %2308 = vmatpush2.msra.mxu0 0.0
        %2309 = vmatprep.subr.mxu0 0.0
        %2310 = vmatpush2.msra.mxu0 0.0
        %2311 = vmatprep.subr.mxu0 0.0
        %2312 = vmatpush2.msra.mxu0 0.0
        %2313 = vmatprep.subr.mxu0 0.0
        %2314 = vmatpush2.msra.mxu0 0.0
        %2315 = vmatprep.subr.mxu0 0.0
        %2316 = vmatpush2.msra.mxu0 0.0
        %2317 = vmatprep.subr.mxu0 0.0
        %2318 = vmatpush2.msra.mxu0 0.0
        %2319 = vmatprep.mubr.f32.mxu0 0.0
        %2320 = vmatmul.mubr.f32.gmra.mxu0 %v1145
        %v2321 = vpop.f32.mrf.mxu0
        %v2322 = vadd.f32 %v1632, %v2321
        %v2323 = vpop.f32.mrf.mxu0
        %v2324 = vadd.f32 %v1632, %v2323
        %2325 = vmatprep.mubr.f32.mxu0 0.0
        %2326 = vmatmul.mubr.f32.gmra.mxu0 %v1146
        %v2327 = vpop.f32.mrf.mxu0
        %v2328 = vadd.f32 %v1637, %v2327
        %v2329 = vpop.f32.mrf.mxu0
        %v2330 = vadd.f32 %v1637, %v2329
        %2331 = vdwg.mxu0
        %2332 = vmatprep.subr.mxu0 %v1616
        %2333 = vmatpush1.msra.mxu0 %v1615
        %2334 = vmatprep.subr.mxu0 %v1586
        %2335 = vmatpush1.msra.mxu0 %v1585
        %2336 = vmatprep.subr.mxu0 %v1556
        %2337 = vmatpush1.msra.mxu0 %v1555
        %2338 = vmatprep.subr.mxu0 %v1526
        %2339 = vmatpush1.msra.mxu0 %v1525
        %2340 = vmatprep.subr.mxu0 %v1496
        %2341 = vmatpush1.msra.mxu0 %v1495
        %2342 = vmatprep.subr.mxu0 %v1466
        %2343 = vmatpush1.msra.mxu0 %v1465
        %2344 = vmatprep.subr.mxu0 %v1436
        %2345 = vmatpush1.msra.mxu0 %v1435
        %2346 = vmatprep.subr.mxu0 %v1406
        %2347 = vmatpush1.msra.mxu0 %v1405
        %2348 = vmatprep.subr.mxu0 %v1376
        %2349 = vmatpush1.msra.mxu0 %v1375
        %2350 = vmatprep.subr.mxu0 %v1346
        %2351 = vmatpush1.msra.mxu0 %v1345
        %2352 = vmatprep.subr.mxu0 %v1316
        %2353 = vmatpush1.msra.mxu0 %v1315
        %2354 = vmatprep.subr.mxu0 %v1286
        %2355 = vmatpush1.msra.mxu0 %v1285
        %2356 = vmatprep.subr.mxu0 %v1256
        %2357 = vmatpush1.msra.mxu0 %v1255
        %2358 = vmatprep.subr.mxu0 %v1226
        %2359 = vmatpush1.msra.mxu0 %v1225
        %2360 = vmatprep.subr.mxu0 %v1196
        %2361 = vmatpush1.msra.mxu0 %v1195
        %2362 = vmatprep.subr.mxu0 %v1166
        %2363 = vmatpush1.msra.mxu0 %v1165
        %2364 = vmatprep.subr.mxu0 0.0
        %2365 = vmatpush2.msra.mxu0 0.0
        %2366 = vmatprep.subr.mxu0 0.0
        %2367 = vmatpush2.msra.mxu0 0.0
        %2368 = vmatprep.subr.mxu0 0.0
        %2369 = vmatpush2.msra.mxu0 0.0
        %2370 = vmatprep.subr.mxu0 0.0
        %2371 = vmatpush2.msra.mxu0 0.0
        %2372 = vmatprep.subr.mxu0 0.0
        %2373 = vmatpush2.msra.mxu0 0.0
        %2374 = vmatprep.subr.mxu0 0.0
        %2375 = vmatpush2.msra.mxu0 0.0
        %2376 = vmatprep.subr.mxu0 0.0
        %2377 = vmatpush2.msra.mxu0 0.0
        %2378 = vmatprep.subr.mxu0 0.0
        %2379 = vmatpush2.msra.mxu0 0.0
        %2380 = vmatprep.subr.mxu0 0.0
        %2381 = vmatpush2.msra.mxu0 0.0
        %2382 = vmatprep.subr.mxu0 0.0
        %2383 = vmatpush2.msra.mxu0 0.0
        %2384 = vmatprep.subr.mxu0 0.0
        %2385 = vmatpush2.msra.mxu0 0.0
        %2386 = vmatprep.subr.mxu0 0.0
        %2387 = vmatpush2.msra.mxu0 0.0
        %2388 = vmatprep.subr.mxu0 0.0
        %2389 = vmatpush2.msra.mxu0 0.0
        %2390 = vmatprep.subr.mxu0 0.0
        %2391 = vmatpush2.msra.mxu0 0.0
        %2392 = vmatprep.subr.mxu0 0.0
        %2393 = vmatpush2.msra.mxu0 0.0
        %2394 = vmatprep.subr.mxu0 0.0
        %2395 = vmatpush2.msra.mxu0 0.0
        %2396 = vmatprep.mubr.f32.mxu0 0.0
        %2397 = vmatmul.mubr.f32.gmra.mxu0 %v1145
        %v2398 = vpop.f32.mrf.mxu0
        %v2399 = vadd.f32 %v1632, %v2398
        %v2400 = vpop.f32.mrf.mxu0
        %v2401 = vadd.f32 %v1632, %v2400
        %2402 = vmatprep.mubr.f32.mxu0 0.0
        %2403 = vmatmul.mubr.f32.gmra.mxu0 %v1146
        %v2404 = vpop.f32.mrf.mxu0
        %v2405 = vadd.f32 %v1637, %v2404
        %v2406 = vpop.f32.mrf.mxu0
        %v2407 = vadd.f32 %v1637, %v2406
        %2408 = vdwg.mxu0
        %2409 = vmatprep.subr.mxu0 %v1618
        %2410 = vmatpush1.msra.mxu0 %v1617
        %2411 = vmatprep.subr.mxu0 %v1588
        %2412 = vmatpush1.msra.mxu0 %v1587
        %2413 = vmatprep.subr.mxu0 %v1558
        %2414 = vmatpush1.msra.mxu0 %v1557
        %2415 = vmatprep.subr.mxu0 %v1528
        %2416 = vmatpush1.msra.mxu0 %v1527
        %2417 = vmatprep.subr.mxu0 %v1498
        %2418 = vmatpush1.msra.mxu0 %v1497
        %2419 = vmatprep.subr.mxu0 %v1468
        %2420 = vmatpush1.msra.mxu0 %v1467
        %2421 = vmatprep.subr.mxu0 %v1438
        %2422 = vmatpush1.msra.mxu0 %v1437
        %2423 = vmatprep.subr.mxu0 %v1408
        %2424 = vmatpush1.msra.mxu0 %v1407
        %2425 = vmatprep.subr.mxu0 %v1378
        %2426 = vmatpush1.msra.mxu0 %v1377
        %2427 = vmatprep.subr.mxu0 %v1348
        %2428 = vmatpush1.msra.mxu0 %v1347
        %2429 = vmatprep.subr.mxu0 %v1318
        %2430 = vmatpush1.msra.mxu0 %v1317
        %2431 = vmatprep.subr.mxu0 %v1288
        %2432 = vmatpush1.msra.mxu0 %v1287
        %2433 = vmatprep.subr.mxu0 %v1258
        %2434 = vmatpush1.msra.mxu0 %v1257
        %2435 = vmatprep.subr.mxu0 %v1228
        %2436 = vmatpush1.msra.mxu0 %v1227
        %2437 = vmatprep.subr.mxu0 %v1198
        %2438 = vmatpush1.msra.mxu0 %v1197
        %2439 = vmatprep.subr.mxu0 %v1168
        %2440 = vmatpush1.msra.mxu0 %v1167
        %2441 = vmatprep.subr.mxu0 0.0
        %2442 = vmatpush2.msra.mxu0 0.0
        %2443 = vmatprep.subr.mxu0 0.0
        %2444 = vmatpush2.msra.mxu0 0.0
        %2445 = vmatprep.subr.mxu0 0.0
        %2446 = vmatpush2.msra.mxu0 0.0
        %2447 = vmatprep.subr.mxu0 0.0
        %2448 = vmatpush2.msra.mxu0 0.0
        %2449 = vmatprep.subr.mxu0 0.0
        %2450 = vmatpush2.msra.mxu0 0.0
        %2451 = vmatprep.subr.mxu0 0.0
        %2452 = vmatpush2.msra.mxu0 0.0
        %2453 = vmatprep.subr.mxu0 0.0
        %2454 = vmatpush2.msra.mxu0 0.0
        %2455 = vmatprep.subr.mxu0 0.0
        %2456 = vmatpush2.msra.mxu0 0.0
        %2457 = vmatprep.subr.mxu0 0.0
        %2458 = vmatpush2.msra.mxu0 0.0
        %2459 = vmatprep.subr.mxu0 0.0
        %2460 = vmatpush2.msra.mxu0 0.0
        %2461 = vmatprep.subr.mxu0 0.0
        %2462 = vmatpush2.msra.mxu0 0.0
        %2463 = vmatprep.subr.mxu0 0.0
        %2464 = vmatpush2.msra.mxu0 0.0
        %2465 = vmatprep.subr.mxu0 0.0
        %2466 = vmatpush2.msra.mxu0 0.0
        %2467 = vmatprep.subr.mxu0 0.0
        %2468 = vmatpush2.msra.mxu0 0.0
        %2469 = vmatprep.subr.mxu0 0.0
        %2470 = vmatpush2.msra.mxu0 0.0
        %2471 = vmatprep.subr.mxu0 0.0
        %2472 = vmatpush2.msra.mxu0 0.0
        %2473 = vmatprep.mubr.f32.mxu0 0.0
        %2474 = vmatmul.mubr.f32.gmra.mxu0 %v1145
        %v2475 = vpop.f32.mrf.mxu0
        %v2476 = vadd.f32 %v1632, %v2475
        %v2477 = vpop.f32.mrf.mxu0
        %v2478 = vadd.f32 %v1632, %v2477
        %2479 = vmatprep.mubr.f32.mxu0 0.0
        %2480 = vmatmul.mubr.f32.gmra.mxu0 %v1146
        %v2481 = vpop.f32.mrf.mxu0
        %v2482 = vadd.f32 %v1637, %v2481
        %v2483 = vpop.f32.mrf.mxu0
        %v2484 = vadd.f32 %v1637, %v2483
        %2485 = vdwg.mxu0
        %2486 = vmatprep.subr.mxu0 %v1620
        %2487 = vmatpush1.msra.mxu0 %v1619
        %2488 = vmatprep.subr.mxu0 %v1590
        %2489 = vmatpush1.msra.mxu0 %v1589
        %2490 = vmatprep.subr.mxu0 %v1560
        %2491 = vmatpush1.msra.mxu0 %v1559
        %2492 = vmatprep.subr.mxu0 %v1530
        %2493 = vmatpush1.msra.mxu0 %v1529
        %2494 = vmatprep.subr.mxu0 %v1500
        %2495 = vmatpush1.msra.mxu0 %v1499
        %2496 = vmatprep.subr.mxu0 %v1470
        %2497 = vmatpush1.msra.mxu0 %v1469
        %2498 = vmatprep.subr.mxu0 %v1440
        %2499 = vmatpush1.msra.mxu0 %v1439
        %2500 = vmatprep.subr.mxu0 %v1410
        %2501 = vmatpush1.msra.mxu0 %v1409
        %2502 = vmatprep.subr.mxu0 %v1380
        %2503 = vmatpush1.msra.mxu0 %v1379
        %2504 = vmatprep.subr.mxu0 %v1350
        %2505 = vmatpush1.msra.mxu0 %v1349
        %2506 = vmatprep.subr.mxu0 %v1320
        %2507 = vmatpush1.msra.mxu0 %v1319
        %2508 = vmatprep.subr.mxu0 %v1290
        %2509 = vmatpush1.msra.mxu0 %v1289
        %2510 = vmatprep.subr.mxu0 %v1260
        %2511 = vmatpush1.msra.mxu0 %v1259
        %2512 = vmatprep.subr.mxu0 %v1230
        %2513 = vmatpush1.msra.mxu0 %v1229
        %2514 = vmatprep.subr.mxu0 %v1200
        %2515 = vmatpush1.msra.mxu0 %v1199
        %2516 = vmatprep.subr.mxu0 %v1170
        %2517 = vmatpush1.msra.mxu0 %v1169
        %2518 = vmatprep.subr.mxu0 0.0
        %2519 = vmatpush2.msra.mxu0 0.0
        %2520 = vmatprep.subr.mxu0 0.0
        %2521 = vmatpush2.msra.mxu0 0.0
        %2522 = vmatprep.subr.mxu0 0.0
        %2523 = vmatpush2.msra.mxu0 0.0
        %2524 = vmatprep.subr.mxu0 0.0
        %2525 = vmatpush2.msra.mxu0 0.0
        %2526 = vmatprep.subr.mxu0 0.0
        %2527 = vmatpush2.msra.mxu0 0.0
        %2528 = vmatprep.subr.mxu0 0.0
        %2529 = vmatpush2.msra.mxu0 0.0
        %2530 = vmatprep.subr.mxu0 0.0
        %2531 = vmatpush2.msra.mxu0 0.0
        %2532 = vmatprep.subr.mxu0 0.0
        %2533 = vmatpush2.msra.mxu0 0.0
        %2534 = vmatprep.subr.mxu0 0.0
        %2535 = vmatpush2.msra.mxu0 0.0
        %2536 = vmatprep.subr.mxu0 0.0
        %2537 = vmatpush2.msra.mxu0 0.0
        %2538 = vmatprep.subr.mxu0 0.0
        %2539 = vmatpush2.msra.mxu0 0.0
        %2540 = vmatprep.subr.mxu0 0.0
        %2541 = vmatpush2.msra.mxu0 0.0
        %2542 = vmatprep.subr.mxu0 0.0
        %2543 = vmatpush2.msra.mxu0 0.0
        %2544 = vmatprep.subr.mxu0 0.0
        %2545 = vmatpush2.msra.mxu0 0.0
        %2546 = vmatprep.subr.mxu0 0.0
        %2547 = vmatpush2.msra.mxu0 0.0
        %2548 = vmatprep.subr.mxu0 0.0
        %2549 = vmatpush2.msra.mxu0 0.0
        %2550 = vmatprep.mubr.f32.mxu0 0.0
        %2551 = vmatmul.mubr.f32.gmra.mxu0 %v1145
        %v2552 = vpop.f32.mrf.mxu0
        %v2553 = vadd.f32 %v1632, %v2552
        %v2554 = vpop.f32.mrf.mxu0
        %v2555 = vadd.f32 %v1632, %v2554
        %2556 = vmatprep.mubr.f32.mxu0 0.0
        %2557 = vmatmul.mubr.f32.gmra.mxu0 %v1146
        %v2558 = vpop.f32.mrf.mxu0
        %v2559 = vadd.f32 %v1637, %v2558
        %v2560 = vpop.f32.mrf.mxu0
        %v2561 = vadd.f32 %v1637, %v2560
        %2562 = vdwg.mxu0
        %2563 = vmatprep.subr.mxu0 %v1622
        %2564 = vmatpush1.msra.mxu0 %v1621
        %2565 = vmatprep.subr.mxu0 %v1592
        %2566 = vmatpush1.msra.mxu0 %v1591
        %2567 = vmatprep.subr.mxu0 %v1562
        %2568 = vmatpush1.msra.mxu0 %v1561
        %2569 = vmatprep.subr.mxu0 %v1532
        %2570 = vmatpush1.msra.mxu0 %v1531
        %2571 = vmatprep.subr.mxu0 %v1502
        %2572 = vmatpush1.msra.mxu0 %v1501
        %2573 = vmatprep.subr.mxu0 %v1472
        %2574 = vmatpush1.msra.mxu0 %v1471
        %2575 = vmatprep.subr.mxu0 %v1442
        %2576 = vmatpush1.msra.mxu0 %v1441
        %2577 = vmatprep.subr.mxu0 %v1412
        %2578 = vmatpush1.msra.mxu0 %v1411
        %2579 = vmatprep.subr.mxu0 %v1382
        %2580 = vmatpush1.msra.mxu0 %v1381
        %2581 = vmatprep.subr.mxu0 %v1352
        %2582 = vmatpush1.msra.mxu0 %v1351
        %2583 = vmatprep.subr.mxu0 %v1322
        %2584 = vmatpush1.msra.mxu0 %v1321
        %2585 = vmatprep.subr.mxu0 %v1292
        %2586 = vmatpush1.msra.mxu0 %v1291
        %2587 = vmatprep.subr.mxu0 %v1262
        %2588 = vmatpush1.msra.mxu0 %v1261
        %2589 = vmatprep.subr.mxu0 %v1232
        %2590 = vmatpush1.msra.mxu0 %v1231
        %2591 = vmatprep.subr.mxu0 %v1202
        %2592 = vmatpush1.msra.mxu0 %v1201
        %2593 = vmatprep.subr.mxu0 %v1172
        %2594 = vmatpush1.msra.mxu0 %v1171
        %2595 = vmatprep.subr.mxu0 0.0
        %2596 = vmatpush2.msra.mxu0 0.0
        %2597 = vmatprep.subr.mxu0 0.0
        %2598 = vmatpush2.msra.mxu0 0.0
        %2599 = vmatprep.subr.mxu0 0.0
        %2600 = vmatpush2.msra.mxu0 0.0
        %2601 = vmatprep.subr.mxu0 0.0
        %2602 = vmatpush2.msra.mxu0 0.0
        %2603 = vmatprep.subr.mxu0 0.0
        %2604 = vmatpush2.msra.mxu0 0.0
        %2605 = vmatprep.subr.mxu0 0.0
        %2606 = vmatpush2.msra.mxu0 0.0
        %2607 = vmatprep.subr.mxu0 0.0
        %2608 = vmatpush2.msra.mxu0 0.0
        %2609 = vmatprep.subr.mxu0 0.0
        %2610 = vmatpush2.msra.mxu0 0.0
        %2611 = vmatprep.subr.mxu0 0.0
        %2612 = vmatpush2.msra.mxu0 0.0
        %2613 = vmatprep.subr.mxu0 0.0
        %2614 = vmatpush2.msra.mxu0 0.0
        %2615 = vmatprep.subr.mxu0 0.0
        %2616 = vmatpush2.msra.mxu0 0.0
        %2617 = vmatprep.subr.mxu0 0.0
        %2618 = vmatpush2.msra.mxu0 0.0
        %2619 = vmatprep.subr.mxu0 0.0
        %2620 = vmatpush2.msra.mxu0 0.0
        %2621 = vmatprep.subr.mxu0 0.0
        %2622 = vmatpush2.msra.mxu0 0.0
        %2623 = vmatprep.subr.mxu0 0.0
        %2624 = vmatpush2.msra.mxu0 0.0
        %2625 = vmatprep.subr.mxu0 0.0
        %2626 = vmatpush2.msra.mxu0 0.0
        %2627 = vmatprep.mubr.f32.mxu0 0.0
        %2628 = vmatmul.mubr.f32.gmra.mxu0 %v1145
        %v2629 = vpop.f32.mrf.mxu0
        %v2630 = vadd.f32 %v1632, %v2629
        %v2631 = vpop.f32.mrf.mxu0
        %v2632 = vadd.f32 %v1632, %v2631
        %2633 = vmatprep.mubr.f32.mxu0 0.0
        %2634 = vmatmul.mubr.f32.gmra.mxu0 %v1146
        %v2635 = vpop.f32.mrf.mxu0
        %v2636 = vadd.f32 %v1637, %v2635
        %v2637 = vpop.f32.mrf.mxu0
        %v2638 = vadd.f32 %v1637, %v2637
        %2639 = vdwg.mxu0
        %2640 = vmatprep.subr.mxu0 %v1624
        %2641 = vmatpush1.msra.mxu0 %v1623
        %2642 = vmatprep.subr.mxu0 %v1594
        %2643 = vmatpush1.msra.mxu0 %v1593
        %2644 = vmatprep.subr.mxu0 %v1564
        %2645 = vmatpush1.msra.mxu0 %v1563
        %2646 = vmatprep.subr.mxu0 %v1534
        %2647 = vmatpush1.msra.mxu0 %v1533
        %2648 = vmatprep.subr.mxu0 %v1504
        %2649 = vmatpush1.msra.mxu0 %v1503
        %2650 = vmatprep.subr.mxu0 %v1474
        %2651 = vmatpush1.msra.mxu0 %v1473
        %2652 = vmatprep.subr.mxu0 %v1444
        %2653 = vmatpush1.msra.mxu0 %v1443
        %2654 = vmatprep.subr.mxu0 %v1414
        %2655 = vmatpush1.msra.mxu0 %v1413
        %2656 = vmatprep.subr.mxu0 %v1384
        %2657 = vmatpush1.msra.mxu0 %v1383
        %2658 = vmatprep.subr.mxu0 %v1354
        %2659 = vmatpush1.msra.mxu0 %v1353
        %2660 = vmatprep.subr.mxu0 %v1324
        %2661 = vmatpush1.msra.mxu0 %v1323
        %2662 = vmatprep.subr.mxu0 %v1294
        %2663 = vmatpush1.msra.mxu0 %v1293
        %2664 = vmatprep.subr.mxu0 %v1264
        %2665 = vmatpush1.msra.mxu0 %v1263
        %2666 = vmatprep.subr.mxu0 %v1234
        %2667 = vmatpush1.msra.mxu0 %v1233
        %2668 = vmatprep.subr.mxu0 %v1204
        %2669 = vmatpush1.msra.mxu0 %v1203
        %2670 = vmatprep.subr.mxu0 %v1174
        %2671 = vmatpush1.msra.mxu0 %v1173
        %2672 = vmatprep.subr.mxu0 0.0
        %2673 = vmatpush2.msra.mxu0 0.0
        %2674 = vmatprep.subr.mxu0 0.0
        %2675 = vmatpush2.msra.mxu0 0.0
        %2676 = vmatprep.subr.mxu0 0.0
        %2677 = vmatpush2.msra.mxu0 0.0
        %2678 = vmatprep.subr.mxu0 0.0
        %2679 = vmatpush2.msra.mxu0 0.0
        %2680 = vmatprep.subr.mxu0 0.0
        %2681 = vmatpush2.msra.mxu0 0.0
        %2682 = vmatprep.subr.mxu0 0.0
        %2683 = vmatpush2.msra.mxu0 0.0
        %2684 = vmatprep.subr.mxu0 0.0
        %2685 = vmatpush2.msra.mxu0 0.0
        %2686 = vmatprep.subr.mxu0 0.0
        %2687 = vmatpush2.msra.mxu0 0.0
        %2688 = vmatprep.subr.mxu0 0.0
        %2689 = vmatpush2.msra.mxu0 0.0
        %2690 = vmatprep.subr.mxu0 0.0
        %2691 = vmatpush2.msra.mxu0 0.0
        %2692 = vmatprep.subr.mxu0 0.0
        %2693 = vmatpush2.msra.mxu0 0.0
        %2694 = vmatprep.subr.mxu0 0.0
        %2695 = vmatpush2.msra.mxu0 0.0
        %2696 = vmatprep.subr.mxu0 0.0
        %2697 = vmatpush2.msra.mxu0 0.0
        %2698 = vmatprep.subr.mxu0 0.0
        %2699 = vmatpush2.msra.mxu0 0.0
        %2700 = vmatprep.subr.mxu0 0.0
        %2701 = vmatpush2.msra.mxu0 0.0
        %2702 = vmatprep.subr.mxu0 0.0
        %2703 = vmatpush2.msra.mxu0 0.0
        %2704 = vmatprep.mubr.f32.mxu0 0.0
        %2705 = vmatmul.mubr.f32.gmra.mxu0 %v1145
        %v2706 = vpop.f32.mrf.mxu0
        %v2707 = vadd.f32 %v1632, %v2706
        %v2708 = vpop.f32.mrf.mxu0
        %v2709 = vadd.f32 %v1632, %v2708
        %2710 = vmatprep.mubr.f32.mxu0 0.0
        %2711 = vmatmul.mubr.f32.gmra.mxu0 %v1146
        %v2712 = vpop.f32.mrf.mxu0
        %v2713 = vadd.f32 %v1637, %v2712
        %v2714 = vpop.f32.mrf.mxu0
        %v2715 = vadd.f32 %v1637, %v2714
        %2716 = vdwg.mxu0
        %2717 = vmatprep.subr.mxu0 %v1626
        %2718 = vmatpush1.msra.mxu0 %v1625
        %2719 = vmatprep.subr.mxu0 %v1596
        %2720 = vmatpush1.msra.mxu0 %v1595
        %2721 = vmatprep.subr.mxu0 %v1566
        %2722 = vmatpush1.msra.mxu0 %v1565
        %2723 = vmatprep.subr.mxu0 %v1536
        %2724 = vmatpush1.msra.mxu0 %v1535
        %2725 = vmatprep.subr.mxu0 %v1506
        %2726 = vmatpush1.msra.mxu0 %v1505
        %2727 = vmatprep.subr.mxu0 %v1476
        %2728 = vmatpush1.msra.mxu0 %v1475
        %2729 = vmatprep.subr.mxu0 %v1446
        %2730 = vmatpush1.msra.mxu0 %v1445
        %2731 = vmatprep.subr.mxu0 %v1416
        %2732 = vmatpush1.msra.mxu0 %v1415
        %2733 = vmatprep.subr.mxu0 %v1386
        %2734 = vmatpush1.msra.mxu0 %v1385
        %2735 = vmatprep.subr.mxu0 %v1356
        %2736 = vmatpush1.msra.mxu0 %v1355
        %2737 = vmatprep.subr.mxu0 %v1326
        %2738 = vmatpush1.msra.mxu0 %v1325
        %2739 = vmatprep.subr.mxu0 %v1296
        %2740 = vmatpush1.msra.mxu0 %v1295
        %2741 = vmatprep.subr.mxu0 %v1266
        %2742 = vmatpush1.msra.mxu0 %v1265
        %2743 = vmatprep.subr.mxu0 %v1236
        %2744 = vmatpush1.msra.mxu0 %v1235
        %2745 = vmatprep.subr.mxu0 %v1206
        %2746 = vmatpush1.msra.mxu0 %v1205
        %2747 = vmatprep.subr.mxu0 %v1176
        %2748 = vmatpush1.msra.mxu0 %v1175
        %2749 = vmatprep.subr.mxu0 0.0
        %2750 = vmatpush2.msra.mxu0 0.0
        %2751 = vmatprep.subr.mxu0 0.0
        %2752 = vmatpush2.msra.mxu0 0.0
        %2753 = vmatprep.subr.mxu0 0.0
        %2754 = vmatpush2.msra.mxu0 0.0
        %2755 = vmatprep.subr.mxu0 0.0
        %2756 = vmatpush2.msra.mxu0 0.0
        %2757 = vmatprep.subr.mxu0 0.0
        %2758 = vmatpush2.msra.mxu0 0.0
        %2759 = vmatprep.subr.mxu0 0.0
        %2760 = vmatpush2.msra.mxu0 0.0
        %2761 = vmatprep.subr.mxu0 0.0
        %2762 = vmatpush2.msra.mxu0 0.0
        %2763 = vmatprep.subr.mxu0 0.0
        %2764 = vmatpush2.msra.mxu0 0.0
        %2765 = vmatprep.subr.mxu0 0.0
        %2766 = vmatpush2.msra.mxu0 0.0
        %2767 = vmatprep.subr.mxu0 0.0
        %2768 = vmatpush2.msra.mxu0 0.0
        %2769 = vmatprep.subr.mxu0 0.0
        %2770 = vmatpush2.msra.mxu0 0.0
        %2771 = vmatprep.subr.mxu0 0.0
        %2772 = vmatpush2.msra.mxu0 0.0
        %2773 = vmatprep.subr.mxu0 0.0
        %2774 = vmatpush2.msra.mxu0 0.0
        %2775 = vmatprep.subr.mxu0 0.0
        %2776 = vmatpush2.msra.mxu0 0.0
        %2777 = vmatprep.subr.mxu0 0.0
        %2778 = vmatpush2.msra.mxu0 0.0
        %2779 = vmatprep.subr.mxu0 0.0
        %2780 = vmatpush2.msra.mxu0 0.0
        %2781 = vmatprep.mubr.f32.mxu0 0.0
        %2782 = vmatmul.mubr.f32.gmra.mxu0 %v1145
        %v2783 = vpop.f32.mrf.mxu0
        %v2784 = vadd.f32 %v1632, %v2783
        %v2785 = vpop.f32.mrf.mxu0
        %v2786 = vadd.f32 %v1632, %v2785
        %2787 = vmatprep.mubr.f32.mxu0 0.0
        %2788 = vmatmul.mubr.f32.gmra.mxu0 %v1146
        %v2789 = vpop.f32.mrf.mxu0
        %v2790 = vadd.f32 %v1637, %v2789
        %v2791 = vpop.f32.mrf.mxu0
        %v2792 = vadd.f32 %v1637, %v2791
        %2793 = vdwg.mxu0
        %v2794 = vmax.f32 %v1706, 0.0
        %v2795 = vmax.f32 %v1708, 0.0
        %v2796 = vmax.f32 %v1783, 0.0
        %v2797 = vmax.f32 %v1785, 0.0
        %v2798 = vmax.f32 %v1860, 0.0
        %v2799 = vmax.f32 %v1862, 0.0
        %v2800 = vmax.f32 %v1937, 0.0
        %v2801 = vmax.f32 %v1939, 0.0
        %v2802 = vmax.f32 %v2014, 0.0
        %v2803 = vmax.f32 %v2016, 0.0
        %v2804 = vmax.f32 %v2091, 0.0
        %v2805 = vmax.f32 %v2093, 0.0
        %v2806 = vmax.f32 %v2168, 0.0
        %v2807 = vmax.f32 %v2170, 0.0
        %v2808 = vmax.f32 %v2245, 0.0
        %v2809 = vmax.f32 %v2247, 0.0
        %v2810 = vmax.f32 %v2322, 0.0
        %v2811 = vmax.f32 %v2324, 0.0
        %v2812 = vmax.f32 %v2399, 0.0
        %v2813 = vmax.f32 %v2401, 0.0
        %v2814 = vmax.f32 %v2476, 0.0
        %v2815 = vmax.f32 %v2478, 0.0
        %v2816 = vmax.f32 %v2553, 0.0
        %v2817 = vmax.f32 %v2555, 0.0
        %v2818 = vmax.f32 %v2630, 0.0
        %v2819 = vmax.f32 %v2632, 0.0
        %v2820 = vmax.f32 %v2707, 0.0
        %v2821 = vmax.f32 %v2709, 0.0
        %v2822 = vmax.f32 %v2784, 0.0
        %v2823 = vmax.f32 %v2786, 0.0
        %v2824 = vmax.f32 %v1712, 0.0
        %v2825 = vmax.f32 %v1714, 0.0
        %v2826 = vmax.f32 %v1789, 0.0
        %v2827 = vmax.f32 %v1791, 0.0
        %v2828 = vmax.f32 %v1866, 0.0
        %v2829 = vmax.f32 %v1868, 0.0
        %v2830 = vmax.f32 %v1943, 0.0
        %v2831 = vmax.f32 %v1945, 0.0
        %v2832 = vmax.f32 %v2020, 0.0
        %v2833 = vmax.f32 %v2022, 0.0
        %v2834 = vmax.f32 %v2097, 0.0
        %v2835 = vmax.f32 %v2099, 0.0
        %v2836 = vmax.f32 %v2174, 0.0
        %v2837 = vmax.f32 %v2176, 0.0
        %v2838 = vmax.f32 %v2251, 0.0
        %v2839 = vmax.f32 %v2253, 0.0
        %v2840 = vmax.f32 %v2328, 0.0
        %v2841 = vmax.f32 %v2330, 0.0
        %v2842 = vmax.f32 %v2405, 0.0
        %v2843 = vmax.f32 %v2407, 0.0
        %v2844 = vmax.f32 %v2482, 0.0
        %v2845 = vmax.f32 %v2484, 0.0
        %v2846 = vmax.f32 %v2559, 0.0
        %v2847 = vmax.f32 %v2561, 0.0
        %v2848 = vmax.f32 %v2636, 0.0
        %v2849 = vmax.f32 %v2638, 0.0
        %v2850 = vmax.f32 %v2713, 0.0
        %v2851 = vmax.f32 %v2715, 0.0
        %v2852 = vmax.f32 %v2790, 0.0
        %v2853 = vmax.f32 %v2792, 0.0
        %2854 = vst [vmem:[%s1142] sm:$0xff] %v2794
        %2855 = vst [vmem:[%s1142 + $0x8] sm:$0xff] %v2795
        %2856 = vst [vmem:[%s1142 + $0x10] sm:$0xff] %v2796
        %2857 = vst [vmem:[%s1142 + $0x18] sm:$0xff] %v2797
        %2858 = vst [vmem:[%s1142 + $0x20] sm:$0xff] %v2798
        %2859 = vst [vmem:[%s1142 + $0x28] sm:$0xff] %v2799
        %2860 = vst [vmem:[%s1142 + $0x30] sm:$0xff] %v2800
        %2861 = vst [vmem:[%s1142 + $0x38] sm:$0xff] %v2801
        %2862 = vst [vmem:[%s1142 + $0x40] sm:$0xff] %v2802
        %2863 = vst [vmem:[%s1142 + $0x48] sm:$0xff] %v2803
        %2864 = vst [vmem:[%s1142 + $0x50] sm:$0xff] %v2804
        %2865 = vst [vmem:[%s1142 + $0x58] sm:$0xff] %v2805
        %2866 = vst [vmem:[%s1142 + $0x60] sm:$0xff] %v2806
        %2867 = vst [vmem:[%s1142 + $0x68] sm:$0xff] %v2807
        %2868 = vst [vmem:[%s1142 + $0x70] sm:$0xff] %v2808
        %2869 = vst [vmem:[%s1142 + $0x78] sm:$0xff] %v2809
        %2870 = vst [vmem:[%s1142 + $0x80] sm:$0xff] %v2810
        %2871 = vst [vmem:[%s1142 + $0x88] sm:$0xff] %v2811
        %2872 = vst [vmem:[%s1142 + $0x90] sm:$0xff] %v2812
        %2873 = vst [vmem:[%s1142 + $0x98] sm:$0xff] %v2813
        %2874 = vst [vmem:[%s1142 + $0xa0] sm:$0xff] %v2814
        %2875 = vst [vmem:[%s1142 + $0xa8] sm:$0xff] %v2815
        %2876 = vst [vmem:[%s1142 + $0xb0] sm:$0xff] %v2816
        %2877 = vst [vmem:[%s1142 + $0xb8] sm:$0xff] %v2817
        %2878 = vst [vmem:[%s1142 + $0xc0] sm:$0xff] %v2818
        %2879 = vst [vmem:[%s1142 + $0xc8] sm:$0xff] %v2819
        %2880 = vst [vmem:[%s1142 + $0xd0] sm:$0xff] %v2820
        %2881 = vst [vmem:[%s1142 + $0xd8] sm:$0xff] %v2821
        %2882 = vst [vmem:[%s1142 + $0xe0] sm:$0xff] %v2822
        %2883 = vst [vmem:[%s1142 + $0xe8] sm:$0xff] %v2823
        %2884 = vst [vmem:[%s1142 + $0xf0] sm:$0xff] %v2824
        %2885 = vst [vmem:[%s1142 + $0xf8] sm:$0xff] %v2825
        %2886 = vst [vmem:[%s1142 + $0x100] sm:$0xff] %v2826
        %2887 = vst [vmem:[%s1142 + $0x108] sm:$0xff] %v2827
        %2888 = vst [vmem:[%s1142 + $0x110] sm:$0xff] %v2828
        %2889 = vst [vmem:[%s1142 + $0x118] sm:$0xff] %v2829
        %2890 = vst [vmem:[%s1142 + $0x120] sm:$0xff] %v2830
        %2891 = vst [vmem:[%s1142 + $0x128] sm:$0xff] %v2831
        %2892 = vst [vmem:[%s1142 + $0x130] sm:$0xff] %v2832
        %2893 = vst [vmem:[%s1142 + $0x138] sm:$0xff] %v2833
        %2894 = vst [vmem:[%s1142 + $0x140] sm:$0xff] %v2834
        %2895 = vst [vmem:[%s1142 + $0x148] sm:$0xff] %v2835
        %2896 = vst [vmem:[%s1142 + $0x150] sm:$0xff] %v2836
        %2897 = vst [vmem:[%s1142 + $0x158] sm:$0xff] %v2837
        %2898 = vst [vmem:[%s1142 + $0x160] sm:$0xff] %v2838
        %2899 = vst [vmem:[%s1142 + $0x168] sm:$0xff] %v2839
        %2900 = vst [vmem:[%s1142 + $0x170] sm:$0xff] %v2840
        %2901 = vst [vmem:[%s1142 + $0x178] sm:$0xff] %v2841
        %2902 = vst [vmem:[%s1142 + $0x180] sm:$0xff] %v2842
        %2903 = vst [vmem:[%s1142 + $0x188] sm:$0xff] %v2843
        %2904 = vst [vmem:[%s1142 + $0x190] sm:$0xff] %v2844
        %2905 = vst [vmem:[%s1142 + $0x198] sm:$0xff] %v2845
        %2906 = vst [vmem:[%s1142 + $0x1a0] sm:$0xff] %v2846
        %2907 = vst [vmem:[%s1142 + $0x1a8] sm:$0xff] %v2847
        %2908 = vst [vmem:[%s1142 + $0x1b0] sm:$0xff] %v2848
        %2909 = vst [vmem:[%s1142 + $0x1b8] sm:$0xff] %v2849
        %2910 = vst [vmem:[%s1142 + $0x1c0] sm:$0xff] %v2850
        %2911 = vst [vmem:[%s1142 + $0x1c8] sm:$0xff] %v2851
        %2912 = vst [vmem:[%s1142 + $0x1d0] sm:$0xff] %v2852
        %2913 = vst [vmem:[%s1142 + $0x1d8] sm:$0xff] %v2853
        %s2914 = sand.u32 %s90, 1
        %s2915 = sand.u32 %s90, 1
        %s2916 = smul.addr %s2915, 480
        %s2917 = scalar_lea.vmem [#allocation3], %s2916
        // Predicated region
        $region56: #{net_forward.4} parent=50 // pred_check
          %p2918 = pneg %p100
        $region57: #{net_forward.4} parent=50 // pred_check_branch
          %2920 = sbr.rel (%p2918) target = $region59
        $region58: #{net_forward.4} parent=50 // pred_region
          %s2921 = smul.u32 30, %s14
          %s2922 = smul.addr %s2921, 8
          %s2923 = scalar_lea.vmem %s3, %s2922
          // Predicated region
          $region60: #{net_forward.4} parent=58 // pred_check
            _
          $region61: #{net_forward.4} parent=58 // pred_check_branch
            %2925 = sbr.rel (0) target = $region63
          $region62: #{net_forward.4} parent=58 // pred_region
            // Predicated region
            $region64: #{net_forward.4} parent=62 // pred_check
              _
            $region65: #{net_forward.4} parent=62 // pred_check_branch
              %2927 = sbr.rel (0) target = $region67
            $region66: #{net_forward.4} parent=62 // pred_region
              loop: start=0, step=1, limit=1
              $region68: #{net_forward.4} parent=66 // loop_pre_header
                _
              $region69: #{net_forward.4} parent=66 // loop_header
                %s2929 = sphi 0, %s2933
                %p2930 = scmp.ge.s32.totalorder %s2929, 1
                %s2934 = sphi %s2917, %s2917
                %s2935 = sphi %s2923, %s2923
              $region70: #{net_forward.4} parent=66 // loop_header_branch
                %2932 = sbr.rel (%p2930) target = $region74
              $region71: #{net_forward.4} parent=66 // loop_body
                %v2936 = vld [vmem:[%s2934] sm:$0xff]
                %2937 = vst [vmem:[%s2935] sm:$0xff] %v2936
                %v2938 = vld [vmem:[%s2934 + $0x8] sm:$0xff]
                %2939 = vst [vmem:[%s2935 + $0x8] sm:$0xff] %v2938
                %v2940 = vld [vmem:[%s2934 + $0x10] sm:$0xff]
                %2941 = vst [vmem:[%s2935 + $0x10] sm:$0xff] %v2940
                %v2942 = vld [vmem:[%s2934 + $0x18] sm:$0xff]
                %2943 = vst [vmem:[%s2935 + $0x18] sm:$0xff] %v2942
                %v2944 = vld [vmem:[%s2934 + $0x20] sm:$0xff]
                %2945 = vst [vmem:[%s2935 + $0x20] sm:$0xff] %v2944
                %v2946 = vld [vmem:[%s2934 + $0x28] sm:$0xff]
                %2947 = vst [vmem:[%s2935 + $0x28] sm:$0xff] %v2946
                %v2948 = vld [vmem:[%s2934 + $0x30] sm:$0xff]
                %2949 = vst [vmem:[%s2935 + $0x30] sm:$0xff] %v2948
                %v2950 = vld [vmem:[%s2934 + $0x38] sm:$0xff]
                %2951 = vst [vmem:[%s2935 + $0x38] sm:$0xff] %v2950
                %v2952 = vld [vmem:[%s2934 + $0x40] sm:$0xff]
                %2953 = vst [vmem:[%s2935 + $0x40] sm:$0xff] %v2952
                %v2954 = vld [vmem:[%s2934 + $0x48] sm:$0xff]
                %2955 = vst [vmem:[%s2935 + $0x48] sm:$0xff] %v2954
                %v2956 = vld [vmem:[%s2934 + $0x50] sm:$0xff]
                %2957 = vst [vmem:[%s2935 + $0x50] sm:$0xff] %v2956
                %v2958 = vld [vmem:[%s2934 + $0x58] sm:$0xff]
                %2959 = vst [vmem:[%s2935 + $0x58] sm:$0xff] %v2958
                %v2960 = vld [vmem:[%s2934 + $0x60] sm:$0xff]
                %2961 = vst [vmem:[%s2935 + $0x60] sm:$0xff] %v2960
                %v2962 = vld [vmem:[%s2934 + $0x68] sm:$0xff]
                %2963 = vst [vmem:[%s2935 + $0x68] sm:$0xff] %v2962
                %v2964 = vld [vmem:[%s2934 + $0x70] sm:$0xff]
                %2965 = vst [vmem:[%s2935 + $0x70] sm:$0xff] %v2964
                %v2966 = vld [vmem:[%s2934 + $0x78] sm:$0xff]
                %2967 = vst [vmem:[%s2935 + $0x78] sm:$0xff] %v2966
                %v2968 = vld [vmem:[%s2934 + $0x80] sm:$0xff]
                %2969 = vst [vmem:[%s2935 + $0x80] sm:$0xff] %v2968
                %v2970 = vld [vmem:[%s2934 + $0x88] sm:$0xff]
                %2971 = vst [vmem:[%s2935 + $0x88] sm:$0xff] %v2970
                %v2972 = vld [vmem:[%s2934 + $0x90] sm:$0xff]
                %2973 = vst [vmem:[%s2935 + $0x90] sm:$0xff] %v2972
                %v2974 = vld [vmem:[%s2934 + $0x98] sm:$0xff]
                %2975 = vst [vmem:[%s2935 + $0x98] sm:$0xff] %v2974
                %v2976 = vld [vmem:[%s2934 + $0xa0] sm:$0xff]
                %2977 = vst [vmem:[%s2935 + $0xa0] sm:$0xff] %v2976
                %v2978 = vld [vmem:[%s2934 + $0xa8] sm:$0xff]
                %2979 = vst [vmem:[%s2935 + $0xa8] sm:$0xff] %v2978
                %v2980 = vld [vmem:[%s2934 + $0xb0] sm:$0xff]
                %2981 = vst [vmem:[%s2935 + $0xb0] sm:$0xff] %v2980
                %v2982 = vld [vmem:[%s2934 + $0xb8] sm:$0xff]
                %2983 = vst [vmem:[%s2935 + $0xb8] sm:$0xff] %v2982
                %v2984 = vld [vmem:[%s2934 + $0xc0] sm:$0xff]
                %2985 = vst [vmem:[%s2935 + $0xc0] sm:$0xff] %v2984
                %v2986 = vld [vmem:[%s2934 + $0xc8] sm:$0xff]
                %2987 = vst [vmem:[%s2935 + $0xc8] sm:$0xff] %v2986
                %v2988 = vld [vmem:[%s2934 + $0xd0] sm:$0xff]
                %2989 = vst [vmem:[%s2935 + $0xd0] sm:$0xff] %v2988
                %v2990 = vld [vmem:[%s2934 + $0xd8] sm:$0xff]
                %2991 = vst [vmem:[%s2935 + $0xd8] sm:$0xff] %v2990
                %v2992 = vld [vmem:[%s2934 + $0xe0] sm:$0xff]
                %2993 = vst [vmem:[%s2935 + $0xe0] sm:$0xff] %v2992
                %v2994 = vld [vmem:[%s2934 + $0xe8] sm:$0xff]
                %2995 = vst [vmem:[%s2935 + $0xe8] sm:$0xff] %v2994
                %v2996 = vld [vmem:[%s2934 + $0xf0] sm:$0xff]
                %2997 = vst [vmem:[%s2935 + $0x1e0] sm:$0xff] %v2996
                %v2998 = vld [vmem:[%s2934 + $0xf8] sm:$0xff]
                %2999 = vst [vmem:[%s2935 + $0x1e8] sm:$0xff] %v2998
                %v3000 = vld [vmem:[%s2934 + $0x100] sm:$0xff]
                %3001 = vst [vmem:[%s2935 + $0x1f0] sm:$0xff] %v3000
                %v3002 = vld [vmem:[%s2934 + $0x108] sm:$0xff]
                %3003 = vst [vmem:[%s2935 + $0x1f8] sm:$0xff] %v3002
                %v3004 = vld [vmem:[%s2934 + $0x110] sm:$0xff]
                %3005 = vst [vmem:[%s2935 + $0x200] sm:$0xff] %v3004
                %v3006 = vld [vmem:[%s2934 + $0x118] sm:$0xff]
                %3007 = vst [vmem:[%s2935 + $0x208] sm:$0xff] %v3006
                %v3008 = vld [vmem:[%s2934 + $0x120] sm:$0xff]
                %3009 = vst [vmem:[%s2935 + $0x210] sm:$0xff] %v3008
                %v3010 = vld [vmem:[%s2934 + $0x128] sm:$0xff]
                %3011 = vst [vmem:[%s2935 + $0x218] sm:$0xff] %v3010
                %v3012 = vld [vmem:[%s2934 + $0x130] sm:$0xff]
                %3013 = vst [vmem:[%s2935 + $0x220] sm:$0xff] %v3012
                %v3014 = vld [vmem:[%s2934 + $0x138] sm:$0xff]
                %3015 = vst [vmem:[%s2935 + $0x228] sm:$0xff] %v3014
                %v3016 = vld [vmem:[%s2934 + $0x140] sm:$0xff]
                %3017 = vst [vmem:[%s2935 + $0x230] sm:$0xff] %v3016
                %v3018 = vld [vmem:[%s2934 + $0x148] sm:$0xff]
                %3019 = vst [vmem:[%s2935 + $0x238] sm:$0xff] %v3018
                %v3020 = vld [vmem:[%s2934 + $0x150] sm:$0xff]
                %3021 = vst [vmem:[%s2935 + $0x240] sm:$0xff] %v3020
                %v3022 = vld [vmem:[%s2934 + $0x158] sm:$0xff]
                %3023 = vst [vmem:[%s2935 + $0x248] sm:$0xff] %v3022
                %v3024 = vld [vmem:[%s2934 + $0x160] sm:$0xff]
                %3025 = vst [vmem:[%s2935 + $0x250] sm:$0xff] %v3024
                %v3026 = vld [vmem:[%s2934 + $0x168] sm:$0xff]
                %3027 = vst [vmem:[%s2935 + $0x258] sm:$0xff] %v3026
                %v3028 = vld [vmem:[%s2934 + $0x170] sm:$0xff]
                %3029 = vst [vmem:[%s2935 + $0x260] sm:$0xff] %v3028
                %v3030 = vld [vmem:[%s2934 + $0x178] sm:$0xff]
                %3031 = vst [vmem:[%s2935 + $0x268] sm:$0xff] %v3030
                %v3032 = vld [vmem:[%s2934 + $0x180] sm:$0xff]
                %3033 = vst [vmem:[%s2935 + $0x270] sm:$0xff] %v3032
                %v3034 = vld [vmem:[%s2934 + $0x188] sm:$0xff]
                %3035 = vst [vmem:[%s2935 + $0x278] sm:$0xff] %v3034
                %v3036 = vld [vmem:[%s2934 + $0x190] sm:$0xff]
                %3037 = vst [vmem:[%s2935 + $0x280] sm:$0xff] %v3036
                %v3038 = vld [vmem:[%s2934 + $0x198] sm:$0xff]
                %3039 = vst [vmem:[%s2935 + $0x288] sm:$0xff] %v3038
                %v3040 = vld [vmem:[%s2934 + $0x1a0] sm:$0xff]
                %3041 = vst [vmem:[%s2935 + $0x290] sm:$0xff] %v3040
                %v3042 = vld [vmem:[%s2934 + $0x1a8] sm:$0xff]
                %3043 = vst [vmem:[%s2935 + $0x298] sm:$0xff] %v3042
                %v3044 = vld [vmem:[%s2934 + $0x1b0] sm:$0xff]
                %3045 = vst [vmem:[%s2935 + $0x2a0] sm:$0xff] %v3044
                %v3046 = vld [vmem:[%s2934 + $0x1b8] sm:$0xff]
                %3047 = vst [vmem:[%s2935 + $0x2a8] sm:$0xff] %v3046
                %v3048 = vld [vmem:[%s2934 + $0x1c0] sm:$0xff]
                %3049 = vst [vmem:[%s2935 + $0x2b0] sm:$0xff] %v3048
                %v3050 = vld [vmem:[%s2934 + $0x1c8] sm:$0xff]
                %3051 = vst [vmem:[%s2935 + $0x2b8] sm:$0xff] %v3050
                %v3052 = vld [vmem:[%s2934 + $0x1d0] sm:$0xff]
                %3053 = vst [vmem:[%s2935 + $0x2c0] sm:$0xff] %v3052
                %v3054 = vld [vmem:[%s2934 + $0x1d8] sm:$0xff]
                %3055 = vst [vmem:[%s2935 + $0x2c8] sm:$0xff] %v3054
              $region72: #{net_forward.4} parent=66 // loop_footer
                %s2933 = sadd.s32 1, %s2929
              $region73: #{net_forward.4} parent=66 // loop_footer_branch
                %2928 = sbr.rel target = $region69
              $region74: #{net_forward.4} parent=66 // loop_exit
                _
            $region67: #{net_forward.4} parent=62 // pred_fallthru
              _
            // Predicated region
            $region75: #{net_forward.4} parent=62 // pred_check
              _
            $region76: #{net_forward.4} parent=62 // pred_check_branch
              %3057 = sbr.rel target = $region78
            $region77: #{net_forward.4} parent=62 // pred_region
              _
            $region78: #{net_forward.4} parent=62 // pred_fallthru
              _
          $region63: #{net_forward.4} parent=58 // pred_fallthru
            _
          %3058 = vnop
        $region59: #{net_forward.4} parent=50 // pred_fallthru
          _
      $region51: #{net_forward.4} parent=5 // pred_fallthru
        _
      %p3059 = scmp.le.s32.totalorder 2, %s9
      // Predicated region
      $region79: #{net_forward.4} parent=5 // pred_check
        %p3060 = pneg %p3059
      $region80: #{net_forward.4} parent=5 // pred_check_branch
        %3062 = sbr.rel (%p3060) target = $region82
      $region81: #{net_forward.4} parent=5 // pred_region
        %s3063 = ssub.s32 %s9, 2
        // Predicated region
        $region83: #{net_forward.4} parent=81 // pred_check
          %p3064 = pneg %p106
        $region84: #{net_forward.4} parent=81 // pred_check_branch
          %3066 = sbr.rel (%p3064) target = $region86
        $region85: #{net_forward.4} parent=81 // pred_region
          %s3067 = sand.u32 %s91, 1
          %s3068 = sand.u32 %s91, 1
          %s3069 = smul.addr %s3068, 480
          %s3070 = scalar_lea.vmem [#allocation3], %s3069
        $region86: #{net_forward.4} parent=81 // pred_fallthru
          _
      $region82: #{net_forward.4} parent=5 // pred_fallthru
        _
    $region6: #{net_forward.4} parent=1 // loop_footer
      %s13 = sadd.s32 1, %s9
    $region7: #{net_forward.4} parent=1 // loop_footer_branch
      %8 = sbr.rel target = $region3
    $region8: #{net_forward.4} parent=1 // loop_exit
      _

// kernel: net_forward.5
$region0: #{net_forward.5}
  #allocation0 [shape = 'u32[]', space=smem, size = 0x4, offset = 0x4, fixed_abs, tag = 'smem constant byte address 0x4 - core index']
  #allocation1 [shape = 'u32[144,128]{1,0:T(1,128)}', space=vmem, size = 0x12000, scoped, tag = 'internal scratch']
  %s0 = inlined_call_operand.vmem [shape: f32[32,256], index: 0, kind: input, shape index: {}]
  %s1 = inlined_call_operand.vmem [shape: f32[256,512], index: 1, kind: input, shape index: {}]
  %s2 = inlined_call_operand.vmem [shape: f32[32,1], index: 2, kind: input, shape index: {}]
  %s3 = inlined_call_operand.vmem [shape: f32[32,512], index: 3, kind: output, shape index: {}]
  %s4 = sld [smem:[#allocation0]]
  $region87: #{net_forward.5} parent=0
    _
  %s6 = ssub.s32 1, %s4
  %s7 = scalar_select 0, %s6, %s4
  $region1: #{net_forward.5} parent=0
    #allocation2 [shape = 'u8[524288]{0}', space=vmem, size = 0x80000, scoped, tag = 'input window, operand 1']
    #allocation3 [shape = 'u8[65536]{0}', space=vmem, size = 0x10000, scoped, tag = 'output window, operand 0']
    loop: start=0, step=1, limit=4
    $region2: #{net_forward.5} parent=1 // loop_pre_header
      _
    $region3: #{net_forward.5} parent=1 // loop_header
      %s9 = sphi 0, %s13
      %p10 = scmp.ge.s32.totalorder %s9, 4
      %s17 = sphi 0, %s17
      %s19 = sphi 0, %s17
      %s20 = sphi 0, %s19
      %s34 = sphi 0, %s20
      %s40 = sphi 0, %s42
      %s43 = sphi 0, %s40
      %s44 = sphi 0, %s43
      %s60 = sphi 0, %s44
      %s64 = sphi 0, %s64
      %s66 = sphi 0, %s64
      %s67 = sphi 0, %s66
      %s81 = sphi 0, %s67
      %s87 = sphi 0, %s89
      %s90 = sphi 0, %s87
      %s91 = sphi 0, %s90
      %s107 = sphi 0, %s91
    $region4: #{net_forward.5} parent=1 // loop_header_branch
      %12 = sbr.rel (%p10) target = $region8
    $region5: #{net_forward.5} parent=1 // loop_body
      %s14 = ssub.s32 %s9, 1
      %s15 = ssub.s32 %s9, 2
      %s16 = sadd.s32 %s9, 1
      %s18 = sadd.s32 %s17, 1
      %p21 = scmp.eq.s32.totalorder %s9, 1
      %p22 = scmp.ne.s32.totalorder %s17, %s19
      %p23 = scmp.eq.s32.totalorder %s9, 0
      %p24 = por %p22, %p23
      %p25 = scmp.ne.s32.totalorder %s17, %s19
      %p26 = scmp.eq.s32.totalorder %s14, 1
      %p27 = por %p25, %p26
      %p28 = scmp.ne.s32.totalorder %s19, %s20
      %p29 = scmp.eq.s32.totalorder %s14, 0
      %p30 = por %p28, %p29
      %p31 = scmp.ne.s32.totalorder %s19, %s20
      %p32 = scmp.eq.s32.totalorder %s15, 1
      %p33 = por %p31, %p32
      %p35 = scmp.ne.s32.totalorder %s20, %s34
      %p36 = scmp.eq.s32.totalorder %s15, 0
      %p37 = por %p35, %p36
      %s38 = ssub.s32 %s9, %s16
      %p39 = scmp.eq.s32.totalorder %s38, 0
      %s41 = sadd.s32 %s40, 1
      %s42 = scalar_select %p39, %s40, %s41
      %p45 = pneg %p39
      %p46 = scmp.eq.s32.totalorder %s9, 1
      %p47 = por %p45, %p46
      %p48 = scmp.ne.s32.totalorder %s40, %s43
      %p49 = scmp.eq.s32.totalorder %s9, 0
      %p50 = por %p48, %p49
      %p51 = scmp.ne.s32.totalorder %s40, %s43
      %p52 = scmp.eq.s32.totalorder %s14, 1
      %p53 = por %p51, %p52
      %p54 = scmp.ne.s32.totalorder %s43, %s44
      %p55 = scmp.eq.s32.totalorder %s14, 0
      %p56 = por %p54, %p55
      %p57 = scmp.ne.s32.totalorder %s43, %s44
      %p58 = scmp.eq.s32.totalorder %s15, 1
      %p59 = por %p57, %p58
      %p61 = scmp.ne.s32.totalorder %s44, %s60
      %p62 = scmp.eq.s32.totalorder %s15, 0
      %p63 = por %p61, %p62
      %s65 = sadd.s32 %s64, 1
      %p68 = scmp.eq.s32.totalorder %s9, 1
      %p69 = scmp.ne.s32.totalorder %s64, %s66
      %p70 = scmp.eq.s32.totalorder %s9, 0
      %p71 = por %p69, %p70
      %p72 = scmp.ne.s32.totalorder %s64, %s66
      %p73 = scmp.eq.s32.totalorder %s14, 1
      %p74 = por %p72, %p73
      %p75 = scmp.ne.s32.totalorder %s66, %s67
      %p76 = scmp.eq.s32.totalorder %s14, 0
      %p77 = por %p75, %p76
      %p78 = scmp.ne.s32.totalorder %s66, %s67
      %p79 = scmp.eq.s32.totalorder %s15, 1
      %p80 = por %p78, %p79
      %p82 = scmp.ne.s32.totalorder %s67, %s81
      %p83 = scmp.eq.s32.totalorder %s15, 0
      %p84 = por %p82, %p83
      %s85 = ssub.s32 %s9, %s16
      %p86 = scmp.eq.s32.totalorder %s85, 0
      %s88 = sadd.s32 %s87, 1
      %s89 = scalar_select %p86, %s87, %s88
      %p92 = pneg %p86
      %p93 = scmp.eq.s32.totalorder %s9, 1
      %p94 = por %p92, %p93
      %p95 = scmp.ne.s32.totalorder %s87, %s90
      %p96 = scmp.eq.s32.totalorder %s9, 0
      %p97 = por %p95, %p96
      %p98 = scmp.ne.s32.totalorder %s87, %s90
      %p99 = scmp.eq.s32.totalorder %s14, 1
      %p100 = por %p98, %p99
      %p101 = scmp.ne.s32.totalorder %s90, %s91
      %p102 = scmp.eq.s32.totalorder %s14, 0
      %p103 = por %p101, %p102
      %p104 = scmp.ne.s32.totalorder %s90, %s91
      %p105 = scmp.eq.s32.totalorder %s15, 1
      %p106 = por %p104, %p105
      %p108 = scmp.ne.s32.totalorder %s91, %s107
      %p109 = scmp.eq.s32.totalorder %s15, 0
      %p110 = por %p108, %p109
      %p111 = scmp.le.s32.totalorder 1, %s9
      %p112 = scmp.lt.s32.totalorder %s9, 3
      %p113 = pnand %p111, %p112
      %p114 = pneg %p113
      // Predicated region
      $region9: #{net_forward.5} parent=5 // pred_check
        _
      $region10: #{net_forward.5} parent=5 // pred_check_branch
        %116 = sbr.rel (%p113) target = $region12
      $region11: #{net_forward.5} parent=5 // pred_region
        %s117 = ssub.s32 %s9, 1
        // Predicated region
        $region13: #{net_forward.5} parent=11 // pred_check
          %p118 = pneg %p30
        $region14: #{net_forward.5} parent=11 // pred_check_branch
          %120 = sbr.rel (%p118) target = $region16
        $region15: #{net_forward.5} parent=11 // pred_region
          _
        $region16: #{net_forward.5} parent=11 // pred_fallthru
          _
        // Predicated region
        $region17: #{net_forward.5} parent=11 // pred_check
          %p121 = pneg %p77
        $region18: #{net_forward.5} parent=11 // pred_check_branch
          %123 = sbr.rel (%p121) target = $region20
        $region19: #{net_forward.5} parent=11 // pred_region
          _
        $region20: #{net_forward.5} parent=11 // pred_fallthru
          _
      $region12: #{net_forward.5} parent=5 // pred_fallthru
        _
      %p124 = scmp.lt.s32.totalorder %s9, 2
      // Predicated region
      $region21: #{net_forward.5} parent=5 // pred_check
        %p125 = pneg %p124
      $region22: #{net_forward.5} parent=5 // pred_check_branch
        %127 = sbr.rel (%p125) target = $region24
      $region23: #{net_forward.5} parent=5 // pred_region
        // Predicated region
        $region25: #{net_forward.5} parent=23 // pred_check
          %p128 = pneg %p50
        $region26: #{net_forward.5} parent=23 // pred_check_branch
          %130 = sbr.rel (%p128) target = $region28
        $region27: #{net_forward.5} parent=23 // pred_region
          %s131 = sand.u32 %s40, 1
          %s132 = sand.u32 %s40, 1
          %s133 = smul.addr %s132, 512
          %s134 = scalar_lea.vmem [#allocation2], %s133
          %s135 = smul.u32 2, %s9
          %s136 = smul.addr %s135, 8
          %s137 = scalar_lea.vmem %s1, %s136
          // Predicated region
          $region29: #{net_forward.5} parent=27 // pred_check
            _
          $region30: #{net_forward.5} parent=27 // pred_check_branch
            %139 = sbr.rel (0) target = $region32
          $region31: #{net_forward.5} parent=27 // pred_region
            // Predicated region
            $region33: #{net_forward.5} parent=31 // pred_check
              _
            $region34: #{net_forward.5} parent=31 // pred_check_branch
              %141 = sbr.rel (0) target = $region36
            $region35: #{net_forward.5} parent=31 // pred_region
              loop: start=0, step=1, limit=1
              $region37: #{net_forward.5} parent=35 // loop_pre_header
                _
              $region38: #{net_forward.5} parent=35 // loop_header
                %s143 = sphi 0, %s147
                %p144 = scmp.ge.s32.totalorder %s143, 1
                %s148 = sphi %s137, %s137
                %s149 = sphi %s134, %s134
              $region39: #{net_forward.5} parent=35 // loop_header_branch
                %146 = sbr.rel (%p144) target = $region43
              $region40: #{net_forward.5} parent=35 // loop_body
                %v150 = vld [vmem:[%s148] sm:$0xff]
                %151 = vst [vmem:[%s149] sm:$0xff] %v150
                %v152 = vld [vmem:[%s148 + $0x8] sm:$0xff]
                %153 = vst [vmem:[%s149 + $0x8] sm:$0xff] %v152
                %v154 = vld [vmem:[%s148 + $0x20] sm:$0xff]
                %155 = vst [vmem:[%s149 + $0x10] sm:$0xff] %v154
                %v156 = vld [vmem:[%s148 + $0x28] sm:$0xff]
                %157 = vst [vmem:[%s149 + $0x18] sm:$0xff] %v156
                %v158 = vld [vmem:[%s148 + $0x40] sm:$0xff]
                %159 = vst [vmem:[%s149 + $0x20] sm:$0xff] %v158
                %v160 = vld [vmem:[%s148 + $0x48] sm:$0xff]
                %161 = vst [vmem:[%s149 + $0x28] sm:$0xff] %v160
                %v162 = vld [vmem:[%s148 + $0x60] sm:$0xff]
                %163 = vst [vmem:[%s149 + $0x30] sm:$0xff] %v162
                %v164 = vld [vmem:[%s148 + $0x68] sm:$0xff]
                %165 = vst [vmem:[%s149 + $0x38] sm:$0xff] %v164
                %v166 = vld [vmem:[%s148 + $0x80] sm:$0xff]
                %167 = vst [vmem:[%s149 + $0x40] sm:$0xff] %v166
                %v168 = vld [vmem:[%s148 + $0x88] sm:$0xff]
                %169 = vst [vmem:[%s149 + $0x48] sm:$0xff] %v168
                %v170 = vld [vmem:[%s148 + $0xa0] sm:$0xff]
                %171 = vst [vmem:[%s149 + $0x50] sm:$0xff] %v170
                %v172 = vld [vmem:[%s148 + $0xa8] sm:$0xff]
                %173 = vst [vmem:[%s149 + $0x58] sm:$0xff] %v172
                %v174 = vld [vmem:[%s148 + $0xc0] sm:$0xff]
                %175 = vst [vmem:[%s149 + $0x60] sm:$0xff] %v174
                %v176 = vld [vmem:[%s148 + $0xc8] sm:$0xff]
                %177 = vst [vmem:[%s149 + $0x68] sm:$0xff] %v176
                %v178 = vld [vmem:[%s148 + $0xe0] sm:$0xff]
                %179 = vst [vmem:[%s149 + $0x70] sm:$0xff] %v178
                %v180 = vld [vmem:[%s148 + $0xe8] sm:$0xff]
                %181 = vst [vmem:[%s149 + $0x78] sm:$0xff] %v180
                %v182 = vld [vmem:[%s148 + $0x100] sm:$0xff]
                %183 = vst [vmem:[%s149 + $0x80] sm:$0xff] %v182
                %v184 = vld [vmem:[%s148 + $0x108] sm:$0xff]
                %185 = vst [vmem:[%s149 + $0x88] sm:$0xff] %v184
                %v186 = vld [vmem:[%s148 + $0x120] sm:$0xff]
                %187 = vst [vmem:[%s149 + $0x90] sm:$0xff] %v186
                %v188 = vld [vmem:[%s148 + $0x128] sm:$0xff]
                %189 = vst [vmem:[%s149 + $0x98] sm:$0xff] %v188
                %v190 = vld [vmem:[%s148 + $0x140] sm:$0xff]
                %191 = vst [vmem:[%s149 + $0xa0] sm:$0xff] %v190
                %v192 = vld [vmem:[%s148 + $0x148] sm:$0xff]
                %193 = vst [vmem:[%s149 + $0xa8] sm:$0xff] %v192
                %v194 = vld [vmem:[%s148 + $0x160] sm:$0xff]
                %195 = vst [vmem:[%s149 + $0xb0] sm:$0xff] %v194
                %v196 = vld [vmem:[%s148 + $0x168] sm:$0xff]
                %197 = vst [vmem:[%s149 + $0xb8] sm:$0xff] %v196
                %v198 = vld [vmem:[%s148 + $0x180] sm:$0xff]
                %199 = vst [vmem:[%s149 + $0xc0] sm:$0xff] %v198
                %v200 = vld [vmem:[%s148 + $0x188] sm:$0xff]
                %201 = vst [vmem:[%s149 + $0xc8] sm:$0xff] %v200
                %v202 = vld [vmem:[%s148 + $0x1a0] sm:$0xff]
                %203 = vst [vmem:[%s149 + $0xd0] sm:$0xff] %v202
                %v204 = vld [vmem:[%s148 + $0x1a8] sm:$0xff]
                %205 = vst [vmem:[%s149 + $0xd8] sm:$0xff] %v204
                %v206 = vld [vmem:[%s148 + $0x1c0] sm:$0xff]
                %207 = vst [vmem:[%s149 + $0xe0] sm:$0xff] %v206
                %v208 = vld [vmem:[%s148 + $0x1c8] sm:$0xff]
                %209 = vst [vmem:[%s149 + $0xe8] sm:$0xff] %v208
                %v210 = vld [vmem:[%s148 + $0x1e0] sm:$0xff]
                %211 = vst [vmem:[%s149 + $0xf0] sm:$0xff] %v210
                %v212 = vld [vmem:[%s148 + $0x1e8] sm:$0xff]
                %213 = vst [vmem:[%s149 + $0xf8] sm:$0xff] %v212
                %v214 = vld [vmem:[%s148 + $0x200] sm:$0xff]
                %215 = vst [vmem:[%s149 + $0x100] sm:$0xff] %v214
                %v216 = vld [vmem:[%s148 + $0x208] sm:$0xff]
                %217 = vst [vmem:[%s149 + $0x108] sm:$0xff] %v216
                %v218 = vld [vmem:[%s148 + $0x220] sm:$0xff]
                %219 = vst [vmem:[%s149 + $0x110] sm:$0xff] %v218
                %v220 = vld [vmem:[%s148 + $0x228] sm:$0xff]
                %221 = vst [vmem:[%s149 + $0x118] sm:$0xff] %v220
                %v222 = vld [vmem:[%s148 + $0x240] sm:$0xff]
                %223 = vst [vmem:[%s149 + $0x120] sm:$0xff] %v222
                %v224 = vld [vmem:[%s148 + $0x248] sm:$0xff]
                %225 = vst [vmem:[%s149 + $0x128] sm:$0xff] %v224
                %v226 = vld [vmem:[%s148 + $0x260] sm:$0xff]
                %227 = vst [vmem:[%s149 + $0x130] sm:$0xff] %v226
                %v228 = vld [vmem:[%s148 + $0x268] sm:$0xff]
                %229 = vst [vmem:[%s149 + $0x138] sm:$0xff] %v228
                %v230 = vld [vmem:[%s148 + $0x280] sm:$0xff]
                %231 = vst [vmem:[%s149 + $0x140] sm:$0xff] %v230
                %v232 = vld [vmem:[%s148 + $0x288] sm:$0xff]
                %233 = vst [vmem:[%s149 + $0x148] sm:$0xff] %v232
                %v234 = vld [vmem:[%s148 + $0x2a0] sm:$0xff]
                %235 = vst [vmem:[%s149 + $0x150] sm:$0xff] %v234
                %v236 = vld [vmem:[%s148 + $0x2a8] sm:$0xff]
                %237 = vst [vmem:[%s149 + $0x158] sm:$0xff] %v236
                %v238 = vld [vmem:[%s148 + $0x2c0] sm:$0xff]
                %239 = vst [vmem:[%s149 + $0x160] sm:$0xff] %v238
                %v240 = vld [vmem:[%s148 + $0x2c8] sm:$0xff]
                %241 = vst [vmem:[%s149 + $0x168] sm:$0xff] %v240
                %v242 = vld [vmem:[%s148 + $0x2e0] sm:$0xff]
                %243 = vst [vmem:[%s149 + $0x170] sm:$0xff] %v242
                %v244 = vld [vmem:[%s148 + $0x2e8] sm:$0xff]
                %245 = vst [vmem:[%s149 + $0x178] sm:$0xff] %v244
                %v246 = vld [vmem:[%s148 + $0x300] sm:$0xff]
                %247 = vst [vmem:[%s149 + $0x180] sm:$0xff] %v246
                %v248 = vld [vmem:[%s148 + $0x308] sm:$0xff]
                %249 = vst [vmem:[%s149 + $0x188] sm:$0xff] %v248
                %v250 = vld [vmem:[%s148 + $0x320] sm:$0xff]
                %251 = vst [vmem:[%s149 + $0x190] sm:$0xff] %v250
                %v252 = vld [vmem:[%s148 + $0x328] sm:$0xff]
                %253 = vst [vmem:[%s149 + $0x198] sm:$0xff] %v252
                %v254 = vld [vmem:[%s148 + $0x340] sm:$0xff]
                %255 = vst [vmem:[%s149 + $0x1a0] sm:$0xff] %v254
                %v256 = vld [vmem:[%s148 + $0x348] sm:$0xff]
                %257 = vst [vmem:[%s149 + $0x1a8] sm:$0xff] %v256
                %v258 = vld [vmem:[%s148 + $0x360] sm:$0xff]
                %259 = vst [vmem:[%s149 + $0x1b0] sm:$0xff] %v258
                %v260 = vld [vmem:[%s148 + $0x368] sm:$0xff]
                %261 = vst [vmem:[%s149 + $0x1b8] sm:$0xff] %v260
                %v262 = vld [vmem:[%s148 + $0x380] sm:$0xff]
                %263 = vst [vmem:[%s149 + $0x1c0] sm:$0xff] %v262
                %v264 = vld [vmem:[%s148 + $0x388] sm:$0xff]
                %265 = vst [vmem:[%s149 + $0x1c8] sm:$0xff] %v264
                %v266 = vld [vmem:[%s148 + $0x3a0] sm:$0xff]
                %267 = vst [vmem:[%s149 + $0x1d0] sm:$0xff] %v266
                %v268 = vld [vmem:[%s148 + $0x3a8] sm:$0xff]
                %269 = vst [vmem:[%s149 + $0x1d8] sm:$0xff] %v268
                %v270 = vld [vmem:[%s148 + $0x3c0] sm:$0xff]
                %271 = vst [vmem:[%s149 + $0x1e0] sm:$0xff] %v270
                %v272 = vld [vmem:[%s148 + $0x3c8] sm:$0xff]
                %273 = vst [vmem:[%s149 + $0x1e8] sm:$0xff] %v272
                %v274 = vld [vmem:[%s148 + $0x3e0] sm:$0xff]
                %275 = vst [vmem:[%s149 + $0x1f0] sm:$0xff] %v274
                %v276 = vld [vmem:[%s148 + $0x3e8] sm:$0xff]
                %277 = vst [vmem:[%s149 + $0x1f8] sm:$0xff] %v276
              $region41: #{net_forward.5} parent=35 // loop_footer
                %s147 = sadd.s32 1, %s143
              $region42: #{net_forward.5} parent=35 // loop_footer_branch
                %142 = sbr.rel target = $region38
              $region43: #{net_forward.5} parent=35 // loop_exit
                _
            $region36: #{net_forward.5} parent=31 // pred_fallthru
              _
            // Predicated region
            $region44: #{net_forward.5} parent=31 // pred_check
              _
            $region45: #{net_forward.5} parent=31 // pred_check_branch
              %279 = sbr.rel target = $region47
            $region46: #{net_forward.5} parent=31 // pred_region
              _
            $region47: #{net_forward.5} parent=31 // pred_fallthru
              _
          $region32: #{net_forward.5} parent=27 // pred_fallthru
            _
          %280 = vnop
        $region28: #{net_forward.5} parent=23 // pred_fallthru
          _
      $region24: #{net_forward.5} parent=5 // pred_fallthru
        _
      %p281 = scmp.le.s32.totalorder 1, %s9
      %p282 = scmp.lt.s32.totalorder %s9, 3
      %p283 = pnand %p281, %p282
      %p284 = pneg %p283
      // Predicated region
      $region48: #{net_forward.5} parent=5 // pred_check
        _
      $region49: #{net_forward.5} parent=5 // pred_check_branch
        %286 = sbr.rel (%p283) target = $region51
      $region50: #{net_forward.5} parent=5 // pred_region
        %s287 = ssub.s32 %s9, 1
        %s288 = sand.u32 %s43, 1
        %s289 = sand.u32 %s43, 1
        %s290 = smul.addr %s289, 512
        %s291 = scalar_lea.vmem [#allocation2], %s290
        // Predicated region
        $region52: #{net_forward.5} parent=50 // pred_check
          %p292 = pneg %p56
        $region53: #{net_forward.5} parent=50 // pred_check_branch
          %294 = sbr.rel (%p292) target = $region55
        $region54: #{net_forward.5} parent=50 // pred_region
          _
        $region55: #{net_forward.5} parent=50 // pred_fallthru
          _
        %p295 = pneg %p30
        %p296 = pneg %p27
        %s297 = sand.u32 %s43, 1
        %s298 = sand.u32 %s43, 1
        %s299 = smul.addr %s298, 512
        %s300 = scalar_lea.vmem [#allocation2], %s299
        %p301 = pneg %p56
        %p302 = pneg %p53
        %p303 = pneg %p77
        %p304 = pneg %p74
        %p305 = pneg %p103
        %p306 = pneg %p100
        %s307 = sand.u32 %s90, 1
        %s308 = sand.u32 %s90, 1
        %s309 = smul.addr %s308, 64
        %s310 = scalar_lea.vmem [#allocation3], %s309
        %s311 = smul.u32 2, %s14
        %s312 = smul.u32 2, %s14
        %v313 = vld [vmem:[%s0] sm:$0xff]
        %v314 = vld [vmem:[%s0 + $0x8] sm:$0xff]
        %v315 = vld [vmem:[%s0 + $0x10] sm:$0xff]
        %v316 = vld [vmem:[%s0 + $0x18] sm:$0xff]
        %v317 = vld [vmem:[%s0 + $0x20] sm:$0xff]
        %v318 = vld [vmem:[%s0 + $0x28] sm:$0xff]
        %v319 = vld [vmem:[%s0 + $0x30] sm:$0xff]
        %v320 = vld [vmem:[%s0 + $0x38] sm:$0xff]
        %v321 = vld [vmem:[%s291] sm:$0xff]
        %v322 = vld [vmem:[%s291 + $0x8] sm:$0xff]
        %v323 = vld [vmem:[%s291 + $0x10] sm:$0xff]
        %v324 = vld [vmem:[%s291 + $0x18] sm:$0xff]
        %v325 = vld [vmem:[%s291 + $0x20] sm:$0xff]
        %v326 = vld [vmem:[%s291 + $0x28] sm:$0xff]
        %v327 = vld [vmem:[%s291 + $0x30] sm:$0xff]
        %v328 = vld [vmem:[%s291 + $0x38] sm:$0xff]
        %v329 = vld [vmem:[%s291 + $0x40] sm:$0xff]
        %v330 = vld [vmem:[%s291 + $0x48] sm:$0xff]
        %v331 = vld [vmem:[%s291 + $0x50] sm:$0xff]
        %v332 = vld [vmem:[%s291 + $0x58] sm:$0xff]
        %v333 = vld [vmem:[%s291 + $0x60] sm:$0xff]
        %v334 = vld [vmem:[%s291 + $0x68] sm:$0xff]
        %v335 = vld [vmem:[%s291 + $0x70] sm:$0xff]
        %v336 = vld [vmem:[%s291 + $0x78] sm:$0xff]
        %v337 = vld [vmem:[%s291 + $0x80] sm:$0xff]
        %v338 = vld [vmem:[%s291 + $0x88] sm:$0xff]
        %v339 = vld [vmem:[%s291 + $0x90] sm:$0xff]
        %v340 = vld [vmem:[%s291 + $0x98] sm:$0xff]
        %v341 = vld [vmem:[%s291 + $0xa0] sm:$0xff]
        %v342 = vld [vmem:[%s291 + $0xa8] sm:$0xff]
        %v343 = vld [vmem:[%s291 + $0xb0] sm:$0xff]
        %v344 = vld [vmem:[%s291 + $0xb8] sm:$0xff]
        %v345 = vld [vmem:[%s291 + $0xc0] sm:$0xff]
        %v346 = vld [vmem:[%s291 + $0xc8] sm:$0xff]
        %v347 = vld [vmem:[%s291 + $0xd0] sm:$0xff]
        %v348 = vld [vmem:[%s291 + $0xd8] sm:$0xff]
        %v349 = vld [vmem:[%s291 + $0xe0] sm:$0xff]
        %v350 = vld [vmem:[%s291 + $0xe8] sm:$0xff]
        %v351 = vld [vmem:[%s291 + $0xf0] sm:$0xff]
        %v352 = vld [vmem:[%s291 + $0xf8] sm:$0xff]
        %v353 = vld [vmem:[%s291 + $0x100] sm:$0xff]
        %v354 = vld [vmem:[%s291 + $0x108] sm:$0xff]
        %v355 = vld [vmem:[%s291 + $0x110] sm:$0xff]
        %v356 = vld [vmem:[%s291 + $0x118] sm:$0xff]
        %v357 = vld [vmem:[%s291 + $0x120] sm:$0xff]
        %v358 = vld [vmem:[%s291 + $0x128] sm:$0xff]
        %v359 = vld [vmem:[%s291 + $0x130] sm:$0xff]
        %v360 = vld [vmem:[%s291 + $0x138] sm:$0xff]
        %v361 = vld [vmem:[%s291 + $0x140] sm:$0xff]
        %v362 = vld [vmem:[%s291 + $0x148] sm:$0xff]
        %v363 = vld [vmem:[%s291 + $0x150] sm:$0xff]
        %v364 = vld [vmem:[%s291 + $0x158] sm:$0xff]
        %v365 = vld [vmem:[%s291 + $0x160] sm:$0xff]
        %v366 = vld [vmem:[%s291 + $0x168] sm:$0xff]
        %v367 = vld [vmem:[%s291 + $0x170] sm:$0xff]
        %v368 = vld [vmem:[%s291 + $0x178] sm:$0xff]
        %v369 = vld [vmem:[%s291 + $0x180] sm:$0xff]
        %v370 = vld [vmem:[%s291 + $0x188] sm:$0xff]
        %v371 = vld [vmem:[%s291 + $0x190] sm:$0xff]
        %v372 = vld [vmem:[%s291 + $0x198] sm:$0xff]
        %v373 = vld [vmem:[%s291 + $0x1a0] sm:$0xff]
        %v374 = vld [vmem:[%s291 + $0x1a8] sm:$0xff]
        %v375 = vld [vmem:[%s291 + $0x1b0] sm:$0xff]
        %v376 = vld [vmem:[%s291 + $0x1b8] sm:$0xff]
        %v377 = vld [vmem:[%s291 + $0x1c0] sm:$0xff]
        %v378 = vld [vmem:[%s291 + $0x1c8] sm:$0xff]
        %v379 = vld [vmem:[%s291 + $0x1d0] sm:$0xff]
        %v380 = vld [vmem:[%s291 + $0x1d8] sm:$0xff]
        %v381 = vld [vmem:[%s291 + $0x1e0] sm:$0xff]
        %v382 = vld [vmem:[%s291 + $0x1e8] sm:$0xff]
        %v383 = vld [vmem:[%s291 + $0x1f0] sm:$0xff]
        %v384 = vld [vmem:[%s291 + $0x1f8] sm:$0xff]
        %v385 = vld [vmem:[%s2] sm:$0xff]
        %v386 = vld [vmem:[%s2 + $0x8] sm:$0xff]
        %v387 = vld [vmem:[%s2 + $0x10] sm:$0xff]
        %v388 = vld [vmem:[%s2 + $0x18] sm:$0xff]
        %390 = vset.pattern.permute.xlu0 0
        %391 = vperm.xlu0 %390, %v385
        %v392 = vpop.permute.xlu0 %391
        %395 = vset.pattern.permute.xlu0 0
        %396 = vperm.xlu0 %395, %v386
        %v397 = vpop.permute.xlu0 %396
        %400 = vset.pattern.permute.xlu0 0
        %401 = vperm.xlu0 %400, %v387
        %v402 = vpop.permute.xlu0 %401
        %405 = vset.pattern.permute.xlu0 0
        %406 = vperm.xlu0 %405, %v388
        %v407 = vpop.permute.xlu0 %406
        %409 = vmatprep.subr.mxu0 %v352
        %410 = vmatpush1.msra.mxu0 %v351
        %411 = vmatprep.subr.mxu0 %v350
        %412 = vmatpush1.msra.mxu0 %v349
        %413 = vmatprep.subr.mxu0 %v348
        %414 = vmatpush1.msra.mxu0 %v347
        %415 = vmatprep.subr.mxu0 %v346
        %416 = vmatpush1.msra.mxu0 %v345
        %417 = vmatprep.subr.mxu0 %v344
        %418 = vmatpush1.msra.mxu0 %v343
        %419 = vmatprep.subr.mxu0 %v342
        %420 = vmatpush1.msra.mxu0 %v341
        %421 = vmatprep.subr.mxu0 %v340
        %422 = vmatpush1.msra.mxu0 %v339
        %423 = vmatprep.subr.mxu0 %v338
        %424 = vmatpush1.msra.mxu0 %v337
        %425 = vmatprep.subr.mxu0 %v336
        %426 = vmatpush1.msra.mxu0 %v335
        %427 = vmatprep.subr.mxu0 %v334
        %428 = vmatpush1.msra.mxu0 %v333
        %429 = vmatprep.subr.mxu0 %v332
        %430 = vmatpush1.msra.mxu0 %v331
        %431 = vmatprep.subr.mxu0 %v330
        %432 = vmatpush1.msra.mxu0 %v329
        %433 = vmatprep.subr.mxu0 %v328
        %434 = vmatpush1.msra.mxu0 %v327
        %435 = vmatprep.subr.mxu0 %v326
        %436 = vmatpush1.msra.mxu0 %v325
        %437 = vmatprep.subr.mxu0 %v324
        %438 = vmatpush1.msra.mxu0 %v323
        %439 = vmatprep.subr.mxu0 %v322
        %440 = vmatpush1.msra.mxu0 %v321
        %441 = vmatprep.subr.mxu0 %v384
        %442 = vmatpush2.msra.mxu0 %v383
        %443 = vmatprep.subr.mxu0 %v382
        %444 = vmatpush2.msra.mxu0 %v381
        %445 = vmatprep.subr.mxu0 %v380
        %446 = vmatpush2.msra.mxu0 %v379
        %447 = vmatprep.subr.mxu0 %v378
        %448 = vmatpush2.msra.mxu0 %v377
        %449 = vmatprep.subr.mxu0 %v376
        %450 = vmatpush2.msra.mxu0 %v375
        %451 = vmatprep.subr.mxu0 %v374
        %452 = vmatpush2.msra.mxu0 %v373
        %453 = vmatprep.subr.mxu0 %v372
        %454 = vmatpush2.msra.mxu0 %v371
        %455 = vmatprep.subr.mxu0 %v370
        %456 = vmatpush2.msra.mxu0 %v369
        %457 = vmatprep.subr.mxu0 %v368
        %458 = vmatpush2.msra.mxu0 %v367
        %459 = vmatprep.subr.mxu0 %v366
        %460 = vmatpush2.msra.mxu0 %v365
        %461 = vmatprep.subr.mxu0 %v364
        %462 = vmatpush2.msra.mxu0 %v363
        %463 = vmatprep.subr.mxu0 %v362
        %464 = vmatpush2.msra.mxu0 %v361
        %465 = vmatprep.subr.mxu0 %v360
        %466 = vmatpush2.msra.mxu0 %v359
        %467 = vmatprep.subr.mxu0 %v358
        %468 = vmatpush2.msra.mxu0 %v357
        %469 = vmatprep.subr.mxu0 %v356
        %470 = vmatpush2.msra.mxu0 %v355
        %471 = vmatprep.subr.mxu0 %v354
        %472 = vmatpush2.msra.mxu0 %v353
        %473 = vmatprep.mubr.f32.mxu0 %v314
        %474 = vmatmul.mubr.f32.gmra.mxu0 %v313
        %v475 = vpop.f32.mrf.mxu0
        %v476 = vadd.f32 %v392, %v475
        %v477 = vpop.f32.mrf.mxu0
        %v478 = vadd.f32 %v392, %v477
        %479 = vmatprep.mubr.f32.mxu0 %v316
        %480 = vmatmul.mubr.f32.gmra.mxu0 %v315
        %v481 = vpop.f32.mrf.mxu0
        %v482 = vadd.f32 %v397, %v481
        %v483 = vpop.f32.mrf.mxu0
        %v484 = vadd.f32 %v397, %v483
        %485 = vmatprep.mubr.f32.mxu0 %v318
        %486 = vmatmul.mubr.f32.gmra.mxu0 %v317
        %v487 = vpop.f32.mrf.mxu0
        %v488 = vadd.f32 %v402, %v487
        %v489 = vpop.f32.mrf.mxu0
        %v490 = vadd.f32 %v402, %v489
        %491 = vmatprep.mubr.f32.mxu0 %v320
        %492 = vmatmul.mubr.f32.gmra.mxu0 %v319
        %v493 = vpop.f32.mrf.mxu0
        %v494 = vadd.f32 %v407, %v493
        %v495 = vpop.f32.mrf.mxu0
        %v496 = vadd.f32 %v407, %v495
        %497 = vdwg.mxu0
        %v498 = vmax.f32 %v476, 0.0
        %v499 = vmax.f32 %v478, 0.0
        %v500 = vmax.f32 %v482, 0.0
        %v501 = vmax.f32 %v484, 0.0
        %v502 = vmax.f32 %v488, 0.0
        %v503 = vmax.f32 %v490, 0.0
        %v504 = vmax.f32 %v494, 0.0
        %v505 = vmax.f32 %v496, 0.0
        %506 = vst [vmem:[%s310] sm:$0xff] %v498
        %507 = vst [vmem:[%s310 + $0x8] sm:$0xff] %v499
        %508 = vst [vmem:[%s310 + $0x10] sm:$0xff] %v500
        %509 = vst [vmem:[%s310 + $0x18] sm:$0xff] %v501
        %510 = vst [vmem:[%s310 + $0x20] sm:$0xff] %v502
        %511 = vst [vmem:[%s310 + $0x28] sm:$0xff] %v503
        %512 = vst [vmem:[%s310 + $0x30] sm:$0xff] %v504
        %513 = vst [vmem:[%s310 + $0x38] sm:$0xff] %v505
        %s514 = sand.u32 %s90, 1
        %s515 = sand.u32 %s90, 1
        %s516 = smul.addr %s515, 64
        %s517 = scalar_lea.vmem [#allocation3], %s516
        // Predicated region
        $region56: #{net_forward.5} parent=50 // pred_check
          %p518 = pneg %p100
        $region57: #{net_forward.5} parent=50 // pred_check_branch
          %520 = sbr.rel (%p518) target = $region59
        $region58: #{net_forward.5} parent=50 // pred_region
          %s521 = smul.u32 2, %s14
          %s522 = smul.addr %s521, 8
          %s523 = scalar_lea.vmem %s3, %s522
          // Predicated region
          $region60: #{net_forward.5} parent=58 // pred_check
            _
          $region61: #{net_forward.5} parent=58 // pred_check_branch
            %525 = sbr.rel (0) target = $region63
          $region62: #{net_forward.5} parent=58 // pred_region
            // Predicated region
            $region64: #{net_forward.5} parent=62 // pred_check
              _
            $region65: #{net_forward.5} parent=62 // pred_check_branch
              %527 = sbr.rel (0) target = $region67
            $region66: #{net_forward.5} parent=62 // pred_region
              loop: start=0, step=1, limit=1
              $region68: #{net_forward.5} parent=66 // loop_pre_header
                _
              $region69: #{net_forward.5} parent=66 // loop_header
                %s529 = sphi 0, %s533
                %p530 = scmp.ge.s32.totalorder %s529, 1
                %s534 = sphi %s517, %s517
                %s535 = sphi %s523, %s523
              $region70: #{net_forward.5} parent=66 // loop_header_branch
                %532 = sbr.rel (%p530) target = $region74
              $region71: #{net_forward.5} parent=66 // loop_body
                %v536 = vld [vmem:[%s534] sm:$0xff]
                %537 = vst [vmem:[%s535] sm:$0xff] %v536
                %v538 = vld [vmem:[%s534 + $0x8] sm:$0xff]
                %539 = vst [vmem:[%s535 + $0x8] sm:$0xff] %v538
                %v540 = vld [vmem:[%s534 + $0x10] sm:$0xff]
                %541 = vst [vmem:[%s535 + $0x20] sm:$0xff] %v540
                %v542 = vld [vmem:[%s534 + $0x18] sm:$0xff]
                %543 = vst [vmem:[%s535 + $0x28] sm:$0xff] %v542
                %v544 = vld [vmem:[%s534 + $0x20] sm:$0xff]
                %545 = vst [vmem:[%s535 + $0x40] sm:$0xff] %v544
                %v546 = vld [vmem:[%s534 + $0x28] sm:$0xff]
                %547 = vst [vmem:[%s535 + $0x48] sm:$0xff] %v546
                %v548 = vld [vmem:[%s534 + $0x30] sm:$0xff]
                %549 = vst [vmem:[%s535 + $0x60] sm:$0xff] %v548
                %v550 = vld [vmem:[%s534 + $0x38] sm:$0xff]
                %551 = vst [vmem:[%s535 + $0x68] sm:$0xff] %v550
              $region72: #{net_forward.5} parent=66 // loop_footer
                %s533 = sadd.s32 1, %s529
              $region73: #{net_forward.5} parent=66 // loop_footer_branch
                %528 = sbr.rel target = $region69
              $region74: #{net_forward.5} parent=66 // loop_exit
                _
            $region67: #{net_forward.5} parent=62 // pred_fallthru
              _
            // Predicated region
            $region75: #{net_forward.5} parent=62 // pred_check
              _
            $region76: #{net_forward.5} parent=62 // pred_check_branch
              %553 = sbr.rel target = $region78
            $region77: #{net_forward.5} parent=62 // pred_region
              _
            $region78: #{net_forward.5} parent=62 // pred_fallthru
              _
          $region63: #{net_forward.5} parent=58 // pred_fallthru
            _
          %554 = vnop
        $region59: #{net_forward.5} parent=50 // pred_fallthru
          _
      $region51: #{net_forward.5} parent=5 // pred_fallthru
        _
      %p555 = scmp.le.s32.totalorder 2, %s9
      // Predicated region
      $region79: #{net_forward.5} parent=5 // pred_check
        %p556 = pneg %p555
      $region80: #{net_forward.5} parent=5 // pred_check_branch
        %558 = sbr.rel (%p556) target = $region82
      $region81: #{net_forward.5} parent=5 // pred_region
        %s559 = ssub.s32 %s9, 2
        // Predicated region
        $region83: #{net_forward.5} parent=81 // pred_check
          %p560 = pneg %p106
        $region84: #{net_forward.5} parent=81 // pred_check_branch
          %562 = sbr.rel (%p560) target = $region86
        $region85: #{net_forward.5} parent=81 // pred_region
          %s563 = sand.u32 %s91, 1
          %s564 = sand.u32 %s91, 1
          %s565 = smul.addr %s564, 64
          %s566 = scalar_lea.vmem [#allocation3], %s565
        $region86: #{net_forward.5} parent=81 // pred_fallthru
          _
      $region82: #{net_forward.5} parent=5 // pred_fallthru
        _
    $region6: #{net_forward.5} parent=1 // loop_footer
      %s13 = sadd.s32 1, %s9
    $region7: #{net_forward.5} parent=1 // loop_footer_branch
      %8 = sbr.rel target = $region3
    $region8: #{net_forward.5} parent=1 // loop_exit
      _

// kernel: net_forward.6
$region0: #{net_forward.6}
  #allocation0 [shape = 'u32[]', space=smem, size = 0x4, offset = 0x4, fixed_abs, tag = 'smem constant byte address 0x4 - core index']
  #allocation1 [shape = 'u32[144,128]{1,0:T(1,128)}', space=vmem, size = 0x12000, scoped, tag = 'internal scratch']
  %s0 = inlined_call_operand.vmem [shape: f32[32,384], index: 0, kind: input, shape index: {}]
  %s1 = inlined_call_operand.vmem [shape: f32[384,256], index: 1, kind: input, shape index: {}]
  %s2 = inlined_call_operand.vmem [shape: f32[32,1], index: 2, kind: input, shape index: {}]
  %s3 = inlined_call_operand.vmem [shape: f32[32,256], index: 3, kind: output, shape index: {}]
  %s4 = sld [smem:[#allocation0]]
  $region117: #{net_forward.6} parent=0
    _
  %s6 = ssub.s32 1, %s4
  %s7 = scalar_select 0, %s6, %s4
  $region1: #{net_forward.6} parent=0
    #allocation2 [shape = 'u8[393216]{0}', space=vmem, size = 0x60000, scoped, tag = 'input window, operand 1']
    #allocation3 [shape = 'u8[32768]{0}', space=vmem, size = 0x8000, scoped, tag = 'output window, operand 0']
    loop: start=0, step=1, limit=4
    $region2: #{net_forward.6} parent=1 // loop_pre_header
      _
    $region3: #{net_forward.6} parent=1 // loop_header
      %s9 = sphi 0, %s13
      %p10 = scmp.ge.s32.totalorder %s9, 4
      %s17 = sphi 0, %s17
      %s19 = sphi 0, %s17
      %s20 = sphi 0, %s19
      %s34 = sphi 0, %s20
      %s40 = sphi 0, %s42
      %s43 = sphi 0, %s40
      %s44 = sphi 0, %s43
      %s60 = sphi 0, %s44
      %s64 = sphi 0, %s64
      %s66 = sphi 0, %s64
      %s67 = sphi 0, %s66
      %s81 = sphi 0, %s67
      %s87 = sphi 0, %s89
      %s90 = sphi 0, %s87
      %s91 = sphi 0, %s90
      %s107 = sphi 0, %s91
    $region4: #{net_forward.6} parent=1 // loop_header_branch
      %12 = sbr.rel (%p10) target = $region8
    $region5: #{net_forward.6} parent=1 // loop_body
      %s14 = ssub.s32 %s9, 1
      %s15 = ssub.s32 %s9, 2
      %s16 = sadd.s32 %s9, 1
      %s18 = sadd.s32 %s17, 1
      %p21 = scmp.eq.s32.totalorder %s9, 1
      %p22 = scmp.ne.s32.totalorder %s17, %s19
      %p23 = scmp.eq.s32.totalorder %s9, 0
      %p24 = por %p22, %p23
      %p25 = scmp.ne.s32.totalorder %s17, %s19
      %p26 = scmp.eq.s32.totalorder %s14, 1
      %p27 = por %p25, %p26
      %p28 = scmp.ne.s32.totalorder %s19, %s20
      %p29 = scmp.eq.s32.totalorder %s14, 0
      %p30 = por %p28, %p29
      %p31 = scmp.ne.s32.totalorder %s19, %s20
      %p32 = scmp.eq.s32.totalorder %s15, 1
      %p33 = por %p31, %p32
      %p35 = scmp.ne.s32.totalorder %s20, %s34
      %p36 = scmp.eq.s32.totalorder %s15, 0
      %p37 = por %p35, %p36
      %s38 = ssub.s32 %s9, %s16
      %p39 = scmp.eq.s32.totalorder %s38, 0
      %s41 = sadd.s32 %s40, 1
      %s42 = scalar_select %p39, %s40, %s41
      %p45 = pneg %p39
      %p46 = scmp.eq.s32.totalorder %s9, 1
      %p47 = por %p45, %p46
      %p48 = scmp.ne.s32.totalorder %s40, %s43
      %p49 = scmp.eq.s32.totalorder %s9, 0
      %p50 = por %p48, %p49
      %p51 = scmp.ne.s32.totalorder %s40, %s43
      %p52 = scmp.eq.s32.totalorder %s14, 1
      %p53 = por %p51, %p52
      %p54 = scmp.ne.s32.totalorder %s43, %s44
      %p55 = scmp.eq.s32.totalorder %s14, 0
      %p56 = por %p54, %p55
      %p57 = scmp.ne.s32.totalorder %s43, %s44
      %p58 = scmp.eq.s32.totalorder %s15, 1
      %p59 = por %p57, %p58
      %p61 = scmp.ne.s32.totalorder %s44, %s60
      %p62 = scmp.eq.s32.totalorder %s15, 0
      %p63 = por %p61, %p62
      %s65 = sadd.s32 %s64, 1
      %p68 = scmp.eq.s32.totalorder %s9, 1
      %p69 = scmp.ne.s32.totalorder %s64, %s66
      %p70 = scmp.eq.s32.totalorder %s9, 0
      %p71 = por %p69, %p70
      %p72 = scmp.ne.s32.totalorder %s64, %s66
      %p73 = scmp.eq.s32.totalorder %s14, 1
      %p74 = por %p72, %p73
      %p75 = scmp.ne.s32.totalorder %s66, %s67
      %p76 = scmp.eq.s32.totalorder %s14, 0
      %p77 = por %p75, %p76
      %p78 = scmp.ne.s32.totalorder %s66, %s67
      %p79 = scmp.eq.s32.totalorder %s15, 1
      %p80 = por %p78, %p79
      %p82 = scmp.ne.s32.totalorder %s67, %s81
      %p83 = scmp.eq.s32.totalorder %s15, 0
      %p84 = por %p82, %p83
      %s85 = ssub.s32 %s9, %s16
      %p86 = scmp.eq.s32.totalorder %s85, 0
      %s88 = sadd.s32 %s87, 1
      %s89 = scalar_select %p86, %s87, %s88
      %p92 = pneg %p86
      %p93 = scmp.eq.s32.totalorder %s9, 1
      %p94 = por %p92, %p93
      %p95 = scmp.ne.s32.totalorder %s87, %s90
      %p96 = scmp.eq.s32.totalorder %s9, 0
      %p97 = por %p95, %p96
      %p98 = scmp.ne.s32.totalorder %s87, %s90
      %p99 = scmp.eq.s32.totalorder %s14, 1
      %p100 = por %p98, %p99
      %p101 = scmp.ne.s32.totalorder %s90, %s91
      %p102 = scmp.eq.s32.totalorder %s14, 0
      %p103 = por %p101, %p102
      %p104 = scmp.ne.s32.totalorder %s90, %s91
      %p105 = scmp.eq.s32.totalorder %s15, 1
      %p106 = por %p104, %p105
      %p108 = scmp.ne.s32.totalorder %s91, %s107
      %p109 = scmp.eq.s32.totalorder %s15, 0
      %p110 = por %p108, %p109
      %p111 = scmp.le.s32.totalorder 1, %s9
      %p112 = scmp.lt.s32.totalorder %s9, 3
      %p113 = pnand %p111, %p112
      %p114 = pneg %p113
      // Predicated region
      $region9: #{net_forward.6} parent=5 // pred_check
        _
      $region10: #{net_forward.6} parent=5 // pred_check_branch
        %116 = sbr.rel (%p113) target = $region12
      $region11: #{net_forward.6} parent=5 // pred_region
        %s117 = ssub.s32 %s9, 1
        // Predicated region
        $region13: #{net_forward.6} parent=11 // pred_check
          %p118 = pneg %p30
        $region14: #{net_forward.6} parent=11 // pred_check_branch
          %120 = sbr.rel (%p118) target = $region16
        $region15: #{net_forward.6} parent=11 // pred_region
          _
        $region16: #{net_forward.6} parent=11 // pred_fallthru
          _
        // Predicated region
        $region17: #{net_forward.6} parent=11 // pred_check
          %p121 = pneg %p77
        $region18: #{net_forward.6} parent=11 // pred_check_branch
          %123 = sbr.rel (%p121) target = $region20
        $region19: #{net_forward.6} parent=11 // pred_region
          _
        $region20: #{net_forward.6} parent=11 // pred_fallthru
          _
      $region12: #{net_forward.6} parent=5 // pred_fallthru
        _
      %p124 = scmp.lt.s32.totalorder %s9, 2
      // Predicated region
      $region21: #{net_forward.6} parent=5 // pred_check
        %p125 = pneg %p124
      $region22: #{net_forward.6} parent=5 // pred_check_branch
        %127 = sbr.rel (%p125) target = $region24
      $region23: #{net_forward.6} parent=5 // pred_region
        // Predicated region
        $region25: #{net_forward.6} parent=23 // pred_check
          %p128 = pneg %p50
        $region26: #{net_forward.6} parent=23 // pred_check_branch
          %130 = sbr.rel (%p128) target = $region28
        $region27: #{net_forward.6} parent=23 // pred_region
          %s131 = sand.u32 %s40, 1
          %s132 = sand.u32 %s40, 1
          %s133 = smul.addr %s132, 384
          %s134 = scalar_lea.vmem [#allocation2], %s133
          %s135 = smul.addr %s9, 8
          %s136 = scalar_lea.vmem %s1, %s135
          // Predicated region
          $region29: #{net_forward.6} parent=27 // pred_check
            _
          $region30: #{net_forward.6} parent=27 // pred_check_branch
            %138 = sbr.rel (0) target = $region32
          $region31: #{net_forward.6} parent=27 // pred_region
            // Predicated region
            $region33: #{net_forward.6} parent=31 // pred_check
              _
            $region34: #{net_forward.6} parent=31 // pred_check_branch
              %140 = sbr.rel (0) target = $region36
            $region35: #{net_forward.6} parent=31 // pred_region
              // Predicated region
              $region48: #{net_forward.6} parent=35 // pred_check
                _
              $region49: #{net_forward.6} parent=35 // pred_check_branch
                %250 = sbr.rel (0) target = $region51
              $region50: #{net_forward.6} parent=35 // pred_region
                loop: start=0, step=1, limit=1
                $region52: #{net_forward.6} parent=50 // loop_pre_header
                  _
                $region53: #{net_forward.6} parent=50 // loop_header
                  %s252 = sphi 0, %s256
                  %p253 = scmp.ge.s32.totalorder %s252, 1
                  %s257 = sphi %s136, %s136
                  %s258 = sphi %s134, %s134
                $region54: #{net_forward.6} parent=50 // loop_header_branch
                  %255 = sbr.rel (%p253) target = $region58
                $region55: #{net_forward.6} parent=50 // loop_body
                  %v259 = vld [vmem:[%s257] sm:$0xff]
                  %260 = vst [vmem:[%s258] sm:$0xff] %v259
                  %v261 = vld [vmem:[%s257 + $0x10] sm:$0xff]
                  %262 = vst [vmem:[%s258 + $0x8] sm:$0xff] %v261
                  %v263 = vld [vmem:[%s257 + $0x20] sm:$0xff]
                  %264 = vst [vmem:[%s258 + $0x10] sm:$0xff] %v263
                  %v265 = vld [vmem:[%s257 + $0x30] sm:$0xff]
                  %266 = vst [vmem:[%s258 + $0x18] sm:$0xff] %v265
                  %v267 = vld [vmem:[%s257 + $0x40] sm:$0xff]
                  %268 = vst [vmem:[%s258 + $0x20] sm:$0xff] %v267
                  %v269 = vld [vmem:[%s257 + $0x50] sm:$0xff]
                  %270 = vst [vmem:[%s258 + $0x28] sm:$0xff] %v269
                  %v271 = vld [vmem:[%s257 + $0x60] sm:$0xff]
                  %272 = vst [vmem:[%s258 + $0x30] sm:$0xff] %v271
                  %v273 = vld [vmem:[%s257 + $0x70] sm:$0xff]
                  %274 = vst [vmem:[%s258 + $0x38] sm:$0xff] %v273
                  %v275 = vld [vmem:[%s257 + $0x80] sm:$0xff]
                  %276 = vst [vmem:[%s258 + $0x40] sm:$0xff] %v275
                  %v277 = vld [vmem:[%s257 + $0x90] sm:$0xff]
                  %278 = vst [vmem:[%s258 + $0x48] sm:$0xff] %v277
                  %v279 = vld [vmem:[%s257 + $0xa0] sm:$0xff]
                  %280 = vst [vmem:[%s258 + $0x50] sm:$0xff] %v279
                  %v281 = vld [vmem:[%s257 + $0xb0] sm:$0xff]
                  %282 = vst [vmem:[%s258 + $0x58] sm:$0xff] %v281
                  %v283 = vld [vmem:[%s257 + $0xc0] sm:$0xff]
                  %284 = vst [vmem:[%s258 + $0x60] sm:$0xff] %v283
                  %v285 = vld [vmem:[%s257 + $0xd0] sm:$0xff]
                  %286 = vst [vmem:[%s258 + $0x68] sm:$0xff] %v285
                  %v287 = vld [vmem:[%s257 + $0xe0] sm:$0xff]
                  %288 = vst [vmem:[%s258 + $0x70] sm:$0xff] %v287
                  %v289 = vld [vmem:[%s257 + $0xf0] sm:$0xff]
                  %290 = vst [vmem:[%s258 + $0x78] sm:$0xff] %v289
                  %v291 = vld [vmem:[%s257 + $0x100] sm:$0xff]
                  %292 = vst [vmem:[%s258 + $0x80] sm:$0xff] %v291
                  %v293 = vld [vmem:[%s257 + $0x110] sm:$0xff]
                  %294 = vst [vmem:[%s258 + $0x88] sm:$0xff] %v293
                  %v295 = vld [vmem:[%s257 + $0x120] sm:$0xff]
                  %296 = vst [vmem:[%s258 + $0x90] sm:$0xff] %v295
                  %v297 = vld [vmem:[%s257 + $0x130] sm:$0xff]
                  %298 = vst [vmem:[%s258 + $0x98] sm:$0xff] %v297
                  %v299 = vld [vmem:[%s257 + $0x140] sm:$0xff]
                  %300 = vst [vmem:[%s258 + $0xa0] sm:$0xff] %v299
                  %v301 = vld [vmem:[%s257 + $0x150] sm:$0xff]
                  %302 = vst [vmem:[%s258 + $0xa8] sm:$0xff] %v301
                  %v303 = vld [vmem:[%s257 + $0x160] sm:$0xff]
                  %304 = vst [vmem:[%s258 + $0xb0] sm:$0xff] %v303
                  %v305 = vld [vmem:[%s257 + $0x170] sm:$0xff]
                  %306 = vst [vmem:[%s258 + $0xb8] sm:$0xff] %v305
                  %v307 = vld [vmem:[%s257 + $0x180] sm:$0xff]
                  %308 = vst [vmem:[%s258 + $0xc0] sm:$0xff] %v307
                  %v309 = vld [vmem:[%s257 + $0x190] sm:$0xff]
                  %310 = vst [vmem:[%s258 + $0xc8] sm:$0xff] %v309
                  %v311 = vld [vmem:[%s257 + $0x1a0] sm:$0xff]
                  %312 = vst [vmem:[%s258 + $0xd0] sm:$0xff] %v311
                  %v313 = vld [vmem:[%s257 + $0x1b0] sm:$0xff]
                  %314 = vst [vmem:[%s258 + $0xd8] sm:$0xff] %v313
                  %v315 = vld [vmem:[%s257 + $0x1c0] sm:$0xff]
                  %316 = vst [vmem:[%s258 + $0xe0] sm:$0xff] %v315
                  %v317 = vld [vmem:[%s257 + $0x1d0] sm:$0xff]
                  %318 = vst [vmem:[%s258 + $0xe8] sm:$0xff] %v317
                  %v319 = vld [vmem:[%s257 + $0x1e0] sm:$0xff]
                  %320 = vst [vmem:[%s258 + $0xf0] sm:$0xff] %v319
                  %v321 = vld [vmem:[%s257 + $0x1f0] sm:$0xff]
                  %322 = vst [vmem:[%s258 + $0xf8] sm:$0xff] %v321
                  %v323 = vld [vmem:[%s257 + $0x200] sm:$0xff]
                  %324 = vst [vmem:[%s258 + $0x100] sm:$0xff] %v323
                  %v325 = vld [vmem:[%s257 + $0x210] sm:$0xff]
                  %326 = vst [vmem:[%s258 + $0x108] sm:$0xff] %v325
                  %v327 = vld [vmem:[%s257 + $0x220] sm:$0xff]
                  %328 = vst [vmem:[%s258 + $0x110] sm:$0xff] %v327
                  %v329 = vld [vmem:[%s257 + $0x230] sm:$0xff]
                  %330 = vst [vmem:[%s258 + $0x118] sm:$0xff] %v329
                  %v331 = vld [vmem:[%s257 + $0x240] sm:$0xff]
                  %332 = vst [vmem:[%s258 + $0x120] sm:$0xff] %v331
                  %v333 = vld [vmem:[%s257 + $0x250] sm:$0xff]
                  %334 = vst [vmem:[%s258 + $0x128] sm:$0xff] %v333
                  %v335 = vld [vmem:[%s257 + $0x260] sm:$0xff]
                  %336 = vst [vmem:[%s258 + $0x130] sm:$0xff] %v335
                  %v337 = vld [vmem:[%s257 + $0x270] sm:$0xff]
                  %338 = vst [vmem:[%s258 + $0x138] sm:$0xff] %v337
                  %v339 = vld [vmem:[%s257 + $0x280] sm:$0xff]
                  %340 = vst [vmem:[%s258 + $0x140] sm:$0xff] %v339
                  %v341 = vld [vmem:[%s257 + $0x290] sm:$0xff]
                  %342 = vst [vmem:[%s258 + $0x148] sm:$0xff] %v341
                  %v343 = vld [vmem:[%s257 + $0x2a0] sm:$0xff]
                  %344 = vst [vmem:[%s258 + $0x150] sm:$0xff] %v343
                  %v345 = vld [vmem:[%s257 + $0x2b0] sm:$0xff]
                  %346 = vst [vmem:[%s258 + $0x158] sm:$0xff] %v345
                  %v347 = vld [vmem:[%s257 + $0x2c0] sm:$0xff]
                  %348 = vst [vmem:[%s258 + $0x160] sm:$0xff] %v347
                  %v349 = vld [vmem:[%s257 + $0x2d0] sm:$0xff]
                  %350 = vst [vmem:[%s258 + $0x168] sm:$0xff] %v349
                  %v351 = vld [vmem:[%s257 + $0x2e0] sm:$0xff]
                  %352 = vst [vmem:[%s258 + $0x170] sm:$0xff] %v351
                  %v353 = vld [vmem:[%s257 + $0x2f0] sm:$0xff]
                  %354 = vst [vmem:[%s258 + $0x178] sm:$0xff] %v353
                $region56: #{net_forward.6} parent=50 // loop_footer
                  %s256 = sadd.s32 1, %s252
                $region57: #{net_forward.6} parent=50 // loop_footer_branch
                  %251 = sbr.rel target = $region53
                $region58: #{net_forward.6} parent=50 // loop_exit
                  _
              $region51: #{net_forward.6} parent=35 // pred_fallthru
                _
              // Predicated region
              $region59: #{net_forward.6} parent=35 // pred_check
                _
              $region60: #{net_forward.6} parent=35 // pred_check_branch
                %356 = sbr.rel target = $region62
              $region61: #{net_forward.6} parent=35 // pred_region
                _
              $region62: #{net_forward.6} parent=35 // pred_fallthru
                _
            $region36: #{net_forward.6} parent=31 // pred_fallthru
              _
            // Predicated region
            $region37: #{net_forward.6} parent=31 // pred_check
              _
            $region38: #{net_forward.6} parent=31 // pred_check_branch
              %142 = sbr.rel target = $region40
            $region39: #{net_forward.6} parent=31 // pred_region
              %s144 = ssub.s32 256, 1
              loop: start=0, step=1, limit=1
              $region41: #{net_forward.6} parent=39 // loop_pre_header
                _
              $region42: #{net_forward.6} parent=39 // loop_header
                %s146 = sphi 0, %s150
                %p147 = scmp.ge.s32.totalorder %s146, 1
                %s151 = sphi %s136, %s136
                %s152 = sphi %s134, %s134
              $region43: #{net_forward.6} parent=39 // loop_header_branch
                %149 = sbr.rel (%p147) target = $region47
              $region44: #{net_forward.6} parent=39 // loop_body
                %v153 = vld [vmem:[%s151] sm:%s144]
                %154 = vst [vmem:[%s152] sm:%s144] %v153
                %v155 = vld [vmem:[%s151 + $0x10] sm:%s144]
                %156 = vst [vmem:[%s152 + $0x8] sm:%s144] %v155
                %v157 = vld [vmem:[%s151 + $0x20] sm:%s144]
                %158 = vst [vmem:[%s152 + $0x10] sm:%s144] %v157
                %v159 = vld [vmem:[%s151 + $0x30] sm:%s144]
                %160 = vst [vmem:[%s152 + $0x18] sm:%s144] %v159
                %v161 = vld [vmem:[%s151 + $0x40] sm:%s144]
                %162 = vst [vmem:[%s152 + $0x20] sm:%s144] %v161
                %v163 = vld [vmem:[%s151 + $0x50] sm:%s144]
                %164 = vst [vmem:[%s152 + $0x28] sm:%s144] %v163
                %v165 = vld [vmem:[%s151 + $0x60] sm:%s144]
                %166 = vst [vmem:[%s152 + $0x30] sm:%s144] %v165
                %v167 = vld [vmem:[%s151 + $0x70] sm:%s144]
                %168 = vst [vmem:[%s152 + $0x38] sm:%s144] %v167
                %v169 = vld [vmem:[%s151 + $0x80] sm:%s144]
                %170 = vst [vmem:[%s152 + $0x40] sm:%s144] %v169
                %v171 = vld [vmem:[%s151 + $0x90] sm:%s144]
                %172 = vst [vmem:[%s152 + $0x48] sm:%s144] %v171
                %v173 = vld [vmem:[%s151 + $0xa0] sm:%s144]
                %174 = vst [vmem:[%s152 + $0x50] sm:%s144] %v173
                %v175 = vld [vmem:[%s151 + $0xb0] sm:%s144]
                %176 = vst [vmem:[%s152 + $0x58] sm:%s144] %v175
                %v177 = vld [vmem:[%s151 + $0xc0] sm:%s144]
                %178 = vst [vmem:[%s152 + $0x60] sm:%s144] %v177
                %v179 = vld [vmem:[%s151 + $0xd0] sm:%s144]
                %180 = vst [vmem:[%s152 + $0x68] sm:%s144] %v179
                %v181 = vld [vmem:[%s151 + $0xe0] sm:%s144]
                %182 = vst [vmem:[%s152 + $0x70] sm:%s144] %v181
                %v183 = vld [vmem:[%s151 + $0xf0] sm:%s144]
                %184 = vst [vmem:[%s152 + $0x78] sm:%s144] %v183
                %v185 = vld [vmem:[%s151 + $0x100] sm:%s144]
                %186 = vst [vmem:[%s152 + $0x80] sm:%s144] %v185
                %v187 = vld [vmem:[%s151 + $0x110] sm:%s144]
                %188 = vst [vmem:[%s152 + $0x88] sm:%s144] %v187
                %v189 = vld [vmem:[%s151 + $0x120] sm:%s144]
                %190 = vst [vmem:[%s152 + $0x90] sm:%s144] %v189
                %v191 = vld [vmem:[%s151 + $0x130] sm:%s144]
                %192 = vst [vmem:[%s152 + $0x98] sm:%s144] %v191
                %v193 = vld [vmem:[%s151 + $0x140] sm:%s144]
                %194 = vst [vmem:[%s152 + $0xa0] sm:%s144] %v193
                %v195 = vld [vmem:[%s151 + $0x150] sm:%s144]
                %196 = vst [vmem:[%s152 + $0xa8] sm:%s144] %v195
                %v197 = vld [vmem:[%s151 + $0x160] sm:%s144]
                %198 = vst [vmem:[%s152 + $0xb0] sm:%s144] %v197
                %v199 = vld [vmem:[%s151 + $0x170] sm:%s144]
                %200 = vst [vmem:[%s152 + $0xb8] sm:%s144] %v199
                %v201 = vld [vmem:[%s151 + $0x180] sm:%s144]
                %202 = vst [vmem:[%s152 + $0xc0] sm:%s144] %v201
                %v203 = vld [vmem:[%s151 + $0x190] sm:%s144]
                %204 = vst [vmem:[%s152 + $0xc8] sm:%s144] %v203
                %v205 = vld [vmem:[%s151 + $0x1a0] sm:%s144]
                %206 = vst [vmem:[%s152 + $0xd0] sm:%s144] %v205
                %v207 = vld [vmem:[%s151 + $0x1b0] sm:%s144]
                %208 = vst [vmem:[%s152 + $0xd8] sm:%s144] %v207
                %v209 = vld [vmem:[%s151 + $0x1c0] sm:%s144]
                %210 = vst [vmem:[%s152 + $0xe0] sm:%s144] %v209
                %v211 = vld [vmem:[%s151 + $0x1d0] sm:%s144]
                %212 = vst [vmem:[%s152 + $0xe8] sm:%s144] %v211
                %v213 = vld [vmem:[%s151 + $0x1e0] sm:%s144]
                %214 = vst [vmem:[%s152 + $0xf0] sm:%s144] %v213
                %v215 = vld [vmem:[%s151 + $0x1f0] sm:%s144]
                %216 = vst [vmem:[%s152 + $0xf8] sm:%s144] %v215
                %v217 = vld [vmem:[%s151 + $0x200] sm:%s144]
                %218 = vst [vmem:[%s152 + $0x100] sm:%s144] %v217
                %v219 = vld [vmem:[%s151 + $0x210] sm:%s144]
                %220 = vst [vmem:[%s152 + $0x108] sm:%s144] %v219
                %v221 = vld [vmem:[%s151 + $0x220] sm:%s144]
                %222 = vst [vmem:[%s152 + $0x110] sm:%s144] %v221
                %v223 = vld [vmem:[%s151 + $0x230] sm:%s144]
                %224 = vst [vmem:[%s152 + $0x118] sm:%s144] %v223
                %v225 = vld [vmem:[%s151 + $0x240] sm:%s144]
                %226 = vst [vmem:[%s152 + $0x120] sm:%s144] %v225
                %v227 = vld [vmem:[%s151 + $0x250] sm:%s144]
                %228 = vst [vmem:[%s152 + $0x128] sm:%s144] %v227
                %v229 = vld [vmem:[%s151 + $0x260] sm:%s144]
                %230 = vst [vmem:[%s152 + $0x130] sm:%s144] %v229
                %v231 = vld [vmem:[%s151 + $0x270] sm:%s144]
                %232 = vst [vmem:[%s152 + $0x138] sm:%s144] %v231
                %v233 = vld [vmem:[%s151 + $0x280] sm:%s144]
                %234 = vst [vmem:[%s152 + $0x140] sm:%s144] %v233
                %v235 = vld [vmem:[%s151 + $0x290] sm:%s144]
                %236 = vst [vmem:[%s152 + $0x148] sm:%s144] %v235
                %v237 = vld [vmem:[%s151 + $0x2a0] sm:%s144]
                %238 = vst [vmem:[%s152 + $0x150] sm:%s144] %v237
                %v239 = vld [vmem:[%s151 + $0x2b0] sm:%s144]
                %240 = vst [vmem:[%s152 + $0x158] sm:%s144] %v239
                %v241 = vld [vmem:[%s151 + $0x2c0] sm:%s144]
                %242 = vst [vmem:[%s152 + $0x160] sm:%s144] %v241
                %v243 = vld [vmem:[%s151 + $0x2d0] sm:%s144]
                %244 = vst [vmem:[%s152 + $0x168] sm:%s144] %v243
                %v245 = vld [vmem:[%s151 + $0x2e0] sm:%s144]
                %246 = vst [vmem:[%s152 + $0x170] sm:%s144] %v245
                %v247 = vld [vmem:[%s151 + $0x2f0] sm:%s144]
                %248 = vst [vmem:[%s152 + $0x178] sm:%s144] %v247
              $region45: #{net_forward.6} parent=39 // loop_footer
                %s150 = sadd.s32 1, %s146
              $region46: #{net_forward.6} parent=39 // loop_footer_branch
                %145 = sbr.rel target = $region42
              $region47: #{net_forward.6} parent=39 // loop_exit
                _
            $region40: #{net_forward.6} parent=31 // pred_fallthru
              _
          $region32: #{net_forward.6} parent=27 // pred_fallthru
            _
          %357 = vnop
        $region28: #{net_forward.6} parent=23 // pred_fallthru
          _
      $region24: #{net_forward.6} parent=5 // pred_fallthru
        _
      %p358 = scmp.le.s32.totalorder 1, %s9
      %p359 = scmp.lt.s32.totalorder %s9, 3
      %p360 = pnand %p358, %p359
      %p361 = pneg %p360
      // Predicated region
      $region63: #{net_forward.6} parent=5 // pred_check
        _
      $region64: #{net_forward.6} parent=5 // pred_check_branch
        %363 = sbr.rel (%p360) target = $region66
      $region65: #{net_forward.6} parent=5 // pred_region
        %s364 = ssub.s32 %s9, 1
        %s365 = sand.u32 %s43, 1
        %s366 = sand.u32 %s43, 1
        %s367 = smul.addr %s366, 384
        %s368 = scalar_lea.vmem [#allocation2], %s367
        // Predicated region
        $region67: #{net_forward.6} parent=65 // pred_check
          %p369 = pneg %p56
        $region68: #{net_forward.6} parent=65 // pred_check_branch
          %371 = sbr.rel (%p369) target = $region70
        $region69: #{net_forward.6} parent=65 // pred_region
          _
        $region70: #{net_forward.6} parent=65 // pred_fallthru
          _
        %p372 = pneg %p30
        %p373 = pneg %p27
        %s374 = sand.u32 %s43, 1
        %s375 = sand.u32 %s43, 1
        %s376 = smul.addr %s375, 384
        %s377 = scalar_lea.vmem [#allocation2], %s376
        %p378 = pneg %p56
        %p379 = pneg %p53
        %p380 = pneg %p77
        %p381 = pneg %p74
        %p382 = pneg %p103
        %p383 = pneg %p100
        %s384 = sand.u32 %s90, 1
        %s385 = sand.u32 %s90, 1
        %s386 = smul.addr %s385, 32
        %s387 = scalar_lea.vmem [#allocation3], %s386
        %v388 = vld [vmem:[%s0] sm:$0xff]
        %v389 = vld [vmem:[%s0 + $0x8] sm:$0xff]
        %v390 = vld [vmem:[%s0 + $0x10] sm:$0xff]
        %v391 = vld [vmem:[%s0 + $0x18] sm:$0xff]
        %v392 = vld [vmem:[%s0 + $0x20] sm:$0xff]
        %v393 = vld [vmem:[%s0 + $0x28] sm:$0xff]
        %v394 = vld [vmem:[%s0 + $0x30] sm:$0xff]
        %v395 = vld [vmem:[%s0 + $0x38] sm:$0xff]
        %v396 = vld [vmem:[%s0 + $0x40] sm:$0xff]
        %v397 = vld [vmem:[%s0 + $0x48] sm:$0xff]
        %v398 = vld [vmem:[%s0 + $0x50] sm:$0xff]
        %v399 = vld [vmem:[%s0 + $0x58] sm:$0xff]
        %v400 = vld [vmem:[%s368] sm:$0xff]
        %v401 = vld [vmem:[%s368 + $0x8] sm:$0xff]
        %v402 = vld [vmem:[%s368 + $0x10] sm:$0xff]
        %v403 = vld [vmem:[%s368 + $0x18] sm:$0xff]
        %v404 = vld [vmem:[%s368 + $0x20] sm:$0xff]
        %v405 = vld [vmem:[%s368 + $0x28] sm:$0xff]
        %v406 = vld [vmem:[%s368 + $0x30] sm:$0xff]
        %v407 = vld [vmem:[%s368 + $0x38] sm:$0xff]
        %v408 = vld [vmem:[%s368 + $0x40] sm:$0xff]
        %v409 = vld [vmem:[%s368 + $0x48] sm:$0xff]
        %v410 = vld [vmem:[%s368 + $0x50] sm:$0xff]
        %v411 = vld [vmem:[%s368 + $0x58] sm:$0xff]
        %v412 = vld [vmem:[%s368 + $0x60] sm:$0xff]
        %v413 = vld [vmem:[%s368 + $0x68] sm:$0xff]
        %v414 = vld [vmem:[%s368 + $0x70] sm:$0xff]
        %v415 = vld [vmem:[%s368 + $0x78] sm:$0xff]
        %v416 = vld [vmem:[%s368 + $0x80] sm:$0xff]
        %v417 = vld [vmem:[%s368 + $0x88] sm:$0xff]
        %v418 = vld [vmem:[%s368 + $0x90] sm:$0xff]
        %v419 = vld [vmem:[%s368 + $0x98] sm:$0xff]
        %v420 = vld [vmem:[%s368 + $0xa0] sm:$0xff]
        %v421 = vld [vmem:[%s368 + $0xa8] sm:$0xff]
        %v422 = vld [vmem:[%s368 + $0xb0] sm:$0xff]
        %v423 = vld [vmem:[%s368 + $0xb8] sm:$0xff]
        %v424 = vld [vmem:[%s368 + $0xc0] sm:$0xff]
        %v425 = vld [vmem:[%s368 + $0xc8] sm:$0xff]
        %v426 = vld [vmem:[%s368 + $0xd0] sm:$0xff]
        %v427 = vld [vmem:[%s368 + $0xd8] sm:$0xff]
        %v428 = vld [vmem:[%s368 + $0xe0] sm:$0xff]
        %v429 = vld [vmem:[%s368 + $0xe8] sm:$0xff]
        %v430 = vld [vmem:[%s368 + $0xf0] sm:$0xff]
        %v431 = vld [vmem:[%s368 + $0xf8] sm:$0xff]
        %v432 = vld [vmem:[%s368 + $0x100] sm:$0xff]
        %v433 = vld [vmem:[%s368 + $0x108] sm:$0xff]
        %v434 = vld [vmem:[%s368 + $0x110] sm:$0xff]
        %v435 = vld [vmem:[%s368 + $0x118] sm:$0xff]
        %v436 = vld [vmem:[%s368 + $0x120] sm:$0xff]
        %v437 = vld [vmem:[%s368 + $0x128] sm:$0xff]
        %v438 = vld [vmem:[%s368 + $0x130] sm:$0xff]
        %v439 = vld [vmem:[%s368 + $0x138] sm:$0xff]
        %v440 = vld [vmem:[%s368 + $0x140] sm:$0xff]
        %v441 = vld [vmem:[%s368 + $0x148] sm:$0xff]
        %v442 = vld [vmem:[%s368 + $0x150] sm:$0xff]
        %v443 = vld [vmem:[%s368 + $0x158] sm:$0xff]
        %v444 = vld [vmem:[%s368 + $0x160] sm:$0xff]
        %v445 = vld [vmem:[%s368 + $0x168] sm:$0xff]
        %v446 = vld [vmem:[%s368 + $0x170] sm:$0xff]
        %v447 = vld [vmem:[%s368 + $0x178] sm:$0xff]
        %v448 = vld [vmem:[%s2] sm:$0xff]
        %v449 = vld [vmem:[%s2 + $0x8] sm:$0xff]
        %v450 = vld [vmem:[%s2 + $0x10] sm:$0xff]
        %v451 = vld [vmem:[%s2 + $0x18] sm:$0xff]
        %453 = vset.pattern.permute.xlu0 0
        %454 = vperm.xlu0 %453, %v448
        %v455 = vpop.permute.xlu0 %454
        %458 = vset.pattern.permute.xlu0 0
        %459 = vperm.xlu0 %458, %v449
        %v460 = vpop.permute.xlu0 %459
        %463 = vset.pattern.permute.xlu0 0
        %464 = vperm.xlu0 %463, %v450
        %v465 = vpop.permute.xlu0 %464
        %468 = vset.pattern.permute.xlu0 0
        %469 = vperm.xlu0 %468, %v451
        %v470 = vpop.permute.xlu0 %469
        %472 = vmatprep.subr.mxu0 0.0
        %473 = vmatpush1.msra.mxu0 %v415
        %474 = vmatprep.subr.mxu0 0.0
        %475 = vmatpush1.msra.mxu0 %v414
        %476 = vmatprep.subr.mxu0 0.0
        %477 = vmatpush1.msra.mxu0 %v413
        %478 = vmatprep.subr.mxu0 0.0
        %479 = vmatpush1.msra.mxu0 %v412
        %480 = vmatprep.subr.mxu0 0.0
        %481 = vmatpush1.msra.mxu0 %v411
        %482 = vmatprep.subr.mxu0 0.0
        %483 = vmatpush1.msra.mxu0 %v410
        %484 = vmatprep.subr.mxu0 0.0
        %485 = vmatpush1.msra.mxu0 %v409
        %486 = vmatprep.subr.mxu0 0.0
        %487 = vmatpush1.msra.mxu0 %v408
        %488 = vmatprep.subr.mxu0 0.0
        %489 = vmatpush1.msra.mxu0 %v407
        %490 = vmatprep.subr.mxu0 0.0
        %491 = vmatpush1.msra.mxu0 %v406
        %492 = vmatprep.subr.mxu0 0.0
        %493 = vmatpush1.msra.mxu0 %v405
        %494 = vmatprep.subr.mxu0 0.0
        %495 = vmatpush1.msra.mxu0 %v404
        %496 = vmatprep.subr.mxu0 0.0
        %497 = vmatpush1.msra.mxu0 %v403
        %498 = vmatprep.subr.mxu0 0.0
        %499 = vmatpush1.msra.mxu0 %v402
        %500 = vmatprep.subr.mxu0 0.0
        %501 = vmatpush1.msra.mxu0 %v401
        %502 = vmatprep.subr.mxu0 0.0
        %503 = vmatpush1.msra.mxu0 %v400
        %504 = vmatprep.subr.mxu0 0.0
        %505 = vmatpush2.msra.mxu0 %v431
        %506 = vmatprep.subr.mxu0 0.0
        %507 = vmatpush2.msra.mxu0 %v430
        %508 = vmatprep.subr.mxu0 0.0
        %509 = vmatpush2.msra.mxu0 %v429
        %510 = vmatprep.subr.mxu0 0.0
        %511 = vmatpush2.msra.mxu0 %v428
        %512 = vmatprep.subr.mxu0 0.0
        %513 = vmatpush2.msra.mxu0 %v427
        %514 = vmatprep.subr.mxu0 0.0
        %515 = vmatpush2.msra.mxu0 %v426
        %516 = vmatprep.subr.mxu0 0.0
        %517 = vmatpush2.msra.mxu0 %v425
        %518 = vmatprep.subr.mxu0 0.0
        %519 = vmatpush2.msra.mxu0 %v424
        %520 = vmatprep.subr.mxu0 0.0
        %521 = vmatpush2.msra.mxu0 %v423
        %522 = vmatprep.subr.mxu0 0.0
        %523 = vmatpush2.msra.mxu0 %v422
        %524 = vmatprep.subr.mxu0 0.0
        %525 = vmatpush2.msra.mxu0 %v421
        %526 = vmatprep.subr.mxu0 0.0
        %527 = vmatpush2.msra.mxu0 %v420
        %528 = vmatprep.subr.mxu0 0.0
        %529 = vmatpush2.msra.mxu0 %v419
        %530 = vmatprep.subr.mxu0 0.0
        %531 = vmatpush2.msra.mxu0 %v418
        %532 = vmatprep.subr.mxu0 0.0
        %533 = vmatpush2.msra.mxu0 %v417
        %534 = vmatprep.subr.mxu0 0.0
        %535 = vmatpush2.msra.mxu0 %v416
        %536 = vmatprep.mubr.f32.mxu0 %v389
        %537 = vmatmul.mubr.f32.gmra.mxu0 %v388
        %v538 = vpop.f32.mrf.mxu0
        %v539 = vadd.f32 %v455, %v538
        %v540 = vpop.f32.mrf.mxu0
        %541 = vmatprep.mubr.f32.mxu0 %v392
        %542 = vmatmul.mubr.f32.gmra.mxu0 %v391
        %v543 = vpop.f32.mrf.mxu0
        %v544 = vadd.f32 %v460, %v543
        %v545 = vpop.f32.mrf.mxu0
        %546 = vmatprep.mubr.f32.mxu0 %v395
        %547 = vmatmul.mubr.f32.gmra.mxu0 %v394
        %v548 = vpop.f32.mrf.mxu0
        %v549 = vadd.f32 %v465, %v548
        %v550 = vpop.f32.mrf.mxu0
        %551 = vmatprep.mubr.f32.mxu0 %v398
        %552 = vmatmul.mubr.f32.gmra.mxu0 %v397
        %v553 = vpop.f32.mrf.mxu0
        %v554 = vadd.f32 %v470, %v553
        %v555 = vpop.f32.mrf.mxu0
        %556 = vdwg.mxu0
        %557 = vmatprep.subr.mxu0 0.0
        %558 = vmatpush1.msra.mxu0 %v447
        %559 = vmatprep.subr.mxu0 0.0
        %560 = vmatpush1.msra.mxu0 %v446
        %561 = vmatprep.subr.mxu0 0.0
        %562 = vmatpush1.msra.mxu0 %v445
        %563 = vmatprep.subr.mxu0 0.0
        %564 = vmatpush1.msra.mxu0 %v444
        %565 = vmatprep.subr.mxu0 0.0
        %566 = vmatpush1.msra.mxu0 %v443
        %567 = vmatprep.subr.mxu0 0.0
        %568 = vmatpush1.msra.mxu0 %v442
        %569 = vmatprep.subr.mxu0 0.0
        %570 = vmatpush1.msra.mxu0 %v441
        %571 = vmatprep.subr.mxu0 0.0
        %572 = vmatpush1.msra.mxu0 %v440
        %573 = vmatprep.subr.mxu0 0.0
        %574 = vmatpush1.msra.mxu0 %v439
        %575 = vmatprep.subr.mxu0 0.0
        %576 = vmatpush1.msra.mxu0 %v438
        %577 = vmatprep.subr.mxu0 0.0
        %578 = vmatpush1.msra.mxu0 %v437
        %579 = vmatprep.subr.mxu0 0.0
        %580 = vmatpush1.msra.mxu0 %v436
        %581 = vmatprep.subr.mxu0 0.0
        %582 = vmatpush1.msra.mxu0 %v435
        %583 = vmatprep.subr.mxu0 0.0
        %584 = vmatpush1.msra.mxu0 %v434
        %585 = vmatprep.subr.mxu0 0.0
        %586 = vmatpush1.msra.mxu0 %v433
        %587 = vmatprep.subr.mxu0 0.0
        %588 = vmatpush1.msra.mxu0 %v432
        %589 = vmatprep.subr.mxu0 0.0
        %590 = vmatpush2.msra.mxu0 0.0
        %591 = vmatprep.subr.mxu0 0.0
        %592 = vmatpush2.msra.mxu0 0.0
        %593 = vmatprep.subr.mxu0 0.0
        %594 = vmatpush2.msra.mxu0 0.0
        %595 = vmatprep.subr.mxu0 0.0
        %596 = vmatpush2.msra.mxu0 0.0
        %597 = vmatprep.subr.mxu0 0.0
        %598 = vmatpush2.msra.mxu0 0.0
        %599 = vmatprep.subr.mxu0 0.0
        %600 = vmatpush2.msra.mxu0 0.0
        %601 = vmatprep.subr.mxu0 0.0
        %602 = vmatpush2.msra.mxu0 0.0
        %603 = vmatprep.subr.mxu0 0.0
        %604 = vmatpush2.msra.mxu0 0.0
        %605 = vmatprep.subr.mxu0 0.0
        %606 = vmatpush2.msra.mxu0 0.0
        %607 = vmatprep.subr.mxu0 0.0
        %608 = vmatpush2.msra.mxu0 0.0
        %609 = vmatprep.subr.mxu0 0.0
        %610 = vmatpush2.msra.mxu0 0.0
        %611 = vmatprep.subr.mxu0 0.0
        %612 = vmatpush2.msra.mxu0 0.0
        %613 = vmatprep.subr.mxu0 0.0
        %614 = vmatpush2.msra.mxu0 0.0
        %615 = vmatprep.subr.mxu0 0.0
        %616 = vmatpush2.msra.mxu0 0.0
        %617 = vmatprep.subr.mxu0 0.0
        %618 = vmatpush2.msra.mxu0 0.0
        %619 = vmatprep.subr.mxu0 0.0
        %620 = vmatpush2.msra.mxu0 0.0
        %621 = vmatprep.mubr.f32.mxu0 0.0
        %622 = vmatmul.mubr.f32.gmra.mxu0 %v390
        %v623 = vpop.f32.mrf.mxu0
        %v624 = vadd.f32 %v539, %v623
        %v625 = vpop.f32.mrf.mxu0
        %626 = vmatprep.mubr.f32.mxu0 0.0
        %627 = vmatmul.mubr.f32.gmra.mxu0 %v393
        %v628 = vpop.f32.mrf.mxu0
        %v629 = vadd.f32 %v544, %v628
        %v630 = vpop.f32.mrf.mxu0
        %631 = vmatprep.mubr.f32.mxu0 0.0
        %632 = vmatmul.mubr.f32.gmra.mxu0 %v396
        %v633 = vpop.f32.mrf.mxu0
        %v634 = vadd.f32 %v549, %v633
        %v635 = vpop.f32.mrf.mxu0
        %636 = vmatprep.mubr.f32.mxu0 0.0
        %637 = vmatmul.mubr.f32.gmra.mxu0 %v399
        %v638 = vpop.f32.mrf.mxu0
        %v639 = vadd.f32 %v554, %v638
        %v640 = vpop.f32.mrf.mxu0
        %641 = vdwg.mxu0
        %v642 = vmax.f32 %v624, 0.0
        %v643 = vmax.f32 %v629, 0.0
        %v644 = vmax.f32 %v634, 0.0
        %v645 = vmax.f32 %v639, 0.0
        %646 = vst [vmem:[%s387] sm:$0xff] %v642
        %647 = vst [vmem:[%s387 + $0x8] sm:$0xff] %v643
        %648 = vst [vmem:[%s387 + $0x10] sm:$0xff] %v644
        %649 = vst [vmem:[%s387 + $0x18] sm:$0xff] %v645
        %s650 = sand.u32 %s90, 1
        %s651 = sand.u32 %s90, 1
        %s652 = smul.addr %s651, 32
        %s653 = scalar_lea.vmem [#allocation3], %s652
        // Predicated region
        $region71: #{net_forward.6} parent=65 // pred_check
          %p654 = pneg %p100
        $region72: #{net_forward.6} parent=65 // pred_check_branch
          %656 = sbr.rel (%p654) target = $region74
        $region73: #{net_forward.6} parent=65 // pred_region
          %s657 = smul.addr %s14, 8
          %s658 = scalar_lea.vmem %s3, %s657
          // Predicated region
          $region75: #{net_forward.6} parent=73 // pred_check
            _
          $region76: #{net_forward.6} parent=73 // pred_check_branch
            %660 = sbr.rel (0) target = $region78
          $region77: #{net_forward.6} parent=73 // pred_region
            // Predicated region
            $region79: #{net_forward.6} parent=77 // pred_check
              _
            $region80: #{net_forward.6} parent=77 // pred_check_branch
              %662 = sbr.rel (0) target = $region82
            $region81: #{net_forward.6} parent=77 // pred_region
              // Predicated region
              $region94: #{net_forward.6} parent=81 // pred_check
                _
              $region95: #{net_forward.6} parent=81 // pred_check_branch
                %684 = sbr.rel (0) target = $region97
              $region96: #{net_forward.6} parent=81 // pred_region
                loop: start=0, step=1, limit=1
                $region98: #{net_forward.6} parent=96 // loop_pre_header
                  _
                $region99: #{net_forward.6} parent=96 // loop_header
                  %s686 = sphi 0, %s690
                  %p687 = scmp.ge.s32.totalorder %s686, 1
                  %s691 = sphi %s653, %s653
                  %s692 = sphi %s658, %s658
                $region100: #{net_forward.6} parent=96 // loop_header_branch
                  %689 = sbr.rel (%p687) target = $region104
                $region101: #{net_forward.6} parent=96 // loop_body
                  %v693 = vld [vmem:[%s691] sm:$0xff]
                  %694 = vst [vmem:[%s692] sm:$0xff] %v693
                  %v695 = vld [vmem:[%s691 + $0x8] sm:$0xff]
                  %696 = vst [vmem:[%s692 + $0x10] sm:$0xff] %v695
                  %v697 = vld [vmem:[%s691 + $0x10] sm:$0xff]
                  %698 = vst [vmem:[%s692 + $0x20] sm:$0xff] %v697
                  %v699 = vld [vmem:[%s691 + $0x18] sm:$0xff]
                  %700 = vst [vmem:[%s692 + $0x30] sm:$0xff] %v699
                $region102: #{net_forward.6} parent=96 // loop_footer
                  %s690 = sadd.s32 1, %s686
                $region103: #{net_forward.6} parent=96 // loop_footer_branch
                  %685 = sbr.rel target = $region99
                $region104: #{net_forward.6} parent=96 // loop_exit
                  _
              $region97: #{net_forward.6} parent=81 // pred_fallthru
                _
              // Predicated region
              $region105: #{net_forward.6} parent=81 // pred_check
                _
              $region106: #{net_forward.6} parent=81 // pred_check_branch
                %702 = sbr.rel target = $region108
              $region107: #{net_forward.6} parent=81 // pred_region
                _
              $region108: #{net_forward.6} parent=81 // pred_fallthru
                _
            $region82: #{net_forward.6} parent=77 // pred_fallthru
              _
            // Predicated region
            $region83: #{net_forward.6} parent=77 // pred_check
              _
            $region84: #{net_forward.6} parent=77 // pred_check_branch
              %664 = sbr.rel target = $region86
            $region85: #{net_forward.6} parent=77 // pred_region
              %s666 = ssub.s32 256, 1
              loop: start=0, step=1, limit=1
              $region87: #{net_forward.6} parent=85 // loop_pre_header
                _
              $region88: #{net_forward.6} parent=85 // loop_header
                %s668 = sphi 0, %s672
                %p669 = scmp.ge.s32.totalorder %s668, 1
                %s673 = sphi %s653, %s653
                %s674 = sphi %s658, %s658
              $region89: #{net_forward.6} parent=85 // loop_header_branch
                %671 = sbr.rel (%p669) target = $region93
              $region90: #{net_forward.6} parent=85 // loop_body
                %v675 = vld [vmem:[%s673] sm:%s666]
                %676 = vst [vmem:[%s674] sm:%s666] %v675
                %v677 = vld [vmem:[%s673 + $0x8] sm:%s666]
                %678 = vst [vmem:[%s674 + $0x10] sm:%s666] %v677
                %v679 = vld [vmem:[%s673 + $0x10] sm:%s666]
                %680 = vst [vmem:[%s674 + $0x20] sm:%s666] %v679
                %v681 = vld [vmem:[%s673 + $0x18] sm:%s666]
                %682 = vst [vmem:[%s674 + $0x30] sm:%s666] %v681
              $region91: #{net_forward.6} parent=85 // loop_footer
                %s672 = sadd.s32 1, %s668
              $region92: #{net_forward.6} parent=85 // loop_footer_branch
                %667 = sbr.rel target = $region88
              $region93: #{net_forward.6} parent=85 // loop_exit
                _
            $region86: #{net_forward.6} parent=77 // pred_fallthru
              _
          $region78: #{net_forward.6} parent=73 // pred_fallthru
            _
          %703 = vnop
        $region74: #{net_forward.6} parent=65 // pred_fallthru
          _
      $region66: #{net_forward.6} parent=5 // pred_fallthru
        _
      %p704 = scmp.le.s32.totalorder 2, %s9
      // Predicated region
      $region109: #{net_forward.6} parent=5 // pred_check
        %p705 = pneg %p704
      $region110: #{net_forward.6} parent=5 // pred_check_branch
        %707 = sbr.rel (%p705) target = $region112
      $region111: #{net_forward.6} parent=5 // pred_region
        %s708 = ssub.s32 %s9, 2
        // Predicated region
        $region113: #{net_forward.6} parent=111 // pred_check
          %p709 = pneg %p106
        $region114: #{net_forward.6} parent=111 // pred_check_branch
          %711 = sbr.rel (%p709) target = $region116
        $region115: #{net_forward.6} parent=111 // pred_region
          %s712 = sand.u32 %s91, 1
          %s713 = sand.u32 %s91, 1
          %s714 = smul.addr %s713, 32
          %s715 = scalar_lea.vmem [#allocation3], %s714
        $region116: #{net_forward.6} parent=111 // pred_fallthru
          _
      $region112: #{net_forward.6} parent=5 // pred_fallthru
        _
    $region6: #{net_forward.6} parent=1 // loop_footer
      %s13 = sadd.s32 1, %s9
    $region7: #{net_forward.6} parent=1 // loop_footer_branch
      %8 = sbr.rel target = $region3
    $region8: #{net_forward.6} parent=1 // loop_exit
      _

// kernel: net_forward.7
$region0: #{net_forward.7}
  #allocation0 [shape = 'u32[]', space=smem, size = 0x4, offset = 0x4, fixed_abs, tag = 'smem constant byte address 0x4 - core index']
  #allocation1 [shape = 'u32[144,128]{1,0:T(1,128)}', space=vmem, size = 0x12000, scoped, tag = 'internal scratch']
  %s0 = inlined_call_operand.vmem [shape: f32[1,1024], index: 0, kind: input, shape index: {}]
  %s1 = inlined_call_operand.vmem [shape: f32[1024,128], index: 1, kind: input, shape index: {}]
  %s2 = inlined_call_operand.vmem [shape: f32[1,128], index: 2, kind: input, shape index: {}]
  %s3 = inlined_call_operand.vmem [shape: f32[128,64], index: 3, kind: input, shape index: {}]
  %s4 = inlined_call_operand.vmem [shape: f32[1,64], index: 4, kind: input, shape index: {}]
  %s5 = inlined_call_operand.vmem [shape: f32[64,5], index: 5, kind: input, shape index: {}]
  %s6 = inlined_call_operand.vmem [shape: f32[1,5], index: 6, kind: input, shape index: {}]
  %s7 = inlined_call_operand.hbm [shape: f32[1,4], index: 7, kind: output, shape index: {}]
  %s8 = sld [smem:[#allocation0]]
  $region38: #{net_forward.7} parent=0
    _
  %s10 = ssub.s32 1, %s8
  %s11 = scalar_select 0, %s10, %s8
  $region1: #{net_forward.7} parent=0
    #allocation2 [shape = 'u8[512]{0}', space=vmem, size = 0x400, scoped, tag = 'output window, operand 0, single buffered']
    #allocation3 [shape = 's32[1]{0}', space=sflag, size = 0x4, scoped, tag = 'scoped memory for net_forward.7']
    %12 = vsyncpa [#allocation3], 0
    // Predicated region
    $region2: #{net_forward.7} parent=1 // pred_check
      _
    $region3: #{net_forward.7} parent=1 // pred_check_branch
      %14 = sbr.rel (0) target = $region5
    $region4: #{net_forward.7} parent=1 // pred_region
      _
    $region5: #{net_forward.7} parent=1 // pred_fallthru
      _
    // Predicated region
    $region6: #{net_forward.7} parent=1 // pred_check
      _
    $region7: #{net_forward.7} parent=1 // pred_check_branch
      %16 = sbr.rel (0) target = $region9
    $region8: #{net_forward.7} parent=1 // pred_region
      _
    $region9: #{net_forward.7} parent=1 // pred_fallthru
      _
    // Predicated region
    $region10: #{net_forward.7} parent=1 // pred_check
      _
    $region11: #{net_forward.7} parent=1 // pred_check_branch
      %18 = sbr.rel (0) target = $region13
    $region12: #{net_forward.7} parent=1 // pred_region
      _
    $region13: #{net_forward.7} parent=1 // pred_fallthru
      _
    // Predicated region
    $region14: #{net_forward.7} parent=1 // pred_check
      _
    $region15: #{net_forward.7} parent=1 // pred_check_branch
      %20 = sbr.rel (0) target = $region17
    $region16: #{net_forward.7} parent=1 // pred_region
      _
    $region17: #{net_forward.7} parent=1 // pred_fallthru
      _
    // Predicated region
    $region18: #{net_forward.7} parent=1 // pred_check
      _
    $region19: #{net_forward.7} parent=1 // pred_check_branch
      %22 = sbr.rel (0) target = $region21
    $region20: #{net_forward.7} parent=1 // pred_region
      _
    $region21: #{net_forward.7} parent=1 // pred_fallthru
      _
    // Predicated region
    $region22: #{net_forward.7} parent=1 // pred_check
      _
    $region23: #{net_forward.7} parent=1 // pred_check_branch
      %24 = sbr.rel (0) target = $region25
    $region24: #{net_forward.7} parent=1 // pred_region
      _
    $region25: #{net_forward.7} parent=1 // pred_fallthru
      _
    // Predicated region
    $region26: #{net_forward.7} parent=1 // pred_check
      _
    $region27: #{net_forward.7} parent=1 // pred_check_branch
      %26 = sbr.rel (0) target = $region29
    $region28: #{net_forward.7} parent=1 // pred_region
      _
    $region29: #{net_forward.7} parent=1 // pred_fallthru
      _
    %v27 = vld [vmem:[%s0] sm:$0xff]
    %v28 = vld [vmem:[%s1] sm:$0xff]
    %v29 = vld [vmem:[%s1 + $0x8] sm:$0xff]
    %v30 = vld [vmem:[%s1 + $0x10] sm:$0xff]
    %v31 = vld [vmem:[%s1 + $0x18] sm:$0xff]
    %v32 = vld [vmem:[%s1 + $0x20] sm:$0xff]
    %v33 = vld [vmem:[%s1 + $0x28] sm:$0xff]
    %v34 = vld [vmem:[%s1 + $0x30] sm:$0xff]
    %v35 = vld [vmem:[%s1 + $0x38] sm:$0xff]
    %v36 = vld [vmem:[%s1 + $0x40] sm:$0xff]
    %v37 = vld [vmem:[%s1 + $0x48] sm:$0xff]
    %v38 = vld [vmem:[%s1 + $0x50] sm:$0xff]
    %v39 = vld [vmem:[%s1 + $0x58] sm:$0xff]
    %v40 = vld [vmem:[%s1 + $0x60] sm:$0xff]
    %v41 = vld [vmem:[%s1 + $0x68] sm:$0xff]
    %v42 = vld [vmem:[%s1 + $0x70] sm:$0xff]
    %v43 = vld [vmem:[%s1 + $0x78] sm:$0xff]
    %v44 = vld [vmem:[%s1 + $0x80] sm:$0xff]
    %v45 = vld [vmem:[%s1 + $0x88] sm:$0xff]
    %v46 = vld [vmem:[%s1 + $0x90] sm:$0xff]
    %v47 = vld [vmem:[%s1 + $0x98] sm:$0xff]
    %v48 = vld [vmem:[%s1 + $0xa0] sm:$0xff]
    %v49 = vld [vmem:[%s1 + $0xa8] sm:$0xff]
    %v50 = vld [vmem:[%s1 + $0xb0] sm:$0xff]
    %v51 = vld [vmem:[%s1 + $0xb8] sm:$0xff]
    %v52 = vld [vmem:[%s1 + $0xc0] sm:$0xff]
    %v53 = vld [vmem:[%s1 + $0xc8] sm:$0xff]
    %v54 = vld [vmem:[%s1 + $0xd0] sm:$0xff]
    %v55 = vld [vmem:[%s1 + $0xd8] sm:$0xff]
    %v56 = vld [vmem:[%s1 + $0xe0] sm:$0xff]
    %v57 = vld [vmem:[%s1 + $0xe8] sm:$0xff]
    %v58 = vld [vmem:[%s1 + $0xf0] sm:$0xff]
    %v59 = vld [vmem:[%s1 + $0xf8] sm:$0xff]
    %v60 = vld [vmem:[%s1 + $0x100] sm:$0xff]
    %v61 = vld [vmem:[%s1 + $0x108] sm:$0xff]
    %v62 = vld [vmem:[%s1 + $0x110] sm:$0xff]
    %v63 = vld [vmem:[%s1 + $0x118] sm:$0xff]
    %v64 = vld [vmem:[%s1 + $0x120] sm:$0xff]
    %v65 = vld [vmem:[%s1 + $0x128] sm:$0xff]
    %v66 = vld [vmem:[%s1 + $0x130] sm:$0xff]
    %v67 = vld [vmem:[%s1 + $0x138] sm:$0xff]
    %v68 = vld [vmem:[%s1 + $0x140] sm:$0xff]
    %v69 = vld [vmem:[%s1 + $0x148] sm:$0xff]
    %v70 = vld [vmem:[%s1 + $0x150] sm:$0xff]
    %v71 = vld [vmem:[%s1 + $0x158] sm:$0xff]
    %v72 = vld [vmem:[%s1 + $0x160] sm:$0xff]
    %v73 = vld [vmem:[%s1 + $0x168] sm:$0xff]
    %v74 = vld [vmem:[%s1 + $0x170] sm:$0xff]
    %v75 = vld [vmem:[%s1 + $0x178] sm:$0xff]
    %v76 = vld [vmem:[%s1 + $0x180] sm:$0xff]
    %v77 = vld [vmem:[%s1 + $0x188] sm:$0xff]
    %v78 = vld [vmem:[%s1 + $0x190] sm:$0xff]
    %v79 = vld [vmem:[%s1 + $0x198] sm:$0xff]
    %v80 = vld [vmem:[%s1 + $0x1a0] sm:$0xff]
    %v81 = vld [vmem:[%s1 + $0x1a8] sm:$0xff]
    %v82 = vld [vmem:[%s1 + $0x1b0] sm:$0xff]
    %v83 = vld [vmem:[%s1 + $0x1b8] sm:$0xff]
    %v84 = vld [vmem:[%s1 + $0x1c0] sm:$0xff]
    %v85 = vld [vmem:[%s1 + $0x1c8] sm:$0xff]
    %v86 = vld [vmem:[%s1 + $0x1d0] sm:$0xff]
    %v87 = vld [vmem:[%s1 + $0x1d8] sm:$0xff]
    %v88 = vld [vmem:[%s1 + $0x1e0] sm:$0xff]
    %v89 = vld [vmem:[%s1 + $0x1e8] sm:$0xff]
    %v90 = vld [vmem:[%s1 + $0x1f0] sm:$0xff]
    %v91 = vld [vmem:[%s1 + $0x1f8] sm:$0xff]
    %v92 = vld [vmem:[%s1 + $0x200] sm:$0xff]
    %v93 = vld [vmem:[%s1 + $0x208] sm:$0xff]
    %v94 = vld [vmem:[%s1 + $0x210] sm:$0xff]
    %v95 = vld [vmem:[%s1 + $0x218] sm:$0xff]
    %v96 = vld [vmem:[%s1 + $0x220] sm:$0xff]
    %v97 = vld [vmem:[%s1 + $0x228] sm:$0xff]
    %v98 = vld [vmem:[%s1 + $0x230] sm:$0xff]
    %v99 = vld [vmem:[%s1 + $0x238] sm:$0xff]
    %v100 = vld [vmem:[%s1 + $0x240] sm:$0xff]
    %v101 = vld [vmem:[%s1 + $0x248] sm:$0xff]
    %v102 = vld [vmem:[%s1 + $0x250] sm:$0xff]
    %v103 = vld [vmem:[%s1 + $0x258] sm:$0xff]
    %v104 = vld [vmem:[%s1 + $0x260] sm:$0xff]
    %v105 = vld [vmem:[%s1 + $0x268] sm:$0xff]
    %v106 = vld [vmem:[%s1 + $0x270] sm:$0xff]
    %v107 = vld [vmem:[%s1 + $0x278] sm:$0xff]
    %v108 = vld [vmem:[%s1 + $0x280] sm:$0xff]
    %v109 = vld [vmem:[%s1 + $0x288] sm:$0xff]
    %v110 = vld [vmem:[%s1 + $0x290] sm:$0xff]
    %v111 = vld [vmem:[%s1 + $0x298] sm:$0xff]
    %v112 = vld [vmem:[%s1 + $0x2a0] sm:$0xff]
    %v113 = vld [vmem:[%s1 + $0x2a8] sm:$0xff]
    %v114 = vld [vmem:[%s1 + $0x2b0] sm:$0xff]
    %v115 = vld [vmem:[%s1 + $0x2b8] sm:$0xff]
    %v116 = vld [vmem:[%s1 + $0x2c0] sm:$0xff]
    %v117 = vld [vmem:[%s1 + $0x2c8] sm:$0xff]
    %v118 = vld [vmem:[%s1 + $0x2d0] sm:$0xff]
    %v119 = vld [vmem:[%s1 + $0x2d8] sm:$0xff]
    %v120 = vld [vmem:[%s1 + $0x2e0] sm:$0xff]
    %v121 = vld [vmem:[%s1 + $0x2e8] sm:$0xff]
    %v122 = vld [vmem:[%s1 + $0x2f0] sm:$0xff]
    %v123 = vld [vmem:[%s1 + $0x2f8] sm:$0xff]
    %v124 = vld [vmem:[%s1 + $0x300] sm:$0xff]
    %v125 = vld [vmem:[%s1 + $0x308] sm:$0xff]
    %v126 = vld [vmem:[%s1 + $0x310] sm:$0xff]
    %v127 = vld [vmem:[%s1 + $0x318] sm:$0xff]
    %v128 = vld [vmem:[%s1 + $0x320] sm:$0xff]
    %v129 = vld [vmem:[%s1 + $0x328] sm:$0xff]
    %v130 = vld [vmem:[%s1 + $0x330] sm:$0xff]
    %v131 = vld [vmem:[%s1 + $0x338] sm:$0xff]
    %v132 = vld [vmem:[%s1 + $0x340] sm:$0xff]
    %v133 = vld [vmem:[%s1 + $0x348] sm:$0xff]
    %v134 = vld [vmem:[%s1 + $0x350] sm:$0xff]
    %v135 = vld [vmem:[%s1 + $0x358] sm:$0xff]
    %v136 = vld [vmem:[%s1 + $0x360] sm:$0xff]
    %v137 = vld [vmem:[%s1 + $0x368] sm:$0xff]
    %v138 = vld [vmem:[%s1 + $0x370] sm:$0xff]
    %v139 = vld [vmem:[%s1 + $0x378] sm:$0xff]
    %v140 = vld [vmem:[%s1 + $0x380] sm:$0xff]
    %v141 = vld [vmem:[%s1 + $0x388] sm:$0xff]
    %v142 = vld [vmem:[%s1 + $0x390] sm:$0xff]
    %v143 = vld [vmem:[%s1 + $0x398] sm:$0xff]
    %v144 = vld [vmem:[%s1 + $0x3a0] sm:$0xff]
    %v145 = vld [vmem:[%s1 + $0x3a8] sm:$0xff]
    %v146 = vld [vmem:[%s1 + $0x3b0] sm:$0xff]
    %v147 = vld [vmem:[%s1 + $0x3b8] sm:$0xff]
    %v148 = vld [vmem:[%s1 + $0x3c0] sm:$0xff]
    %v149 = vld [vmem:[%s1 + $0x3c8] sm:$0xff]
    %v150 = vld [vmem:[%s1 + $0x3d0] sm:$0xff]
    %v151 = vld [vmem:[%s1 + $0x3d8] sm:$0xff]
    %v152 = vld [vmem:[%s1 + $0x3e0] sm:$0xff]
    %v153 = vld [vmem:[%s1 + $0x3e8] sm:$0xff]
    %v154 = vld [vmem:[%s1 + $0x3f0] sm:$0xff]
    %v155 = vld [vmem:[%s1 + $0x3f8] sm:$0xff]
    %v156 = vld [vmem:[%s2] sm:$0x1]
    %v158 = vlaneseq
    %v159 = vshrl.u32 %v158, 7
    %v160 = vsub.s32 0, %v159
    %v161 = vrot.slane %v27, %v160
    %v162 = vlaneseq
    %v163 = vshrl.u32 %v162, 7
    %v164 = vsub.s32 1, %v163
    %v165 = vrot.slane %v27, %v164
    %v166 = vlaneseq
    %v167 = vshrl.u32 %v166, 7
    %v168 = vsub.s32 2, %v167
    %v169 = vrot.slane %v27, %v168
    %v170 = vlaneseq
    %v171 = vshrl.u32 %v170, 7
    %v172 = vsub.s32 3, %v171
    %v173 = vrot.slane %v27, %v172
    %v174 = vlaneseq
    %v175 = vshrl.u32 %v174, 7
    %v176 = vsub.s32 4, %v175
    %v177 = vrot.slane %v27, %v176
    %v178 = vlaneseq
    %v179 = vshrl.u32 %v178, 7
    %v180 = vsub.s32 5, %v179
    %v181 = vrot.slane %v27, %v180
    %v182 = vlaneseq
    %v183 = vshrl.u32 %v182, 7
    %v184 = vsub.s32 6, %v183
    %v185 = vrot.slane %v27, %v184
    %v186 = vlaneseq
    %v187 = vshrl.u32 %v186, 7
    %v188 = vsub.s32 7, %v187
    %v189 = vrot.slane %v27, %v188
    %198 = vmatprep.subr.mxu0 0.0
    %199 = vmatpush1.msra.mxu0 %v43
    %200 = vmatprep.subr.mxu0 0.0
    %201 = vmatpush1.msra.mxu0 %v42
    %202 = vmatprep.subr.mxu0 0.0
    %203 = vmatpush1.msra.mxu0 %v41
    %204 = vmatprep.subr.mxu0 0.0
    %205 = vmatpush1.msra.mxu0 %v40
    %206 = vmatprep.subr.mxu0 0.0
    %207 = vmatpush1.msra.mxu0 %v39
    %208 = vmatprep.subr.mxu0 0.0
    %209 = vmatpush1.msra.mxu0 %v38
    %210 = vmatprep.subr.mxu0 0.0
    %211 = vmatpush1.msra.mxu0 %v37
    %212 = vmatprep.subr.mxu0 0.0
    %213 = vmatpush1.msra.mxu0 %v36
    %214 = vmatprep.subr.mxu0 0.0
    %215 = vmatpush1.msra.mxu0 %v35
    %216 = vmatprep.subr.mxu0 0.0
    %217 = vmatpush1.msra.mxu0 %v34
    %218 = vmatprep.subr.mxu0 0.0
    %219 = vmatpush1.msra.mxu0 %v33
    %220 = vmatprep.subr.mxu0 0.0
    %221 = vmatpush1.msra.mxu0 %v32
    %222 = vmatprep.subr.mxu0 0.0
    %223 = vmatpush1.msra.mxu0 %v31
    %224 = vmatprep.subr.mxu0 0.0
    %225 = vmatpush1.msra.mxu0 %v30
    %226 = vmatprep.subr.mxu0 0.0
    %227 = vmatpush1.msra.mxu0 %v29
    %228 = vmatprep.subr.mxu0 0.0
    %229 = vmatpush1.msra.mxu0 %v28
    %230 = vmatprep.subr.mxu0 0.0
    %231 = vmatpush2.msra.mxu0 %v59
    %232 = vmatprep.subr.mxu0 0.0
    %233 = vmatpush2.msra.mxu0 %v58
    %234 = vmatprep.subr.mxu0 0.0
    %235 = vmatpush2.msra.mxu0 %v57
    %236 = vmatprep.subr.mxu0 0.0
    %237 = vmatpush2.msra.mxu0 %v56
    %238 = vmatprep.subr.mxu0 0.0
    %239 = vmatpush2.msra.mxu0 %v55
    %240 = vmatprep.subr.mxu0 0.0
    %241 = vmatpush2.msra.mxu0 %v54
    %242 = vmatprep.subr.mxu0 0.0
    %243 = vmatpush2.msra.mxu0 %v53
    %244 = vmatprep.subr.mxu0 0.0
    %245 = vmatpush2.msra.mxu0 %v52
    %246 = vmatprep.subr.mxu0 0.0
    %247 = vmatpush2.msra.mxu0 %v51
    %248 = vmatprep.subr.mxu0 0.0
    %249 = vmatpush2.msra.mxu0 %v50
    %250 = vmatprep.subr.mxu0 0.0
    %251 = vmatpush2.msra.mxu0 %v49
    %252 = vmatprep.subr.mxu0 0.0
    %253 = vmatpush2.msra.mxu0 %v48
    %254 = vmatprep.subr.mxu0 0.0
    %255 = vmatpush2.msra.mxu0 %v47
    %256 = vmatprep.subr.mxu0 0.0
    %257 = vmatpush2.msra.mxu0 %v46
    %258 = vmatprep.subr.mxu0 0.0
    %259 = vmatpush2.msra.mxu0 %v45
    %260 = vmatprep.subr.mxu0 0.0
    %261 = vmatpush2.msra.mxu0 %v44
    %262 = vmatprep.mubr.f32.mxu0 %v165
    %263 = vmatmul.mubr.f32.gmra.mxu0 %v161
    %v264 = vpop.f32.mrf.mxu0
    %v265 = vadd.f32 %v156, %v264
    %v266 = vpop.f32.mrf.mxu0
    %267 = vdwg.mxu0
    %268 = vmatprep.subr.mxu0 0.0
    %269 = vmatpush1.msra.mxu0 %v75
    %270 = vmatprep.subr.mxu0 0.0
    %271 = vmatpush1.msra.mxu0 %v74
    %272 = vmatprep.subr.mxu0 0.0
    %273 = vmatpush1.msra.mxu0 %v73
    %274 = vmatprep.subr.mxu0 0.0
    %275 = vmatpush1.msra.mxu0 %v72
    %276 = vmatprep.subr.mxu0 0.0
    %277 = vmatpush1.msra.mxu0 %v71
    %278 = vmatprep.subr.mxu0 0.0
    %279 = vmatpush1.msra.mxu0 %v70
    %280 = vmatprep.subr.mxu0 0.0
    %281 = vmatpush1.msra.mxu0 %v69
    %282 = vmatprep.subr.mxu0 0.0
    %283 = vmatpush1.msra.mxu0 %v68
    %284 = vmatprep.subr.mxu0 0.0
    %285 = vmatpush1.msra.mxu0 %v67
    %286 = vmatprep.subr.mxu0 0.0
    %287 = vmatpush1.msra.mxu0 %v66
    %288 = vmatprep.subr.mxu0 0.0
    %289 = vmatpush1.msra.mxu0 %v65
    %290 = vmatprep.subr.mxu0 0.0
    %291 = vmatpush1.msra.mxu0 %v64
    %292 = vmatprep.subr.mxu0 0.0
    %293 = vmatpush1.msra.mxu0 %v63
    %294 = vmatprep.subr.mxu0 0.0
    %295 = vmatpush1.msra.mxu0 %v62
    %296 = vmatprep.subr.mxu0 0.0
    %297 = vmatpush1.msra.mxu0 %v61
    %298 = vmatprep.subr.mxu0 0.0
    %299 = vmatpush1.msra.mxu0 %v60
    %300 = vmatprep.subr.mxu0 0.0
    %301 = vmatpush2.msra.mxu0 %v91
    %302 = vmatprep.subr.mxu0 0.0
    %303 = vmatpush2.msra.mxu0 %v90
    %304 = vmatprep.subr.mxu0 0.0
    %305 = vmatpush2.msra.mxu0 %v89
    %306 = vmatprep.subr.mxu0 0.0
    %307 = vmatpush2.msra.mxu0 %v88
    %308 = vmatprep.subr.mxu0 0.0
    %309 = vmatpush2.msra.mxu0 %v87
    %310 = vmatprep.subr.mxu0 0.0
    %311 = vmatpush2.msra.mxu0 %v86
    %312 = vmatprep.subr.mxu0 0.0
    %313 = vmatpush2.msra.mxu0 %v85
    %314 = vmatprep.subr.mxu0 0.0
    %315 = vmatpush2.msra.mxu0 %v84
    %316 = vmatprep.subr.mxu0 0.0
    %317 = vmatpush2.msra.mxu0 %v83
    %318 = vmatprep.subr.mxu0 0.0
    %319 = vmatpush2.msra.mxu0 %v82
    %320 = vmatprep.subr.mxu0 0.0
    %321 = vmatpush2.msra.mxu0 %v81
    %322 = vmatprep.subr.mxu0 0.0
    %323 = vmatpush2.msra.mxu0 %v80
    %324 = vmatprep.subr.mxu0 0.0
    %325 = vmatpush2.msra.mxu0 %v79
    %326 = vmatprep.subr.mxu0 0.0
    %327 = vmatpush2.msra.mxu0 %v78
    %328 = vmatprep.subr.mxu0 0.0
    %329 = vmatpush2.msra.mxu0 %v77
    %330 = vmatprep.subr.mxu0 0.0
    %331 = vmatpush2.msra.mxu0 %v76
    %332 = vmatprep.mubr.f32.mxu0 %v173
    %333 = vmatmul.mubr.f32.gmra.mxu0 %v169
    %v334 = vpop.f32.mrf.mxu0
    %v335 = vadd.f32 %v265, %v334
    %v336 = vpop.f32.mrf.mxu0
    %337 = vdwg.mxu0
    %338 = vmatprep.subr.mxu0 0.0
    %339 = vmatpush1.msra.mxu0 %v107
    %340 = vmatprep.subr.mxu0 0.0
    %341 = vmatpush1.msra.mxu0 %v106
    %342 = vmatprep.subr.mxu0 0.0
    %343 = vmatpush1.msra.mxu0 %v105
    %344 = vmatprep.subr.mxu0 0.0
    %345 = vmatpush1.msra.mxu0 %v104
    %346 = vmatprep.subr.mxu0 0.0
    %347 = vmatpush1.msra.mxu0 %v103
    %348 = vmatprep.subr.mxu0 0.0
    %349 = vmatpush1.msra.mxu0 %v102
    %350 = vmatprep.subr.mxu0 0.0
    %351 = vmatpush1.msra.mxu0 %v101
    %352 = vmatprep.subr.mxu0 0.0
    %353 = vmatpush1.msra.mxu0 %v100
    %354 = vmatprep.subr.mxu0 0.0
    %355 = vmatpush1.msra.mxu0 %v99
    %356 = vmatprep.subr.mxu0 0.0
    %357 = vmatpush1.msra.mxu0 %v98
    %358 = vmatprep.subr.mxu0 0.0
    %359 = vmatpush1.msra.mxu0 %v97
    %360 = vmatprep.subr.mxu0 0.0
    %361 = vmatpush1.msra.mxu0 %v96
    %362 = vmatprep.subr.mxu0 0.0
    %363 = vmatpush1.msra.mxu0 %v95
    %364 = vmatprep.subr.mxu0 0.0
    %365 = vmatpush1.msra.mxu0 %v94
    %366 = vmatprep.subr.mxu0 0.0
    %367 = vmatpush1.msra.mxu0 %v93
    %368 = vmatprep.subr.mxu0 0.0
    %369 = vmatpush1.msra.mxu0 %v92
    %370 = vmatprep.subr.mxu0 0.0
    %371 = vmatpush2.msra.mxu0 %v123
    %372 = vmatprep.subr.mxu0 0.0
    %373 = vmatpush2.msra.mxu0 %v122
    %374 = vmatprep.subr.mxu0 0.0
    %375 = vmatpush2.msra.mxu0 %v121
    %376 = vmatprep.subr.mxu0 0.0
    %377 = vmatpush2.msra.mxu0 %v120
    %378 = vmatprep.subr.mxu0 0.0
    %379 = vmatpush2.msra.mxu0 %v119
    %380 = vmatprep.subr.mxu0 0.0
    %381 = vmatpush2.msra.mxu0 %v118
    %382 = vmatprep.subr.mxu0 0.0
    %383 = vmatpush2.msra.mxu0 %v117
    %384 = vmatprep.subr.mxu0 0.0
    %385 = vmatpush2.msra.mxu0 %v116
    %386 = vmatprep.subr.mxu0 0.0
    %387 = vmatpush2.msra.mxu0 %v115
    %388 = vmatprep.subr.mxu0 0.0
    %389 = vmatpush2.msra.mxu0 %v114
    %390 = vmatprep.subr.mxu0 0.0
    %391 = vmatpush2.msra.mxu0 %v113
    %392 = vmatprep.subr.mxu0 0.0
    %393 = vmatpush2.msra.mxu0 %v112
    %394 = vmatprep.subr.mxu0 0.0
    %395 = vmatpush2.msra.mxu0 %v111
    %396 = vmatprep.subr.mxu0 0.0
    %397 = vmatpush2.msra.mxu0 %v110
    %398 = vmatprep.subr.mxu0 0.0
    %399 = vmatpush2.msra.mxu0 %v109
    %400 = vmatprep.subr.mxu0 0.0
    %401 = vmatpush2.msra.mxu0 %v108
    %402 = vmatprep.mubr.f32.mxu0 %v181
    %403 = vmatmul.mubr.f32.gmra.mxu0 %v177
    %v404 = vpop.f32.mrf.mxu0
    %v405 = vadd.f32 %v335, %v404
    %v406 = vpop.f32.mrf.mxu0
    %407 = vdwg.mxu0
    %408 = vmatprep.subr.mxu0 0.0
    %409 = vmatpush1.msra.mxu0 %v139
    %410 = vmatprep.subr.mxu0 0.0
    %411 = vmatpush1.msra.mxu0 %v138
    %412 = vmatprep.subr.mxu0 0.0
    %413 = vmatpush1.msra.mxu0 %v137
    %414 = vmatprep.subr.mxu0 0.0
    %415 = vmatpush1.msra.mxu0 %v136
    %416 = vmatprep.subr.mxu0 0.0
    %417 = vmatpush1.msra.mxu0 %v135
    %418 = vmatprep.subr.mxu0 0.0
    %419 = vmatpush1.msra.mxu0 %v134
    %420 = vmatprep.subr.mxu0 0.0
    %421 = vmatpush1.msra.mxu0 %v133
    %422 = vmatprep.subr.mxu0 0.0
    %423 = vmatpush1.msra.mxu0 %v132
    %424 = vmatprep.subr.mxu0 0.0
    %425 = vmatpush1.msra.mxu0 %v131
    %426 = vmatprep.subr.mxu0 0.0
    %427 = vmatpush1.msra.mxu0 %v130
    %428 = vmatprep.subr.mxu0 0.0
    %429 = vmatpush1.msra.mxu0 %v129
    %430 = vmatprep.subr.mxu0 0.0
    %431 = vmatpush1.msra.mxu0 %v128
    %432 = vmatprep.subr.mxu0 0.0
    %433 = vmatpush1.msra.mxu0 %v127
    %434 = vmatprep.subr.mxu0 0.0
    %435 = vmatpush1.msra.mxu0 %v126
    %436 = vmatprep.subr.mxu0 0.0
    %437 = vmatpush1.msra.mxu0 %v125
    %438 = vmatprep.subr.mxu0 0.0
    %439 = vmatpush1.msra.mxu0 %v124
    %440 = vmatprep.subr.mxu0 0.0
    %441 = vmatpush2.msra.mxu0 %v155
    %442 = vmatprep.subr.mxu0 0.0
    %443 = vmatpush2.msra.mxu0 %v154
    %444 = vmatprep.subr.mxu0 0.0
    %445 = vmatpush2.msra.mxu0 %v153
    %446 = vmatprep.subr.mxu0 0.0
    %447 = vmatpush2.msra.mxu0 %v152
    %448 = vmatprep.subr.mxu0 0.0
    %449 = vmatpush2.msra.mxu0 %v151
    %450 = vmatprep.subr.mxu0 0.0
    %451 = vmatpush2.msra.mxu0 %v150
    %452 = vmatprep.subr.mxu0 0.0
    %453 = vmatpush2.msra.mxu0 %v149
    %454 = vmatprep.subr.mxu0 0.0
    %455 = vmatpush2.msra.mxu0 %v148
    %456 = vmatprep.subr.mxu0 0.0
    %457 = vmatpush2.msra.mxu0 %v147
    %458 = vmatprep.subr.mxu0 0.0
    %459 = vmatpush2.msra.mxu0 %v146
    %460 = vmatprep.subr.mxu0 0.0
    %461 = vmatpush2.msra.mxu0 %v145
    %462 = vmatprep.subr.mxu0 0.0
    %463 = vmatpush2.msra.mxu0 %v144
    %464 = vmatprep.subr.mxu0 0.0
    %465 = vmatpush2.msra.mxu0 %v143
    %466 = vmatprep.subr.mxu0 0.0
    %467 = vmatpush2.msra.mxu0 %v142
    %468 = vmatprep.subr.mxu0 0.0
    %469 = vmatpush2.msra.mxu0 %v141
    %470 = vmatprep.subr.mxu0 0.0
    %471 = vmatpush2.msra.mxu0 %v140
    %472 = vmatprep.mubr.f32.mxu0 %v189
    %473 = vmatmul.mubr.f32.gmra.mxu0 %v185
    %v474 = vpop.f32.mrf.mxu0
    %v475 = vadd.f32 %v405, %v474
    %v476 = vpop.f32.mrf.mxu0
    %477 = vdwg.mxu0
    %v478 = vld [vmem:[%s3] sm:$0xff]
    %v479 = vld [vmem:[%s3 + $0x8] sm:$0xff]
    %v480 = vld [vmem:[%s3 + $0x10] sm:$0xff]
    %v481 = vld [vmem:[%s3 + $0x18] sm:$0xff]
    %v482 = vld [vmem:[%s3 + $0x20] sm:$0xff]
    %v483 = vld [vmem:[%s3 + $0x28] sm:$0xff]
    %v484 = vld [vmem:[%s3 + $0x30] sm:$0xff]
    %v485 = vld [vmem:[%s3 + $0x38] sm:$0xff]
    %v486 = vld [vmem:[%s3 + $0x40] sm:$0xff]
    %v487 = vld [vmem:[%s3 + $0x48] sm:$0xff]
    %v488 = vld [vmem:[%s3 + $0x50] sm:$0xff]
    %v489 = vld [vmem:[%s3 + $0x58] sm:$0xff]
    %v490 = vld [vmem:[%s3 + $0x60] sm:$0xff]
    %v491 = vld [vmem:[%s3 + $0x68] sm:$0xff]
    %v492 = vld [vmem:[%s3 + $0x70] sm:$0xff]
    %v493 = vld [vmem:[%s3 + $0x78] sm:$0xff]
    %v494 = vld [vmem:[%s4] sm:$0x1]
    %495 = vmatprep.subr.mxu0 0.0
    %496 = vmatpush1.msra.mxu0 %v493
    %497 = vmatprep.subr.mxu0 0.0
    %498 = vmatpush1.msra.mxu0 %v492
    %499 = vmatprep.subr.mxu0 0.0
    %500 = vmatpush1.msra.mxu0 %v491
    %501 = vmatprep.subr.mxu0 0.0
    %502 = vmatpush1.msra.mxu0 %v490
    %503 = vmatprep.subr.mxu0 0.0
    %504 = vmatpush1.msra.mxu0 %v489
    %505 = vmatprep.subr.mxu0 0.0
    %506 = vmatpush1.msra.mxu0 %v488
    %507 = vmatprep.subr.mxu0 0.0
    %508 = vmatpush1.msra.mxu0 %v487
    %509 = vmatprep.subr.mxu0 0.0
    %510 = vmatpush1.msra.mxu0 %v486
    %511 = vmatprep.subr.mxu0 0.0
    %512 = vmatpush1.msra.mxu0 %v485
    %513 = vmatprep.subr.mxu0 0.0
    %514 = vmatpush1.msra.mxu0 %v484
    %515 = vmatprep.subr.mxu0 0.0
    %516 = vmatpush1.msra.mxu0 %v483
    %517 = vmatprep.subr.mxu0 0.0
    %518 = vmatpush1.msra.mxu0 %v482
    %519 = vmatprep.subr.mxu0 0.0
    %520 = vmatpush1.msra.mxu0 %v481
    %521 = vmatprep.subr.mxu0 0.0
    %522 = vmatpush1.msra.mxu0 %v480
    %523 = vmatprep.subr.mxu0 0.0
    %524 = vmatpush1.msra.mxu0 %v479
    %525 = vmatprep.subr.mxu0 0.0
    %526 = vmatpush1.msra.mxu0 %v478
    %527 = vmatprep.subr.mxu0 0.0
    %528 = vmatpush2.msra.mxu0 0.0
    %529 = vmatprep.subr.mxu0 0.0
    %530 = vmatpush2.msra.mxu0 0.0
    %531 = vmatprep.subr.mxu0 0.0
    %532 = vmatpush2.msra.mxu0 0.0
    %533 = vmatprep.subr.mxu0 0.0
    %534 = vmatpush2.msra.mxu0 0.0
    %535 = vmatprep.subr.mxu0 0.0
    %536 = vmatpush2.msra.mxu0 0.0
    %537 = vmatprep.subr.mxu0 0.0
    %538 = vmatpush2.msra.mxu0 0.0
    %539 = vmatprep.subr.mxu0 0.0
    %540 = vmatpush2.msra.mxu0 0.0
    %541 = vmatprep.subr.mxu0 0.0
    %542 = vmatpush2.msra.mxu0 0.0
    %543 = vmatprep.subr.mxu0 0.0
    %544 = vmatpush2.msra.mxu0 0.0
    %545 = vmatprep.subr.mxu0 0.0
    %546 = vmatpush2.msra.mxu0 0.0
    %547 = vmatprep.subr.mxu0 0.0
    %548 = vmatpush2.msra.mxu0 0.0
    %549 = vmatprep.subr.mxu0 0.0
    %550 = vmatpush2.msra.mxu0 0.0
    %551 = vmatprep.subr.mxu0 0.0
    %552 = vmatpush2.msra.mxu0 0.0
    %553 = vmatprep.subr.mxu0 0.0
    %554 = vmatpush2.msra.mxu0 0.0
    %555 = vmatprep.subr.mxu0 0.0
    %556 = vmatpush2.msra.mxu0 0.0
    %557 = vmatprep.subr.mxu0 0.0
    %558 = vmatpush2.msra.mxu0 0.0
    %559 = vmatprep.mubr.f32.mxu0 0.0
    %560 = vmatmul.mubr.f32.gmra.mxu0 %v475
    %v561 = vpop.f32.mrf.mxu0
    %v562 = vadd.f32 %v494, %v561
    %v563 = vpop.f32.mrf.mxu0
    %564 = vdwg.mxu0
    %v565 = vld [vmem:[%s5] sm:$0xff]
    %v566 = vld [vmem:[%s5 + $0x8] sm:$0xff]
    %v567 = vld [vmem:[%s5 + $0x10] sm:$0xff]
    %v568 = vld [vmem:[%s5 + $0x18] sm:$0xff]
    %v569 = vld [vmem:[%s5 + $0x20] sm:$0xff]
    %v570 = vld [vmem:[%s5 + $0x28] sm:$0xff]
    %v571 = vld [vmem:[%s5 + $0x30] sm:$0xff]
    %v572 = vld [vmem:[%s5 + $0x38] sm:$0xff]
    %v573 = vld [vmem:[%s6] sm:$0x1]
    %vm574 = vcmask 523264
    %v576 = vsel %vm574, %v562, 0
    %578 = vmatprep.subr.mxu0 0.0
    %579 = vmatpush1.msra.mxu0 0.0
    %580 = vmatprep.subr.mxu0 0.0
    %581 = vmatpush1.msra.mxu0 0.0
    %582 = vmatprep.subr.mxu0 0.0
    %583 = vmatpush1.msra.mxu0 0.0
    %584 = vmatprep.subr.mxu0 0.0
    %585 = vmatpush1.msra.mxu0 0.0
    %586 = vmatprep.subr.mxu0 0.0
    %587 = vmatpush1.msra.mxu0 0.0
    %588 = vmatprep.subr.mxu0 0.0
    %589 = vmatpush1.msra.mxu0 0.0
    %590 = vmatprep.subr.mxu0 0.0
    %591 = vmatpush1.msra.mxu0 0.0
    %592 = vmatprep.subr.mxu0 0.0
    %593 = vmatpush1.msra.mxu0 0.0
    %594 = vmatprep.subr.mxu0 0.0
    %595 = vmatpush1.msra.mxu0 %v572
    %596 = vmatprep.subr.mxu0 0.0
    %597 = vmatpush1.msra.mxu0 %v571
    %598 = vmatprep.subr.mxu0 0.0
    %599 = vmatpush1.msra.mxu0 %v570
    %600 = vmatprep.subr.mxu0 0.0
    %601 = vmatpush1.msra.mxu0 %v569
    %602 = vmatprep.subr.mxu0 0.0
    %603 = vmatpush1.msra.mxu0 %v568
    %604 = vmatprep.subr.mxu0 0.0
    %605 = vmatpush1.msra.mxu0 %v567
    %606 = vmatprep.subr.mxu0 0.0
    %607 = vmatpush1.msra.mxu0 %v566
    %608 = vmatprep.subr.mxu0 0.0
    %609 = vmatpush1.msra.mxu0 %v565
    %610 = vmatprep.subr.mxu0 0.0
    %611 = vmatpush2.msra.mxu0 0.0
    %612 = vmatprep.subr.mxu0 0.0
    %613 = vmatpush2.msra.mxu0 0.0
    %614 = vmatprep.subr.mxu0 0.0
    %615 = vmatpush2.msra.mxu0 0.0
    %616 = vmatprep.subr.mxu0 0.0
    %617 = vmatpush2.msra.mxu0 0.0
    %618 = vmatprep.subr.mxu0 0.0
    %619 = vmatpush2.msra.mxu0 0.0
    %620 = vmatprep.subr.mxu0 0.0
    %621 = vmatpush2.msra.mxu0 0.0
    %622 = vmatprep.subr.mxu0 0.0
    %623 = vmatpush2.msra.mxu0 0.0
    %624 = vmatprep.subr.mxu0 0.0
    %625 = vmatpush2.msra.mxu0 0.0
    %626 = vmatprep.subr.mxu0 0.0
    %627 = vmatpush2.msra.mxu0 0.0
    %628 = vmatprep.subr.mxu0 0.0
    %629 = vmatpush2.msra.mxu0 0.0
    %630 = vmatprep.subr.mxu0 0.0
    %631 = vmatpush2.msra.mxu0 0.0
    %632 = vmatprep.subr.mxu0 0.0
    %633 = vmatpush2.msra.mxu0 0.0
    %634 = vmatprep.subr.mxu0 0.0
    %635 = vmatpush2.msra.mxu0 0.0
    %636 = vmatprep.subr.mxu0 0.0
    %637 = vmatpush2.msra.mxu0 0.0
    %638 = vmatprep.subr.mxu0 0.0
    %639 = vmatpush2.msra.mxu0 0.0
    %640 = vmatprep.subr.mxu0 0.0
    %641 = vmatpush2.msra.mxu0 0.0
    %642 = vmatprep.mubr.f32.mxu0 0.0
    %643 = vmatmul.mubr.f32.gmra.mxu0 %v576
    %v644 = vpop.f32.mrf.mxu0
    %v645 = vadd.f32 %v573, %v644
    %v646 = vpop.f32.mrf.mxu0
    %647 = vdwg.mxu0
    %649 = vset.pattern.permute.xlu0 0
    %650 = vperm.xlu0 %649, %v645
    %v651 = vpop.permute.xlu0 %650
    %v653 = vadd.f32 %v651, %v645
    %654 = vrot.lane.b32.xlu0 %v645, 127
    %v655 = vpop.permute.xlu0 %654
    %vm657 = vcmask 24576
    %v658 = vsel %vm657, %v655, 0.0
    %659 = vadd.xlane.f32.xlu0 %v658
    %v660 = vpop.xlane.xlu0 %659
    %v661 = vrcp.pop 4.0
    %v662 = vmul.f32 %v660, %v661
    %v663 = vsub.f32 %v653, %v662
    %665 = vrot.lane.b32.xlu0 %v663, 127
    %v666 = vpop.permute.xlu0 %665
    %668 = vst.msk [vmem:[#allocation2] sm:$0x1] %vm657, %v666
    // Predicated region
    $region30: #{net_forward.7} parent=1 // pred_check
      _
    $region31: #{net_forward.7} parent=1 // pred_check_branch
      %670 = sbr.rel (0) target = $region33
    $region32: #{net_forward.7} parent=1 // pred_region
      %s672 = ssub.s32 16, 16
      %673 = vsyncadd [#allocation3], %s672
      %s675 = sshll.u32 [#allocation2], 4
      %s676 = int_to_ptr.vmem [resolvable:$true] %s675
      %678 = dma.vmem_to_hbm [thread:$0]  %s676, 16, %s7, [#allocation3]
    $region33: #{net_forward.7} parent=1 // pred_fallthru
      _
    // Predicated region
    $region34: #{net_forward.7} parent=1 // pred_check
      _
    $region35: #{net_forward.7} parent=1 // pred_check_branch
      %680 = sbr.rel (0) target = $region37
    $region36: #{net_forward.7} parent=1 // pred_region
      %681 = dma.done [#allocation3], 16
    $region37: #{net_forward.7} parent=1 // pred_fallthru
      _
    %682 = vsyncpa [#allocation3], 1

</llo_original>
